<compile_context>
chip_gen: v5e
topology: v5e:2x2
jax: 0.10.0
libtpu: 0.0.40
codegen_flags: <defaults>
</compile_context>

<pallas_src>
import math
import numpy as np
import jax
import jax.numpy as jnp
from jax.experimental import pallas as pl
from jax.experimental.pallas import tpu as pltpu

# ---- model sizes (small, consistent with the forward pass) ----
B, N = 2, 8            # bags, instances per bag
C, H, W = 3, 16, 16    # instance image (NCHW)
K, PAD = 3, 1          # conv kernel / padding
C1 = 8                 # conv output channels
F = 16                 # features per instance (in [0,1] via sigmoid)
NUM_BINS = 21          # DistributionPoolingFilter default
SIGMA = 0.0167         # DistributionPoolingFilter default
HIDDEN = 32            # regressor hidden width

M = B * N
HW = H * W
CKK = C * K * K
FNB = F * NUM_BINS

ALPHA = 1.0 / math.sqrt(2.0 * math.pi * SIGMA * SIGMA)
BETA = -1.0 / (2.0 * SIGMA * SIGMA)


def _sigmoid(x):
    # explicit formulation (exp lowers to the EUP; avoids relying on logistic lowering)
    return 1.0 / (1.0 + jnp.exp(-x))


# ---------------- fused Pallas kernel ----------------

def _mil_fused_kernel(patch_ref, avg_ref, cw_ref, cb_ref, fw_ref, fb_ref,
                      e_ref, et_ref, sp_ref, sel_ref,
                      w1_ref, b1_ref, w2_ref, b2_ref, out_ref):
    # patch_ref: (M*HW, CKK)   im2col patches for all instances
    # avg_ref:   (M, M*HW)     block-diagonal 1/HW -> global average pool as a matmul
    # cw_ref:    (CKK, C1)  cb_ref: (1, C1)  fw_ref: (C1, F)  fb_ref: (1, F)
    # e_ref:     (F, F*NB)     E[f, f*NB+b] = 1   (repeat each feature NB times)
    # et_ref:    (F*NB, F)     E^T                (sum over bins per feature)
    # sp_ref:    (1, F*NB)     sample points tiled per feature
    # sel_ref:   (B, M)        bag membership     (sum over instances per bag)
    # w1_ref: (F*NB, HIDDEN)  b1_ref: (1, HIDDEN)  w2_ref: (1, HIDDEN)  b2_ref: (1, 1)
    # out_ref:   (B, 1)

    # --- FeatureExtractor: conv(3x3,pad=1) as one big matmul + ReLU + GAP + FC + sigmoid
    conv = jnp.dot(patch_ref[...], cw_ref[...],
                   preferred_element_type=jnp.float32) + cb_ref[...]          # (M*HW, C1)
    conv = jnp.maximum(conv, 0.0)
    pooled = jnp.dot(avg_ref[...], conv,
                     preferred_element_type=jnp.float32)                      # (M, C1)
    feats = _sigmoid(jnp.dot(pooled, fw_ref[...],
                             preferred_element_type=jnp.float32) + fb_ref[...])  # (M, F)

    # --- DistributionPoolingFilter, lane-dense over the flattened F*NUM_BINS axis
    feat_exp = jnp.dot(feats, e_ref[...],
                       preferred_element_type=jnp.float32)                    # (M, F*NB)
    diff = sp_ref[...] - feat_exp
    res = ALPHA * jnp.exp(BETA * (diff * diff))                               # (M, F*NB)
    unnorm = jnp.dot(sel_ref[...], res,
                     preferred_element_type=jnp.float32)                      # (B, F*NB) sum over instances
    norm_f = jnp.dot(unnorm, et_ref[...],
                     preferred_element_type=jnp.float32)                      # (B, F)    sum over bins
    norm = jnp.dot(norm_f, e_ref[...],
                   preferred_element_type=jnp.float32)                        # (B, F*NB) broadcast back
    pooled_flat = unnorm / norm                                               # == (B, F, NB).view(B, -1)

    # --- Regressor
    h = jnp.dot(pooled_flat, w1_ref[...],
                preferred_element_type=jnp.float32) + b1_ref[...]
    h = jnp.maximum(h, 0.0)                                                   # (B, HIDDEN)
    y = jnp.sum(h * w2_ref[...], axis=1, keepdims=True) + b2_ref[...]         # (B, 1)
    out_ref[...] = _sigmoid(y)


# ---------------- JAX glue ----------------

def _im2col(x):
    # x: (M, C, H, W) -> (M*HW, CKK); column order (c, kh, kw) matches the
    # flattened PyTorch conv weight (C_out, C_in, kh, kw).
    Mi = x.shape[0]
    xp = jnp.pad(x, ((0, 0), (0, 0), (PAD, PAD), (PAD, PAD)))
    cols = [xp[:, :, di:di + H, dj:dj + W] for di in range(K) for dj in range(K)]
    p = jnp.stack(cols, axis=2)                 # (M, C, K*K, H, W)
    p = p.reshape(Mi, CKK, HW)
    return p.transpose(0, 2, 1).reshape(Mi * HW, CKK)


def _static_consts():
    E = np.zeros((F, FNB), np.float32)
    for f in range(F):
        E[f, f * NUM_BINS:(f + 1) * NUM_BINS] = 1.0
    sp = np.linspace(0.0, 1.0, NUM_BINS).astype(np.float32)
    sp_flat = np.tile(sp, F).reshape(1, FNB)
    S = np.zeros((B, M), np.float32)
    for b in range(B):
        S[b, b * N:(b + 1) * N] = 1.0
    avg_t = np.zeros((M, M * HW), np.float32)
    for m in range(M):
        avg_t[m, m * HW:(m + 1) * HW] = 1.0 / HW
    return (jnp.asarray(E), jnp.asarray(np.ascontiguousarray(E.T)),
            jnp.asarray(sp_flat), jnp.asarray(S), jnp.asarray(avg_t))


def init_params(key):
    ks = jax.random.split(key, 6)
    conv_w = jax.random.normal(ks[0], (C1, C, K, K), jnp.float32) * 0.1   # PyTorch layout
    conv_b = jax.random.normal(ks[1], (1, C1), jnp.float32) * 0.01
    fc_w = jax.random.normal(ks[2], (C1, F), jnp.float32) * 0.1
    fc_b = jax.random.normal(ks[3], (1, F), jnp.float32) * 0.01
    r_w1 = jax.random.normal(ks[4], (FNB, HIDDEN), jnp.float32) * 0.05
    r_b1 = jnp.zeros((1, HIDDEN), jnp.float32)
    r_w2_row = jax.random.normal(ks[5], (1, HIDDEN), jnp.float32) * 0.05  # (HIDDEN,1)^T
    r_b2 = jnp.zeros((1, 1), jnp.float32)
    conv_w_mat = conv_w.reshape(C1, CKK).T      # (CKK, C1) for im2col matmul
    return (conv_w_mat, conv_b, fc_w, fc_b, r_w1, r_b1, r_w2_row, r_b2)


def mil_model_forward(x, params, consts):
    conv_w_mat, conv_b, fc_w, fc_b, r_w1, r_b1, r_w2_row, r_b2 = params
    E, E_t, sp_flat, S, avg_t = consts
    patches = _im2col(x.reshape(M, C, H, W))    # (M*HW, CKK)

    out = pl.pallas_call(
        _mil_fused_kernel,
        out_shape=jax.ShapeDtypeStruct((B, 1), jnp.float32),
        compiler_params=pltpu.CompilerParams(vmem_limit_bytes=32 * 1024 * 1024),
    )(patches, avg_t, conv_w_mat, conv_b, fc_w, fc_b,
      E, E_t, sp_flat, S, r_w1, r_b1, r_w2_row, r_b2)
    return out


if __name__ == "__main__":
    key = jax.random.PRNGKey(0)
    kx, kp = jax.random.split(key)
    x = jax.random.uniform(kx, (B, N, C, H, W), jnp.float32)   # NCHW instances
    params = init_params(kp)
    consts = _static_consts()
    fwd = jax.jit(mil_model_forward)
    y = jax.block_until_ready(fwd(x, params, consts))
    assert y.shape == (B, 1), y.shape
    assert bool(jnp.all(jnp.isfinite(y)))
    print("KERNEL_OK")
</pallas_src>

<mosaic_0001>
module attributes {stable_mosaic.version = 11 : i64} {
  func.func @_mil_fused_kernel(%arg0: memref<4096x27xf32, #tpu.memory_space<vmem>>, %arg1: memref<16x4096xf32, #tpu.memory_space<vmem>>, %arg2: memref<27x8xf32, #tpu.memory_space<vmem>>, %arg3: memref<1x8xf32, #tpu.memory_space<vmem>>, %arg4: memref<8x16xf32, #tpu.memory_space<vmem>>, %arg5: memref<1x16xf32, #tpu.memory_space<vmem>>, %arg6: memref<16x336xf32, #tpu.memory_space<vmem>>, %arg7: memref<336x16xf32, #tpu.memory_space<vmem>>, %arg8: memref<1x336xf32, #tpu.memory_space<vmem>>, %arg9: memref<2x16xf32, #tpu.memory_space<vmem>>, %arg10: memref<336x32xf32, #tpu.memory_space<vmem>>, %arg11: memref<1x32xf32, #tpu.memory_space<vmem>>, %arg12: memref<1x32xf32, #tpu.memory_space<vmem>>, %arg13: memref<1x1xf32, #tpu.memory_space<vmem>>, %arg14: memref<2x1xf32, #tpu.memory_space<vmem>>) attributes {dimension_semantics = [], scalar_prefetch = 0 : i64, scratch_operands = 0 : i64, tpu.core_type = #tpu.core_type<tc>} {
    %c0 = arith.constant 0 : index
    %c0_0 = arith.constant 0 : index
    %0 = vector.load %arg0[%c0, %c0_0] : memref<4096x27xf32, #tpu.memory_space<vmem>>, vector<4096x27xf32>
    %c0_1 = arith.constant 0 : index
    %c0_2 = arith.constant 0 : index
    %1 = vector.load %arg2[%c0_1, %c0_2] : memref<27x8xf32, #tpu.memory_space<vmem>>, vector<27x8xf32>
    %cst = arith.constant dense<0.000000e+00> : vector<4096x8xf32>
    %2 = tpu.matmul %0, %1, %cst {dimension_numbers = #tpu.dot_dimension_numbers<[1], [0], [0], [1], [0, 0, 1, 1], [], []>} : vector<4096x27xf32>, vector<27x8xf32>, vector<4096x8xf32> -> vector<4096x8xf32>
    %c0_3 = arith.constant 0 : index
    %c0_4 = arith.constant 0 : index
    %3 = vector.load %arg3[%c0_3, %c0_4] : memref<1x8xf32, #tpu.memory_space<vmem>>, vector<1x8xf32>
    %4 = vector.broadcast %3 : vector<1x8xf32> to vector<4096x8xf32>
    %5 = arith.addf %2, %4 : vector<4096x8xf32>
    %cst_5 = arith.constant 0.000000e+00 : f32
    %6 = vector.broadcast %cst_5 : f32 to vector<4096x8xf32>
    %7 = arith.maximumf %5, %6 : vector<4096x8xf32>
    %c0_6 = arith.constant 0 : index
    %c0_7 = arith.constant 0 : index
    %8 = vector.load %arg1[%c0_6, %c0_7] : memref<16x4096xf32, #tpu.memory_space<vmem>>, vector<16x4096xf32>
    %cst_8 = arith.constant dense<0.000000e+00> : vector<16x8xf32>
    %9 = tpu.matmul %8, %7, %cst_8 {dimension_numbers = #tpu.dot_dimension_numbers<[1], [0], [0], [1], [0, 0, 1, 1], [], []>} : vector<16x4096xf32>, vector<4096x8xf32>, vector<16x8xf32> -> vector<16x8xf32>
    %c0_9 = arith.constant 0 : index
    %c0_10 = arith.constant 0 : index
    %10 = vector.load %arg4[%c0_9, %c0_10] : memref<8x16xf32, #tpu.memory_space<vmem>>, vector<8x16xf32>
    %cst_11 = arith.constant dense<0.000000e+00> : vector<16x16xf32>
    %11 = tpu.matmul %9, %10, %cst_11 {dimension_numbers = #tpu.dot_dimension_numbers<[1], [0], [0], [1], [0, 0, 1, 1], [], []>} : vector<16x8xf32>, vector<8x16xf32>, vector<16x16xf32> -> vector<16x16xf32>
    %c0_12 = arith.constant 0 : index
    %c0_13 = arith.constant 0 : index
    %12 = vector.load %arg5[%c0_12, %c0_13] : memref<1x16xf32, #tpu.memory_space<vmem>>, vector<1x16xf32>
    %13 = vector.broadcast %12 : vector<1x16xf32> to vector<16x16xf32>
    %14 = arith.addf %11, %13 : vector<16x16xf32>
    %cst_14 = arith.constant 0.000000e+00 : f32
    %15 = vector.broadcast %cst_14 : f32 to vector<16x16xf32>
    %16 = arith.subf %15, %14 : vector<16x16xf32>
    %17 = math.exp %16 : vector<16x16xf32>
    %cst_15 = arith.constant 1.000000e+00 : f32
    %18 = vector.broadcast %cst_15 : f32 to vector<16x16xf32>
    %19 = arith.addf %18, %17 : vector<16x16xf32>
    %cst_16 = arith.constant 1.000000e+00 : f32
    %20 = vector.broadcast %cst_16 : f32 to vector<16x16xf32>
    %21 = arith.divf %20, %19 : vector<16x16xf32>
    %c0_17 = arith.constant 0 : index
    %c0_18 = arith.constant 0 : index
    %22 = vector.load %arg6[%c0_17, %c0_18] : memref<16x336xf32, #tpu.memory_space<vmem>>, vector<16x336xf32>
    %cst_19 = arith.constant dense<0.000000e+00> : vector<16x336xf32>
    %23 = tpu.matmul %21, %22, %cst_19 {dimension_numbers = #tpu.dot_dimension_numbers<[1], [0], [0], [1], [0, 0, 1, 1], [], []>} : vector<16x16xf32>, vector<16x336xf32>, vector<16x336xf32> -> vector<16x336xf32>
    %c0_20 = arith.constant 0 : index
    %c0_21 = arith.constant 0 : index
    %24 = vector.load %arg8[%c0_20, %c0_21] : memref<1x336xf32, #tpu.memory_space<vmem>>, vector<1x336xf32>
    %25 = vector.broadcast %24 : vector<1x336xf32> to vector<16x336xf32>
    %26 = arith.subf %25, %23 : vector<16x336xf32>
    %27 = arith.mulf %26, %26 : vector<16x336xf32>
    %cst_22 = arith.constant -1792.82153 : f32
    %28 = vector.broadcast %cst_22 : f32 to vector<16x336xf32>
    %29 = arith.mulf %28, %27 : vector<16x336xf32>
    %30 = math.exp %29 : vector<16x336xf32>
    %cst_23 = arith.constant 23.8887596 : f32
    %31 = vector.broadcast %cst_23 : f32 to vector<16x336xf32>
    %32 = arith.mulf %31, %30 : vector<16x336xf32>
    %c0_24 = arith.constant 0 : index
    %c0_25 = arith.constant 0 : index
    %33 = vector.load %arg9[%c0_24, %c0_25] : memref<2x16xf32, #tpu.memory_space<vmem>>, vector<2x16xf32>
    %cst_26 = arith.constant dense<0.000000e+00> : vector<2x336xf32>
    %34 = tpu.matmul %33, %32, %cst_26 {dimension_numbers = #tpu.dot_dimension_numbers<[1], [0], [0], [1], [0, 0, 1, 1], [], []>} : vector<2x16xf32>, vector<16x336xf32>, vector<2x336xf32> -> vector<2x336xf32>
    %c0_27 = arith.constant 0 : index
    %c0_28 = arith.constant 0 : index
    %35 = vector.load %arg7[%c0_27, %c0_28] : memref<336x16xf32, #tpu.memory_space<vmem>>, vector<336x16xf32>
    %cst_29 = arith.constant dense<0.000000e+00> : vector<2x16xf32>
    %36 = tpu.matmul %34, %35, %cst_29 {dimension_numbers = #tpu.dot_dimension_numbers<[1], [0], [0], [1], [0, 0, 1, 1], [], []>} : vector<2x336xf32>, vector<336x16xf32>, vector<2x16xf32> -> vector<2x16xf32>
    %c0_30 = arith.constant 0 : index
    %c0_31 = arith.constant 0 : index
    %37 = vector.load %arg6[%c0_30, %c0_31] : memref<16x336xf32, #tpu.memory_space<vmem>>, vector<16x336xf32>
    %cst_32 = arith.constant dense<0.000000e+00> : vector<2x336xf32>
    %38 = tpu.matmul %36, %37, %cst_32 {dimension_numbers = #tpu.dot_dimension_numbers<[1], [0], [0], [1], [0, 0, 1, 1], [], []>} : vector<2x16xf32>, vector<16x336xf32>, vector<2x336xf32> -> vector<2x336xf32>
    %39 = arith.divf %34, %38 : vector<2x336xf32>
    %c0_33 = arith.constant 0 : index
    %c0_34 = arith.constant 0 : index
    %40 = vector.load %arg10[%c0_33, %c0_34] : memref<336x32xf32, #tpu.memory_space<vmem>>, vector<336x32xf32>
    %cst_35 = arith.constant dense<0.000000e+00> : vector<2x32xf32>
    %41 = tpu.matmul %39, %40, %cst_35 {dimension_numbers = #tpu.dot_dimension_numbers<[1], [0], [0], [1], [0, 0, 1, 1], [], []>} : vector<2x336xf32>, vector<336x32xf32>, vector<2x32xf32> -> vector<2x32xf32>
    %c0_36 = arith.constant 0 : index
    %c0_37 = arith.constant 0 : index
    %42 = vector.load %arg11[%c0_36, %c0_37] : memref<1x32xf32, #tpu.memory_space<vmem>>, vector<1x32xf32>
    %43 = vector.broadcast %42 : vector<1x32xf32> to vector<2x32xf32>
    %44 = arith.addf %41, %43 : vector<2x32xf32>
    %cst_38 = arith.constant 0.000000e+00 : f32
    %45 = vector.broadcast %cst_38 : f32 to vector<2x32xf32>
    %46 = arith.maximumf %44, %45 : vector<2x32xf32>
    %c0_39 = arith.constant 0 : index
    %c0_40 = arith.constant 0 : index
    %47 = vector.load %arg12[%c0_39, %c0_40] : memref<1x32xf32, #tpu.memory_space<vmem>>, vector<1x32xf32>
    %48 = vector.broadcast %47 : vector<1x32xf32> to vector<2x32xf32>
    %49 = arith.mulf %46, %48 : vector<2x32xf32>
    %cst_41 = arith.constant dense<0.000000e+00> : vector<2xf32>
    %50 = vector.multi_reduction <add>, %49, %cst_41 [1] : vector<2x32xf32> to vector<2xf32>
    %51 = vector.shape_cast %50 : vector<2xf32> to vector<2x1xf32>
    %c0_42 = arith.constant 0 : index
    %c0_43 = arith.constant 0 : index
    %52 = vector.load %arg13[%c0_42, %c0_43] : memref<1x1xf32, #tpu.memory_space<vmem>>, vector<1x1xf32>
    %53 = vector.broadcast %52 : vector<1x1xf32> to vector<2x1xf32>
    %54 = arith.addf %51, %53 : vector<2x1xf32>
    %cst_44 = arith.constant 0.000000e+00 : f32
    %55 = vector.broadcast %cst_44 : f32 to vector<2x1xf32>
    %56 = arith.subf %55, %54 : vector<2x1xf32>
    %57 = math.exp %56 : vector<2x1xf32>
    %cst_45 = arith.constant 1.000000e+00 : f32
    %58 = vector.broadcast %cst_45 : f32 to vector<2x1xf32>
    %59 = arith.addf %58, %57 : vector<2x1xf32>
    %cst_46 = arith.constant 1.000000e+00 : f32
    %60 = vector.broadcast %cst_46 : f32 to vector<2x1xf32>
    %61 = arith.divf %60, %59 : vector<2x1xf32>
    %c0_47 = arith.constant 0 : index
    %c0_48 = arith.constant 0 : index
    %62 = vector.load %arg14[%c0_47, %c0_48] : memref<2x1xf32, #tpu.memory_space<vmem>>, vector<2x1xf32>
    tpu.vector_store %arg14[%c0_47, %c0_48], %61 {strides = array<i32>} : memref<2x1xf32, #tpu.memory_space<vmem>>, vector<2x1xf32>,
    return
  }
}

</mosaic_0001>

<llo_original>
// kernel: mil_model_forward.1
$region0: #{mil_model_forward.1}
  #allocation0 [shape = 'u32[]', space=smem, size = 0x4, offset = 0x4, fixed_abs, tag = 'smem constant byte address 0x4 - core index']
  #allocation1 [shape = 'u32[72,128]{1,0:T(1,128)}', space=vmem, size = 0x9000, scoped, tag = 'internal scratch']
  #allocation2 [shape = 'f32[1,1]{1,0:T(1,128)S(1)}', space=vmem, size = 0x200, scoped, tag = 'scoped memory for mil_model_forward.1']
  %s0 = inlined_call_operand.vmem [shape: f32[4096,27], index: 0, kind: input, shape index: {}]
  %s1 = inlined_call_operand.vmem [shape: f32[16,4096], index: 1, kind: input, shape index: {}]
  %s2 = inlined_call_operand.vmem [shape: f32[27,8], index: 2, kind: input, shape index: {}]
  %s3 = inlined_call_operand.vmem [shape: f32[1,8], index: 3, kind: input, shape index: {}]
  %s4 = inlined_call_operand.vmem [shape: f32[8,16], index: 4, kind: input, shape index: {}]
  %s5 = inlined_call_operand.vmem [shape: f32[1,16], index: 5, kind: input, shape index: {}]
  %s6 = inlined_call_operand.vmem [shape: f32[16,336], index: 6, kind: input, shape index: {}]
  %s7 = inlined_call_operand.vmem [shape: f32[336,16], index: 7, kind: input, shape index: {}]
  %s8 = inlined_call_operand.vmem [shape: f32[1,336], index: 8, kind: input, shape index: {}]
  %s9 = inlined_call_operand.vmem [shape: f32[2,16], index: 9, kind: input, shape index: {}]
  %s10 = inlined_call_operand.vmem [shape: f32[336,32], index: 10, kind: input, shape index: {}]
  %s11 = inlined_call_operand.vmem [shape: f32[1,32], index: 11, kind: input, shape index: {}]
  %s12 = inlined_call_operand.vmem [shape: f32[1,32], index: 12, kind: input, shape index: {}]
  %s13 = inlined_call_operand.<no memory space> [shape: f32[1,1], index: 13, kind: input, shape index: {}]
  %s14 = inlined_call_operand.vmem [shape: f32[2,1], index: 14, kind: output, shape index: {}]
  %s15 = sld [smem:[#allocation0]]
  $region66: #{mil_model_forward.1} parent=0
    _
  %s17 = ssub.s32 1, %s15
  %s18 = scalar_select 0, %s17, %s15
  %v19 = vstv %s13
  %20 = vst [vmem:[#allocation2] sm:$0x1] %v19
  // Predicated region
  $region2: #{mil_model_forward.1} parent=0 // pred_check
    _
  $region3: #{mil_model_forward.1} parent=0 // pred_check_branch
    %22 = sbr.rel (0) target = $region5
  $region4: #{mil_model_forward.1} parent=0 // pred_region
    _
  $region5: #{mil_model_forward.1} parent=0 // pred_fallthru
    _
  // Predicated region
  $region6: #{mil_model_forward.1} parent=0 // pred_check
    _
  $region7: #{mil_model_forward.1} parent=0 // pred_check_branch
    %24 = sbr.rel (0) target = $region9
  $region8: #{mil_model_forward.1} parent=0 // pred_region
    _
  $region9: #{mil_model_forward.1} parent=0 // pred_fallthru
    _
  // Predicated region
  $region10: #{mil_model_forward.1} parent=0 // pred_check
    _
  $region11: #{mil_model_forward.1} parent=0 // pred_check_branch
    %26 = sbr.rel (0) target = $region13
  $region12: #{mil_model_forward.1} parent=0 // pred_region
    _
  $region13: #{mil_model_forward.1} parent=0 // pred_fallthru
    _
  // Predicated region
  $region14: #{mil_model_forward.1} parent=0 // pred_check
    _
  $region15: #{mil_model_forward.1} parent=0 // pred_check_branch
    %28 = sbr.rel (0) target = $region17
  $region16: #{mil_model_forward.1} parent=0 // pred_region
    _
  $region17: #{mil_model_forward.1} parent=0 // pred_fallthru
    _
  // Predicated region
  $region18: #{mil_model_forward.1} parent=0 // pred_check
    _
  $region19: #{mil_model_forward.1} parent=0 // pred_check_branch
    %30 = sbr.rel (0) target = $region21
  $region20: #{mil_model_forward.1} parent=0 // pred_region
    _
  $region21: #{mil_model_forward.1} parent=0 // pred_fallthru
    _
  // Predicated region
  $region22: #{mil_model_forward.1} parent=0 // pred_check
    _
  $region23: #{mil_model_forward.1} parent=0 // pred_check_branch
    %32 = sbr.rel (0) target = $region25
  $region24: #{mil_model_forward.1} parent=0 // pred_region
    _
  $region25: #{mil_model_forward.1} parent=0 // pred_fallthru
    _
  // Predicated region
  $region26: #{mil_model_forward.1} parent=0 // pred_check
    _
  $region27: #{mil_model_forward.1} parent=0 // pred_check_branch
    %34 = sbr.rel (0) target = $region29
  $region28: #{mil_model_forward.1} parent=0 // pred_region
    _
  $region29: #{mil_model_forward.1} parent=0 // pred_fallthru
    _
  // Predicated region
  $region30: #{mil_model_forward.1} parent=0 // pred_check
    _
  $region31: #{mil_model_forward.1} parent=0 // pred_check_branch
    %36 = sbr.rel (0) target = $region33
  $region32: #{mil_model_forward.1} parent=0 // pred_region
    _
  $region33: #{mil_model_forward.1} parent=0 // pred_fallthru
    _
  // Predicated region
  $region34: #{mil_model_forward.1} parent=0 // pred_check
    _
  $region35: #{mil_model_forward.1} parent=0 // pred_check_branch
    %38 = sbr.rel (0) target = $region37
  $region36: #{mil_model_forward.1} parent=0 // pred_region
    _
  $region37: #{mil_model_forward.1} parent=0 // pred_fallthru
    _
  // Predicated region
  $region38: #{mil_model_forward.1} parent=0 // pred_check
    _
  $region39: #{mil_model_forward.1} parent=0 // pred_check_branch
    %40 = sbr.rel (0) target = $region41
  $region40: #{mil_model_forward.1} parent=0 // pred_region
    _
  $region41: #{mil_model_forward.1} parent=0 // pred_fallthru
    _
  // Predicated region
  $region42: #{mil_model_forward.1} parent=0 // pred_check
    _
  $region43: #{mil_model_forward.1} parent=0 // pred_check_branch
    %42 = sbr.rel (0) target = $region45
  $region44: #{mil_model_forward.1} parent=0 // pred_region
    _
  $region45: #{mil_model_forward.1} parent=0 // pred_fallthru
    _
  // Predicated region
  $region46: #{mil_model_forward.1} parent=0 // pred_check
    _
  $region47: #{mil_model_forward.1} parent=0 // pred_check_branch
    %44 = sbr.rel (0) target = $region49
  $region48: #{mil_model_forward.1} parent=0 // pred_region
    _
  $region49: #{mil_model_forward.1} parent=0 // pred_fallthru
    _
  // Predicated region
  $region50: #{mil_model_forward.1} parent=0 // pred_check
    _
  $region51: #{mil_model_forward.1} parent=0 // pred_check_branch
    %46 = sbr.rel (0) target = $region53
  $region52: #{mil_model_forward.1} parent=0 // pred_region
    _
  $region53: #{mil_model_forward.1} parent=0 // pred_fallthru
    _
  // Predicated region
  $region54: #{mil_model_forward.1} parent=0 // pred_check
    _
  $region55: #{mil_model_forward.1} parent=0 // pred_check_branch
    %48 = sbr.rel (0) target = $region57
  $region56: #{mil_model_forward.1} parent=0 // pred_region
    _
  $region57: #{mil_model_forward.1} parent=0 // pred_fallthru
    _
  %v49 = vld [vmem:[%s0] sm:$0xff]
  %v50 = vld [vmem:[%s0 + $0x8] sm:$0xff]
  %v51 = vld [vmem:[%s0 + $0x10] sm:$0xff]
  %v52 = vld [vmem:[%s0 + $0x18] sm:$0xff]
  %v53 = vld [vmem:[%s0 + $0x20] sm:$0xff]
  %v54 = vld [vmem:[%s0 + $0x28] sm:$0xff]
  %v55 = vld [vmem:[%s0 + $0x30] sm:$0xff]
  %v56 = vld [vmem:[%s0 + $0x38] sm:$0xff]
  %v57 = vld [vmem:[%s0 + $0x40] sm:$0xff]
  %v58 = vld [vmem:[%s0 + $0x48] sm:$0xff]
  %v59 = vld [vmem:[%s0 + $0x50] sm:$0xff]
  %v60 = vld [vmem:[%s0 + $0x58] sm:$0xff]
  %v61 = vld [vmem:[%s0 + $0x60] sm:$0xff]
  %v62 = vld [vmem:[%s0 + $0x68] sm:$0xff]
  %v63 = vld [vmem:[%s0 + $0x70] sm:$0xff]
  %v64 = vld [vmem:[%s0 + $0x78] sm:$0xff]
  %v65 = vld [vmem:[%s0 + $0x80] sm:$0xff]
  %v66 = vld [vmem:[%s0 + $0x88] sm:$0xff]
  %v67 = vld [vmem:[%s0 + $0x90] sm:$0xff]
  %v68 = vld [vmem:[%s0 + $0x98] sm:$0xff]
  %v69 = vld [vmem:[%s0 + $0xa0] sm:$0xff]
  %v70 = vld [vmem:[%s0 + $0xa8] sm:$0xff]
  %v71 = vld [vmem:[%s0 + $0xb0] sm:$0xff]
  %v72 = vld [vmem:[%s0 + $0xb8] sm:$0xff]
  %v73 = vld [vmem:[%s0 + $0xc0] sm:$0xff]
  %v74 = vld [vmem:[%s0 + $0xc8] sm:$0xff]
  %v75 = vld [vmem:[%s0 + $0xd0] sm:$0xff]
  %v76 = vld [vmem:[%s0 + $0xd8] sm:$0xff]
  %v77 = vld [vmem:[%s0 + $0xe0] sm:$0xff]
  %v78 = vld [vmem:[%s0 + $0xe8] sm:$0xff]
  %v79 = vld [vmem:[%s0 + $0xf0] sm:$0xff]
  %v80 = vld [vmem:[%s0 + $0xf8] sm:$0xff]
  %v81 = vld [vmem:[%s0 + $0x100] sm:$0xff]
  %v82 = vld [vmem:[%s0 + $0x108] sm:$0xff]
  %v83 = vld [vmem:[%s0 + $0x110] sm:$0xff]
  %v84 = vld [vmem:[%s0 + $0x118] sm:$0xff]
  %v85 = vld [vmem:[%s0 + $0x120] sm:$0xff]
  %v86 = vld [vmem:[%s0 + $0x128] sm:$0xff]
  %v87 = vld [vmem:[%s0 + $0x130] sm:$0xff]
  %v88 = vld [vmem:[%s0 + $0x138] sm:$0xff]
  %v89 = vld [vmem:[%s0 + $0x140] sm:$0xff]
  %v90 = vld [vmem:[%s0 + $0x148] sm:$0xff]
  %v91 = vld [vmem:[%s0 + $0x150] sm:$0xff]
  %v92 = vld [vmem:[%s0 + $0x158] sm:$0xff]
  %v93 = vld [vmem:[%s0 + $0x160] sm:$0xff]
  %v94 = vld [vmem:[%s0 + $0x168] sm:$0xff]
  %v95 = vld [vmem:[%s0 + $0x170] sm:$0xff]
  %v96 = vld [vmem:[%s0 + $0x178] sm:$0xff]
  %v97 = vld [vmem:[%s0 + $0x180] sm:$0xff]
  %v98 = vld [vmem:[%s0 + $0x188] sm:$0xff]
  %v99 = vld [vmem:[%s0 + $0x190] sm:$0xff]
  %v100 = vld [vmem:[%s0 + $0x198] sm:$0xff]
  %v101 = vld [vmem:[%s0 + $0x1a0] sm:$0xff]
  %v102 = vld [vmem:[%s0 + $0x1a8] sm:$0xff]
  %v103 = vld [vmem:[%s0 + $0x1b0] sm:$0xff]
  %v104 = vld [vmem:[%s0 + $0x1b8] sm:$0xff]
  %v105 = vld [vmem:[%s0 + $0x1c0] sm:$0xff]
  %v106 = vld [vmem:[%s0 + $0x1c8] sm:$0xff]
  %v107 = vld [vmem:[%s0 + $0x1d0] sm:$0xff]
  %v108 = vld [vmem:[%s0 + $0x1d8] sm:$0xff]
  %v109 = vld [vmem:[%s0 + $0x1e0] sm:$0xff]
  %v110 = vld [vmem:[%s0 + $0x1e8] sm:$0xff]
  %v111 = vld [vmem:[%s0 + $0x1f0] sm:$0xff]
  %v112 = vld [vmem:[%s0 + $0x1f8] sm:$0xff]
  %v113 = vld [vmem:[%s0 + $0x200] sm:$0xff]
  %v114 = vld [vmem:[%s0 + $0x208] sm:$0xff]
  %v115 = vld [vmem:[%s0 + $0x210] sm:$0xff]
  %v116 = vld [vmem:[%s0 + $0x218] sm:$0xff]
  %v117 = vld [vmem:[%s0 + $0x220] sm:$0xff]
  %v118 = vld [vmem:[%s0 + $0x228] sm:$0xff]
  %v119 = vld [vmem:[%s0 + $0x230] sm:$0xff]
  %v120 = vld [vmem:[%s0 + $0x238] sm:$0xff]
  %v121 = vld [vmem:[%s0 + $0x240] sm:$0xff]
  %v122 = vld [vmem:[%s0 + $0x248] sm:$0xff]
  %v123 = vld [vmem:[%s0 + $0x250] sm:$0xff]
  %v124 = vld [vmem:[%s0 + $0x258] sm:$0xff]
  %v125 = vld [vmem:[%s0 + $0x260] sm:$0xff]
  %v126 = vld [vmem:[%s0 + $0x268] sm:$0xff]
  %v127 = vld [vmem:[%s0 + $0x270] sm:$0xff]
  %v128 = vld [vmem:[%s0 + $0x278] sm:$0xff]
  %v129 = vld [vmem:[%s0 + $0x280] sm:$0xff]
  %v130 = vld [vmem:[%s0 + $0x288] sm:$0xff]
  %v131 = vld [vmem:[%s0 + $0x290] sm:$0xff]
  %v132 = vld [vmem:[%s0 + $0x298] sm:$0xff]
  %v133 = vld [vmem:[%s0 + $0x2a0] sm:$0xff]
  %v134 = vld [vmem:[%s0 + $0x2a8] sm:$0xff]
  %v135 = vld [vmem:[%s0 + $0x2b0] sm:$0xff]
  %v136 = vld [vmem:[%s0 + $0x2b8] sm:$0xff]
  %v137 = vld [vmem:[%s0 + $0x2c0] sm:$0xff]
  %v138 = vld [vmem:[%s0 + $0x2c8] sm:$0xff]
  %v139 = vld [vmem:[%s0 + $0x2d0] sm:$0xff]
  %v140 = vld [vmem:[%s0 + $0x2d8] sm:$0xff]
  %v141 = vld [vmem:[%s0 + $0x2e0] sm:$0xff]
  %v142 = vld [vmem:[%s0 + $0x2e8] sm:$0xff]
  %v143 = vld [vmem:[%s0 + $0x2f0] sm:$0xff]
  %v144 = vld [vmem:[%s0 + $0x2f8] sm:$0xff]
  %v145 = vld [vmem:[%s0 + $0x300] sm:$0xff]
  %v146 = vld [vmem:[%s0 + $0x308] sm:$0xff]
  %v147 = vld [vmem:[%s0 + $0x310] sm:$0xff]
  %v148 = vld [vmem:[%s0 + $0x318] sm:$0xff]
  %v149 = vld [vmem:[%s0 + $0x320] sm:$0xff]
  %v150 = vld [vmem:[%s0 + $0x328] sm:$0xff]
  %v151 = vld [vmem:[%s0 + $0x330] sm:$0xff]
  %v152 = vld [vmem:[%s0 + $0x338] sm:$0xff]
  %v153 = vld [vmem:[%s0 + $0x340] sm:$0xff]
  %v154 = vld [vmem:[%s0 + $0x348] sm:$0xff]
  %v155 = vld [vmem:[%s0 + $0x350] sm:$0xff]
  %v156 = vld [vmem:[%s0 + $0x358] sm:$0xff]
  %v157 = vld [vmem:[%s0 + $0x360] sm:$0xff]
  %v158 = vld [vmem:[%s0 + $0x368] sm:$0xff]
  %v159 = vld [vmem:[%s0 + $0x370] sm:$0xff]
  %v160 = vld [vmem:[%s0 + $0x378] sm:$0xff]
  %v161 = vld [vmem:[%s0 + $0x380] sm:$0xff]
  %v162 = vld [vmem:[%s0 + $0x388] sm:$0xff]
  %v163 = vld [vmem:[%s0 + $0x390] sm:$0xff]
  %v164 = vld [vmem:[%s0 + $0x398] sm:$0xff]
  %v165 = vld [vmem:[%s0 + $0x3a0] sm:$0xff]
  %v166 = vld [vmem:[%s0 + $0x3a8] sm:$0xff]
  %v167 = vld [vmem:[%s0 + $0x3b0] sm:$0xff]
  %v168 = vld [vmem:[%s0 + $0x3b8] sm:$0xff]
  %v169 = vld [vmem:[%s0 + $0x3c0] sm:$0xff]
  %v170 = vld [vmem:[%s0 + $0x3c8] sm:$0xff]
  %v171 = vld [vmem:[%s0 + $0x3d0] sm:$0xff]
  %v172 = vld [vmem:[%s0 + $0x3d8] sm:$0xff]
  %v173 = vld [vmem:[%s0 + $0x3e0] sm:$0xff]
  %v174 = vld [vmem:[%s0 + $0x3e8] sm:$0xff]
  %v175 = vld [vmem:[%s0 + $0x3f0] sm:$0xff]
  %v176 = vld [vmem:[%s0 + $0x3f8] sm:$0xff]
  %v177 = vld [vmem:[%s0 + $0x400] sm:$0xff]
  %v178 = vld [vmem:[%s0 + $0x408] sm:$0xff]
  %v179 = vld [vmem:[%s0 + $0x410] sm:$0xff]
  %v180 = vld [vmem:[%s0 + $0x418] sm:$0xff]
  %v181 = vld [vmem:[%s0 + $0x420] sm:$0xff]
  %v182 = vld [vmem:[%s0 + $0x428] sm:$0xff]
  %v183 = vld [vmem:[%s0 + $0x430] sm:$0xff]
  %v184 = vld [vmem:[%s0 + $0x438] sm:$0xff]
  %v185 = vld [vmem:[%s0 + $0x440] sm:$0xff]
  %v186 = vld [vmem:[%s0 + $0x448] sm:$0xff]
  %v187 = vld [vmem:[%s0 + $0x450] sm:$0xff]
  %v188 = vld [vmem:[%s0 + $0x458] sm:$0xff]
  %v189 = vld [vmem:[%s0 + $0x460] sm:$0xff]
  %v190 = vld [vmem:[%s0 + $0x468] sm:$0xff]
  %v191 = vld [vmem:[%s0 + $0x470] sm:$0xff]
  %v192 = vld [vmem:[%s0 + $0x478] sm:$0xff]
  %v193 = vld [vmem:[%s0 + $0x480] sm:$0xff]
  %v194 = vld [vmem:[%s0 + $0x488] sm:$0xff]
  %v195 = vld [vmem:[%s0 + $0x490] sm:$0xff]
  %v196 = vld [vmem:[%s0 + $0x498] sm:$0xff]
  %v197 = vld [vmem:[%s0 + $0x4a0] sm:$0xff]
  %v198 = vld [vmem:[%s0 + $0x4a8] sm:$0xff]
  %v199 = vld [vmem:[%s0 + $0x4b0] sm:$0xff]
  %v200 = vld [vmem:[%s0 + $0x4b8] sm:$0xff]
  %v201 = vld [vmem:[%s0 + $0x4c0] sm:$0xff]
  %v202 = vld [vmem:[%s0 + $0x4c8] sm:$0xff]
  %v203 = vld [vmem:[%s0 + $0x4d0] sm:$0xff]
  %v204 = vld [vmem:[%s0 + $0x4d8] sm:$0xff]
  %v205 = vld [vmem:[%s0 + $0x4e0] sm:$0xff]
  %v206 = vld [vmem:[%s0 + $0x4e8] sm:$0xff]
  %v207 = vld [vmem:[%s0 + $0x4f0] sm:$0xff]
  %v208 = vld [vmem:[%s0 + $0x4f8] sm:$0xff]
  %v209 = vld [vmem:[%s0 + $0x500] sm:$0xff]
  %v210 = vld [vmem:[%s0 + $0x508] sm:$0xff]
  %v211 = vld [vmem:[%s0 + $0x510] sm:$0xff]
  %v212 = vld [vmem:[%s0 + $0x518] sm:$0xff]
  %v213 = vld [vmem:[%s0 + $0x520] sm:$0xff]
  %v214 = vld [vmem:[%s0 + $0x528] sm:$0xff]
  %v215 = vld [vmem:[%s0 + $0x530] sm:$0xff]
  %v216 = vld [vmem:[%s0 + $0x538] sm:$0xff]
  %v217 = vld [vmem:[%s0 + $0x540] sm:$0xff]
  %v218 = vld [vmem:[%s0 + $0x548] sm:$0xff]
  %v219 = vld [vmem:[%s0 + $0x550] sm:$0xff]
  %v220 = vld [vmem:[%s0 + $0x558] sm:$0xff]
  %v221 = vld [vmem:[%s0 + $0x560] sm:$0xff]
  %v222 = vld [vmem:[%s0 + $0x568] sm:$0xff]
  %v223 = vld [vmem:[%s0 + $0x570] sm:$0xff]
  %v224 = vld [vmem:[%s0 + $0x578] sm:$0xff]
  %v225 = vld [vmem:[%s0 + $0x580] sm:$0xff]
  %v226 = vld [vmem:[%s0 + $0x588] sm:$0xff]
  %v227 = vld [vmem:[%s0 + $0x590] sm:$0xff]
  %v228 = vld [vmem:[%s0 + $0x598] sm:$0xff]
  %v229 = vld [vmem:[%s0 + $0x5a0] sm:$0xff]
  %v230 = vld [vmem:[%s0 + $0x5a8] sm:$0xff]
  %v231 = vld [vmem:[%s0 + $0x5b0] sm:$0xff]
  %v232 = vld [vmem:[%s0 + $0x5b8] sm:$0xff]
  %v233 = vld [vmem:[%s0 + $0x5c0] sm:$0xff]
  %v234 = vld [vmem:[%s0 + $0x5c8] sm:$0xff]
  %v235 = vld [vmem:[%s0 + $0x5d0] sm:$0xff]
  %v236 = vld [vmem:[%s0 + $0x5d8] sm:$0xff]
  %v237 = vld [vmem:[%s0 + $0x5e0] sm:$0xff]
  %v238 = vld [vmem:[%s0 + $0x5e8] sm:$0xff]
  %v239 = vld [vmem:[%s0 + $0x5f0] sm:$0xff]
  %v240 = vld [vmem:[%s0 + $0x5f8] sm:$0xff]
  %v241 = vld [vmem:[%s0 + $0x600] sm:$0xff]
  %v242 = vld [vmem:[%s0 + $0x608] sm:$0xff]
  %v243 = vld [vmem:[%s0 + $0x610] sm:$0xff]
  %v244 = vld [vmem:[%s0 + $0x618] sm:$0xff]
  %v245 = vld [vmem:[%s0 + $0x620] sm:$0xff]
  %v246 = vld [vmem:[%s0 + $0x628] sm:$0xff]
  %v247 = vld [vmem:[%s0 + $0x630] sm:$0xff]
  %v248 = vld [vmem:[%s0 + $0x638] sm:$0xff]
  %v249 = vld [vmem:[%s0 + $0x640] sm:$0xff]
  %v250 = vld [vmem:[%s0 + $0x648] sm:$0xff]
  %v251 = vld [vmem:[%s0 + $0x650] sm:$0xff]
  %v252 = vld [vmem:[%s0 + $0x658] sm:$0xff]
  %v253 = vld [vmem:[%s0 + $0x660] sm:$0xff]
  %v254 = vld [vmem:[%s0 + $0x668] sm:$0xff]
  %v255 = vld [vmem:[%s0 + $0x670] sm:$0xff]
  %v256 = vld [vmem:[%s0 + $0x678] sm:$0xff]
  %v257 = vld [vmem:[%s0 + $0x680] sm:$0xff]
  %v258 = vld [vmem:[%s0 + $0x688] sm:$0xff]
  %v259 = vld [vmem:[%s0 + $0x690] sm:$0xff]
  %v260 = vld [vmem:[%s0 + $0x698] sm:$0xff]
  %v261 = vld [vmem:[%s0 + $0x6a0] sm:$0xff]
  %v262 = vld [vmem:[%s0 + $0x6a8] sm:$0xff]
  %v263 = vld [vmem:[%s0 + $0x6b0] sm:$0xff]
  %v264 = vld [vmem:[%s0 + $0x6b8] sm:$0xff]
  %v265 = vld [vmem:[%s0 + $0x6c0] sm:$0xff]
  %v266 = vld [vmem:[%s0 + $0x6c8] sm:$0xff]
  %v267 = vld [vmem:[%s0 + $0x6d0] sm:$0xff]
  %v268 = vld [vmem:[%s0 + $0x6d8] sm:$0xff]
  %v269 = vld [vmem:[%s0 + $0x6e0] sm:$0xff]
  %v270 = vld [vmem:[%s0 + $0x6e8] sm:$0xff]
  %v271 = vld [vmem:[%s0 + $0x6f0] sm:$0xff]
  %v272 = vld [vmem:[%s0 + $0x6f8] sm:$0xff]
  %v273 = vld [vmem:[%s0 + $0x700] sm:$0xff]
  %v274 = vld [vmem:[%s0 + $0x708] sm:$0xff]
  %v275 = vld [vmem:[%s0 + $0x710] sm:$0xff]
  %v276 = vld [vmem:[%s0 + $0x718] sm:$0xff]
  %v277 = vld [vmem:[%s0 + $0x720] sm:$0xff]
  %v278 = vld [vmem:[%s0 + $0x728] sm:$0xff]
  %v279 = vld [vmem:[%s0 + $0x730] sm:$0xff]
  %v280 = vld [vmem:[%s0 + $0x738] sm:$0xff]
  %v281 = vld [vmem:[%s0 + $0x740] sm:$0xff]
  %v282 = vld [vmem:[%s0 + $0x748] sm:$0xff]
  %v283 = vld [vmem:[%s0 + $0x750] sm:$0xff]
  %v284 = vld [vmem:[%s0 + $0x758] sm:$0xff]
  %v285 = vld [vmem:[%s0 + $0x760] sm:$0xff]
  %v286 = vld [vmem:[%s0 + $0x768] sm:$0xff]
  %v287 = vld [vmem:[%s0 + $0x770] sm:$0xff]
  %v288 = vld [vmem:[%s0 + $0x778] sm:$0xff]
  %v289 = vld [vmem:[%s0 + $0x780] sm:$0xff]
  %v290 = vld [vmem:[%s0 + $0x788] sm:$0xff]
  %v291 = vld [vmem:[%s0 + $0x790] sm:$0xff]
  %v292 = vld [vmem:[%s0 + $0x798] sm:$0xff]
  %v293 = vld [vmem:[%s0 + $0x7a0] sm:$0xff]
  %v294 = vld [vmem:[%s0 + $0x7a8] sm:$0xff]
  %v295 = vld [vmem:[%s0 + $0x7b0] sm:$0xff]
  %v296 = vld [vmem:[%s0 + $0x7b8] sm:$0xff]
  %v297 = vld [vmem:[%s0 + $0x7c0] sm:$0xff]
  %v298 = vld [vmem:[%s0 + $0x7c8] sm:$0xff]
  %v299 = vld [vmem:[%s0 + $0x7d0] sm:$0xff]
  %v300 = vld [vmem:[%s0 + $0x7d8] sm:$0xff]
  %v301 = vld [vmem:[%s0 + $0x7e0] sm:$0xff]
  %v302 = vld [vmem:[%s0 + $0x7e8] sm:$0xff]
  %v303 = vld [vmem:[%s0 + $0x7f0] sm:$0xff]
  %v304 = vld [vmem:[%s0 + $0x7f8] sm:$0xff]
  %v305 = vld [vmem:[%s0 + $0x800] sm:$0xff]
  %v306 = vld [vmem:[%s0 + $0x808] sm:$0xff]
  %v307 = vld [vmem:[%s0 + $0x810] sm:$0xff]
  %v308 = vld [vmem:[%s0 + $0x818] sm:$0xff]
  %v309 = vld [vmem:[%s0 + $0x820] sm:$0xff]
  %v310 = vld [vmem:[%s0 + $0x828] sm:$0xff]
  %v311 = vld [vmem:[%s0 + $0x830] sm:$0xff]
  %v312 = vld [vmem:[%s0 + $0x838] sm:$0xff]
  %v313 = vld [vmem:[%s0 + $0x840] sm:$0xff]
  %v314 = vld [vmem:[%s0 + $0x848] sm:$0xff]
  %v315 = vld [vmem:[%s0 + $0x850] sm:$0xff]
  %v316 = vld [vmem:[%s0 + $0x858] sm:$0xff]
  %v317 = vld [vmem:[%s0 + $0x860] sm:$0xff]
  %v318 = vld [vmem:[%s0 + $0x868] sm:$0xff]
  %v319 = vld [vmem:[%s0 + $0x870] sm:$0xff]
  %v320 = vld [vmem:[%s0 + $0x878] sm:$0xff]
  %v321 = vld [vmem:[%s0 + $0x880] sm:$0xff]
  %v322 = vld [vmem:[%s0 + $0x888] sm:$0xff]
  %v323 = vld [vmem:[%s0 + $0x890] sm:$0xff]
  %v324 = vld [vmem:[%s0 + $0x898] sm:$0xff]
  %v325 = vld [vmem:[%s0 + $0x8a0] sm:$0xff]
  %v326 = vld [vmem:[%s0 + $0x8a8] sm:$0xff]
  %v327 = vld [vmem:[%s0 + $0x8b0] sm:$0xff]
  %v328 = vld [vmem:[%s0 + $0x8b8] sm:$0xff]
  %v329 = vld [vmem:[%s0 + $0x8c0] sm:$0xff]
  %v330 = vld [vmem:[%s0 + $0x8c8] sm:$0xff]
  %v331 = vld [vmem:[%s0 + $0x8d0] sm:$0xff]
  %v332 = vld [vmem:[%s0 + $0x8d8] sm:$0xff]
  %v333 = vld [vmem:[%s0 + $0x8e0] sm:$0xff]
  %v334 = vld [vmem:[%s0 + $0x8e8] sm:$0xff]
  %v335 = vld [vmem:[%s0 + $0x8f0] sm:$0xff]
  %v336 = vld [vmem:[%s0 + $0x8f8] sm:$0xff]
  %v337 = vld [vmem:[%s0 + $0x900] sm:$0xff]
  %v338 = vld [vmem:[%s0 + $0x908] sm:$0xff]
  %v339 = vld [vmem:[%s0 + $0x910] sm:$0xff]
  %v340 = vld [vmem:[%s0 + $0x918] sm:$0xff]
  %v341 = vld [vmem:[%s0 + $0x920] sm:$0xff]
  %v342 = vld [vmem:[%s0 + $0x928] sm:$0xff]
  %v343 = vld [vmem:[%s0 + $0x930] sm:$0xff]
  %v344 = vld [vmem:[%s0 + $0x938] sm:$0xff]
  %v345 = vld [vmem:[%s0 + $0x940] sm:$0xff]
  %v346 = vld [vmem:[%s0 + $0x948] sm:$0xff]
  %v347 = vld [vmem:[%s0 + $0x950] sm:$0xff]
  %v348 = vld [vmem:[%s0 + $0x958] sm:$0xff]
  %v349 = vld [vmem:[%s0 + $0x960] sm:$0xff]
  %v350 = vld [vmem:[%s0 + $0x968] sm:$0xff]
  %v351 = vld [vmem:[%s0 + $0x970] sm:$0xff]
  %v352 = vld [vmem:[%s0 + $0x978] sm:$0xff]
  %v353 = vld [vmem:[%s0 + $0x980] sm:$0xff]
  %v354 = vld [vmem:[%s0 + $0x988] sm:$0xff]
  %v355 = vld [vmem:[%s0 + $0x990] sm:$0xff]
  %v356 = vld [vmem:[%s0 + $0x998] sm:$0xff]
  %v357 = vld [vmem:[%s0 + $0x9a0] sm:$0xff]
  %v358 = vld [vmem:[%s0 + $0x9a8] sm:$0xff]
  %v359 = vld [vmem:[%s0 + $0x9b0] sm:$0xff]
  %v360 = vld [vmem:[%s0 + $0x9b8] sm:$0xff]
  %v361 = vld [vmem:[%s0 + $0x9c0] sm:$0xff]
  %v362 = vld [vmem:[%s0 + $0x9c8] sm:$0xff]
  %v363 = vld [vmem:[%s0 + $0x9d0] sm:$0xff]
  %v364 = vld [vmem:[%s0 + $0x9d8] sm:$0xff]
  %v365 = vld [vmem:[%s0 + $0x9e0] sm:$0xff]
  %v366 = vld [vmem:[%s0 + $0x9e8] sm:$0xff]
  %v367 = vld [vmem:[%s0 + $0x9f0] sm:$0xff]
  %v368 = vld [vmem:[%s0 + $0x9f8] sm:$0xff]
  %v369 = vld [vmem:[%s0 + $0xa00] sm:$0xff]
  %v370 = vld [vmem:[%s0 + $0xa08] sm:$0xff]
  %v371 = vld [vmem:[%s0 + $0xa10] sm:$0xff]
  %v372 = vld [vmem:[%s0 + $0xa18] sm:$0xff]
  %v373 = vld [vmem:[%s0 + $0xa20] sm:$0xff]
  %v374 = vld [vmem:[%s0 + $0xa28] sm:$0xff]
  %v375 = vld [vmem:[%s0 + $0xa30] sm:$0xff]
  %v376 = vld [vmem:[%s0 + $0xa38] sm:$0xff]
  %v377 = vld [vmem:[%s0 + $0xa40] sm:$0xff]
  %v378 = vld [vmem:[%s0 + $0xa48] sm:$0xff]
  %v379 = vld [vmem:[%s0 + $0xa50] sm:$0xff]
  %v380 = vld [vmem:[%s0 + $0xa58] sm:$0xff]
  %v381 = vld [vmem:[%s0 + $0xa60] sm:$0xff]
  %v382 = vld [vmem:[%s0 + $0xa68] sm:$0xff]
  %v383 = vld [vmem:[%s0 + $0xa70] sm:$0xff]
  %v384 = vld [vmem:[%s0 + $0xa78] sm:$0xff]
  %v385 = vld [vmem:[%s0 + $0xa80] sm:$0xff]
  %v386 = vld [vmem:[%s0 + $0xa88] sm:$0xff]
  %v387 = vld [vmem:[%s0 + $0xa90] sm:$0xff]
  %v388 = vld [vmem:[%s0 + $0xa98] sm:$0xff]
  %v389 = vld [vmem:[%s0 + $0xaa0] sm:$0xff]
  %v390 = vld [vmem:[%s0 + $0xaa8] sm:$0xff]
  %v391 = vld [vmem:[%s0 + $0xab0] sm:$0xff]
  %v392 = vld [vmem:[%s0 + $0xab8] sm:$0xff]
  %v393 = vld [vmem:[%s0 + $0xac0] sm:$0xff]
  %v394 = vld [vmem:[%s0 + $0xac8] sm:$0xff]
  %v395 = vld [vmem:[%s0 + $0xad0] sm:$0xff]
  %v396 = vld [vmem:[%s0 + $0xad8] sm:$0xff]
  %v397 = vld [vmem:[%s0 + $0xae0] sm:$0xff]
  %v398 = vld [vmem:[%s0 + $0xae8] sm:$0xff]
  %v399 = vld [vmem:[%s0 + $0xaf0] sm:$0xff]
  %v400 = vld [vmem:[%s0 + $0xaf8] sm:$0xff]
  %v401 = vld [vmem:[%s0 + $0xb00] sm:$0xff]
  %v402 = vld [vmem:[%s0 + $0xb08] sm:$0xff]
  %v403 = vld [vmem:[%s0 + $0xb10] sm:$0xff]
  %v404 = vld [vmem:[%s0 + $0xb18] sm:$0xff]
  %v405 = vld [vmem:[%s0 + $0xb20] sm:$0xff]
  %v406 = vld [vmem:[%s0 + $0xb28] sm:$0xff]
  %v407 = vld [vmem:[%s0 + $0xb30] sm:$0xff]
  %v408 = vld [vmem:[%s0 + $0xb38] sm:$0xff]
  %v409 = vld [vmem:[%s0 + $0xb40] sm:$0xff]
  %v410 = vld [vmem:[%s0 + $0xb48] sm:$0xff]
  %v411 = vld [vmem:[%s0 + $0xb50] sm:$0xff]
  %v412 = vld [vmem:[%s0 + $0xb58] sm:$0xff]
  %v413 = vld [vmem:[%s0 + $0xb60] sm:$0xff]
  %v414 = vld [vmem:[%s0 + $0xb68] sm:$0xff]
  %v415 = vld [vmem:[%s0 + $0xb70] sm:$0xff]
  %v416 = vld [vmem:[%s0 + $0xb78] sm:$0xff]
  %v417 = vld [vmem:[%s0 + $0xb80] sm:$0xff]
  %v418 = vld [vmem:[%s0 + $0xb88] sm:$0xff]
  %v419 = vld [vmem:[%s0 + $0xb90] sm:$0xff]
  %v420 = vld [vmem:[%s0 + $0xb98] sm:$0xff]
  %v421 = vld [vmem:[%s0 + $0xba0] sm:$0xff]
  %v422 = vld [vmem:[%s0 + $0xba8] sm:$0xff]
  %v423 = vld [vmem:[%s0 + $0xbb0] sm:$0xff]
  %v424 = vld [vmem:[%s0 + $0xbb8] sm:$0xff]
  %v425 = vld [vmem:[%s0 + $0xbc0] sm:$0xff]
  %v426 = vld [vmem:[%s0 + $0xbc8] sm:$0xff]
  %v427 = vld [vmem:[%s0 + $0xbd0] sm:$0xff]
  %v428 = vld [vmem:[%s0 + $0xbd8] sm:$0xff]
  %v429 = vld [vmem:[%s0 + $0xbe0] sm:$0xff]
  %v430 = vld [vmem:[%s0 + $0xbe8] sm:$0xff]
  %v431 = vld [vmem:[%s0 + $0xbf0] sm:$0xff]
  %v432 = vld [vmem:[%s0 + $0xbf8] sm:$0xff]
  %v433 = vld [vmem:[%s0 + $0xc00] sm:$0xff]
  %v434 = vld [vmem:[%s0 + $0xc08] sm:$0xff]
  %v435 = vld [vmem:[%s0 + $0xc10] sm:$0xff]
  %v436 = vld [vmem:[%s0 + $0xc18] sm:$0xff]
  %v437 = vld [vmem:[%s0 + $0xc20] sm:$0xff]
  %v438 = vld [vmem:[%s0 + $0xc28] sm:$0xff]
  %v439 = vld [vmem:[%s0 + $0xc30] sm:$0xff]
  %v440 = vld [vmem:[%s0 + $0xc38] sm:$0xff]
  %v441 = vld [vmem:[%s0 + $0xc40] sm:$0xff]
  %v442 = vld [vmem:[%s0 + $0xc48] sm:$0xff]
  %v443 = vld [vmem:[%s0 + $0xc50] sm:$0xff]
  %v444 = vld [vmem:[%s0 + $0xc58] sm:$0xff]
  %v445 = vld [vmem:[%s0 + $0xc60] sm:$0xff]
  %v446 = vld [vmem:[%s0 + $0xc68] sm:$0xff]
  %v447 = vld [vmem:[%s0 + $0xc70] sm:$0xff]
  %v448 = vld [vmem:[%s0 + $0xc78] sm:$0xff]
  %v449 = vld [vmem:[%s0 + $0xc80] sm:$0xff]
  %v450 = vld [vmem:[%s0 + $0xc88] sm:$0xff]
  %v451 = vld [vmem:[%s0 + $0xc90] sm:$0xff]
  %v452 = vld [vmem:[%s0 + $0xc98] sm:$0xff]
  %v453 = vld [vmem:[%s0 + $0xca0] sm:$0xff]
  %v454 = vld [vmem:[%s0 + $0xca8] sm:$0xff]
  %v455 = vld [vmem:[%s0 + $0xcb0] sm:$0xff]
  %v456 = vld [vmem:[%s0 + $0xcb8] sm:$0xff]
  %v457 = vld [vmem:[%s0 + $0xcc0] sm:$0xff]
  %v458 = vld [vmem:[%s0 + $0xcc8] sm:$0xff]
  %v459 = vld [vmem:[%s0 + $0xcd0] sm:$0xff]
  %v460 = vld [vmem:[%s0 + $0xcd8] sm:$0xff]
  %v461 = vld [vmem:[%s0 + $0xce0] sm:$0xff]
  %v462 = vld [vmem:[%s0 + $0xce8] sm:$0xff]
  %v463 = vld [vmem:[%s0 + $0xcf0] sm:$0xff]
  %v464 = vld [vmem:[%s0 + $0xcf8] sm:$0xff]
  %v465 = vld [vmem:[%s0 + $0xd00] sm:$0xff]
  %v466 = vld [vmem:[%s0 + $0xd08] sm:$0xff]
  %v467 = vld [vmem:[%s0 + $0xd10] sm:$0xff]
  %v468 = vld [vmem:[%s0 + $0xd18] sm:$0xff]
  %v469 = vld [vmem:[%s0 + $0xd20] sm:$0xff]
  %v470 = vld [vmem:[%s0 + $0xd28] sm:$0xff]
  %v471 = vld [vmem:[%s0 + $0xd30] sm:$0xff]
  %v472 = vld [vmem:[%s0 + $0xd38] sm:$0xff]
  %v473 = vld [vmem:[%s0 + $0xd40] sm:$0xff]
  %v474 = vld [vmem:[%s0 + $0xd48] sm:$0xff]
  %v475 = vld [vmem:[%s0 + $0xd50] sm:$0xff]
  %v476 = vld [vmem:[%s0 + $0xd58] sm:$0xff]
  %v477 = vld [vmem:[%s0 + $0xd60] sm:$0xff]
  %v478 = vld [vmem:[%s0 + $0xd68] sm:$0xff]
  %v479 = vld [vmem:[%s0 + $0xd70] sm:$0xff]
  %v480 = vld [vmem:[%s0 + $0xd78] sm:$0xff]
  %v481 = vld [vmem:[%s0 + $0xd80] sm:$0xff]
  %v482 = vld [vmem:[%s0 + $0xd88] sm:$0xff]
  %v483 = vld [vmem:[%s0 + $0xd90] sm:$0xff]
  %v484 = vld [vmem:[%s0 + $0xd98] sm:$0xff]
  %v485 = vld [vmem:[%s0 + $0xda0] sm:$0xff]
  %v486 = vld [vmem:[%s0 + $0xda8] sm:$0xff]
  %v487 = vld [vmem:[%s0 + $0xdb0] sm:$0xff]
  %v488 = vld [vmem:[%s0 + $0xdb8] sm:$0xff]
  %v489 = vld [vmem:[%s0 + $0xdc0] sm:$0xff]
  %v490 = vld [vmem:[%s0 + $0xdc8] sm:$0xff]
  %v491 = vld [vmem:[%s0 + $0xdd0] sm:$0xff]
  %v492 = vld [vmem:[%s0 + $0xdd8] sm:$0xff]
  %v493 = vld [vmem:[%s0 + $0xde0] sm:$0xff]
  %v494 = vld [vmem:[%s0 + $0xde8] sm:$0xff]
  %v495 = vld [vmem:[%s0 + $0xdf0] sm:$0xff]
  %v496 = vld [vmem:[%s0 + $0xdf8] sm:$0xff]
  %v497 = vld [vmem:[%s0 + $0xe00] sm:$0xff]
  %v498 = vld [vmem:[%s0 + $0xe08] sm:$0xff]
  %v499 = vld [vmem:[%s0 + $0xe10] sm:$0xff]
  %v500 = vld [vmem:[%s0 + $0xe18] sm:$0xff]
  %v501 = vld [vmem:[%s0 + $0xe20] sm:$0xff]
  %v502 = vld [vmem:[%s0 + $0xe28] sm:$0xff]
  %v503 = vld [vmem:[%s0 + $0xe30] sm:$0xff]
  %v504 = vld [vmem:[%s0 + $0xe38] sm:$0xff]
  %v505 = vld [vmem:[%s0 + $0xe40] sm:$0xff]
  %v506 = vld [vmem:[%s0 + $0xe48] sm:$0xff]
  %v507 = vld [vmem:[%s0 + $0xe50] sm:$0xff]
  %v508 = vld [vmem:[%s0 + $0xe58] sm:$0xff]
  %v509 = vld [vmem:[%s0 + $0xe60] sm:$0xff]
  %v510 = vld [vmem:[%s0 + $0xe68] sm:$0xff]
  %v511 = vld [vmem:[%s0 + $0xe70] sm:$0xff]
  %v512 = vld [vmem:[%s0 + $0xe78] sm:$0xff]
  %v513 = vld [vmem:[%s0 + $0xe80] sm:$0xff]
  %v514 = vld [vmem:[%s0 + $0xe88] sm:$0xff]
  %v515 = vld [vmem:[%s0 + $0xe90] sm:$0xff]
  %v516 = vld [vmem:[%s0 + $0xe98] sm:$0xff]
  %v517 = vld [vmem:[%s0 + $0xea0] sm:$0xff]
  %v518 = vld [vmem:[%s0 + $0xea8] sm:$0xff]
  %v519 = vld [vmem:[%s0 + $0xeb0] sm:$0xff]
  %v520 = vld [vmem:[%s0 + $0xeb8] sm:$0xff]
  %v521 = vld [vmem:[%s0 + $0xec0] sm:$0xff]
  %v522 = vld [vmem:[%s0 + $0xec8] sm:$0xff]
  %v523 = vld [vmem:[%s0 + $0xed0] sm:$0xff]
  %v524 = vld [vmem:[%s0 + $0xed8] sm:$0xff]
  %v525 = vld [vmem:[%s0 + $0xee0] sm:$0xff]
  %v526 = vld [vmem:[%s0 + $0xee8] sm:$0xff]
  %v527 = vld [vmem:[%s0 + $0xef0] sm:$0xff]
  %v528 = vld [vmem:[%s0 + $0xef8] sm:$0xff]
  %v529 = vld [vmem:[%s0 + $0xf00] sm:$0xff]
  %v530 = vld [vmem:[%s0 + $0xf08] sm:$0xff]
  %v531 = vld [vmem:[%s0 + $0xf10] sm:$0xff]
  %v532 = vld [vmem:[%s0 + $0xf18] sm:$0xff]
  %v533 = vld [vmem:[%s0 + $0xf20] sm:$0xff]
  %v534 = vld [vmem:[%s0 + $0xf28] sm:$0xff]
  %v535 = vld [vmem:[%s0 + $0xf30] sm:$0xff]
  %v536 = vld [vmem:[%s0 + $0xf38] sm:$0xff]
  %v537 = vld [vmem:[%s0 + $0xf40] sm:$0xff]
  %v538 = vld [vmem:[%s0 + $0xf48] sm:$0xff]
  %v539 = vld [vmem:[%s0 + $0xf50] sm:$0xff]
  %v540 = vld [vmem:[%s0 + $0xf58] sm:$0xff]
  %v541 = vld [vmem:[%s0 + $0xf60] sm:$0xff]
  %v542 = vld [vmem:[%s0 + $0xf68] sm:$0xff]
  %v543 = vld [vmem:[%s0 + $0xf70] sm:$0xff]
  %v544 = vld [vmem:[%s0 + $0xf78] sm:$0xff]
  %v545 = vld [vmem:[%s0 + $0xf80] sm:$0xff]
  %v546 = vld [vmem:[%s0 + $0xf88] sm:$0xff]
  %v547 = vld [vmem:[%s0 + $0xf90] sm:$0xff]
  %v548 = vld [vmem:[%s0 + $0xf98] sm:$0xff]
  %v549 = vld [vmem:[%s0 + $0xfa0] sm:$0xff]
  %v550 = vld [vmem:[%s0 + $0xfa8] sm:$0xff]
  %v551 = vld [vmem:[%s0 + $0xfb0] sm:$0xff]
  %v552 = vld [vmem:[%s0 + $0xfb8] sm:$0xff]
  %v553 = vld [vmem:[%s0 + $0xfc0] sm:$0xff]
  %v554 = vld [vmem:[%s0 + $0xfc8] sm:$0xff]
  %v555 = vld [vmem:[%s0 + $0xfd0] sm:$0xff]
  %v556 = vld [vmem:[%s0 + $0xfd8] sm:$0xff]
  %v557 = vld [vmem:[%s0 + $0xfe0] sm:$0xff]
  %v558 = vld [vmem:[%s0 + $0xfe8] sm:$0xff]
  %v559 = vld [vmem:[%s0 + $0xff0] sm:$0xff]
  %v560 = vld [vmem:[%s0 + $0xff8] sm:$0xff]
  %v561 = vld [vmem:[%s2] sm:$0xff]
  %v562 = vld [vmem:[%s2 + $0x8] sm:$0xff]
  %v563 = vld [vmem:[%s2 + $0x10] sm:$0xff]
  %v564 = vld [vmem:[%s2 + $0x18] sm:$0x7]
  %v565 = vld [vmem:[%s3] sm:$0x1]
  %v567 = vperm.slane %v565, 0
  %vm569 = vcmask 220160
  %v571 = vsel %vm569, %v49, 0
  %v574 = vsel %vm569, %v50, 0
  %v577 = vsel %vm569, %v51, 0
  %v580 = vsel %vm569, %v52, 0
  %v583 = vsel %vm569, %v53, 0
  %v586 = vsel %vm569, %v54, 0
  %v589 = vsel %vm569, %v55, 0
  %v592 = vsel %vm569, %v56, 0
  %v595 = vsel %vm569, %v57, 0
  %v598 = vsel %vm569, %v58, 0
  %v601 = vsel %vm569, %v59, 0
  %v604 = vsel %vm569, %v60, 0
  %v607 = vsel %vm569, %v61, 0
  %v610 = vsel %vm569, %v62, 0
  %v613 = vsel %vm569, %v63, 0
  %v616 = vsel %vm569, %v64, 0
  %v619 = vsel %vm569, %v65, 0
  %v622 = vsel %vm569, %v66, 0
  %v625 = vsel %vm569, %v67, 0
  %v628 = vsel %vm569, %v68, 0
  %v631 = vsel %vm569, %v69, 0
  %v634 = vsel %vm569, %v70, 0
  %v637 = vsel %vm569, %v71, 0
  %v640 = vsel %vm569, %v72, 0
  %v643 = vsel %vm569, %v73, 0
  %v646 = vsel %vm569, %v74, 0
  %v649 = vsel %vm569, %v75, 0
  %v652 = vsel %vm569, %v76, 0
  %v655 = vsel %vm569, %v77, 0
  %v658 = vsel %vm569, %v78, 0
  %v661 = vsel %vm569, %v79, 0
  %v664 = vsel %vm569, %v80, 0
  %v667 = vsel %vm569, %v81, 0
  %v670 = vsel %vm569, %v82, 0
  %v673 = vsel %vm569, %v83, 0
  %v676 = vsel %vm569, %v84, 0
  %v679 = vsel %vm569, %v85, 0
  %v682 = vsel %vm569, %v86, 0
  %v685 = vsel %vm569, %v87, 0
  %v688 = vsel %vm569, %v88, 0
  %v691 = vsel %vm569, %v89, 0
  %v694 = vsel %vm569, %v90, 0
  %v697 = vsel %vm569, %v91, 0
  %v700 = vsel %vm569, %v92, 0
  %v703 = vsel %vm569, %v93, 0
  %v706 = vsel %vm569, %v94, 0
  %v709 = vsel %vm569, %v95, 0
  %v712 = vsel %vm569, %v96, 0
  %v715 = vsel %vm569, %v97, 0
  %v718 = vsel %vm569, %v98, 0
  %v721 = vsel %vm569, %v99, 0
  %v724 = vsel %vm569, %v100, 0
  %v727 = vsel %vm569, %v101, 0
  %v730 = vsel %vm569, %v102, 0
  %v733 = vsel %vm569, %v103, 0
  %v736 = vsel %vm569, %v104, 0
  %v739 = vsel %vm569, %v105, 0
  %v742 = vsel %vm569, %v106, 0
  %v745 = vsel %vm569, %v107, 0
  %v748 = vsel %vm569, %v108, 0
  %v751 = vsel %vm569, %v109, 0
  %v754 = vsel %vm569, %v110, 0
  %v757 = vsel %vm569, %v111, 0
  %v760 = vsel %vm569, %v112, 0
  %v763 = vsel %vm569, %v113, 0
  %v766 = vsel %vm569, %v114, 0
  %v769 = vsel %vm569, %v115, 0
  %v772 = vsel %vm569, %v116, 0
  %v775 = vsel %vm569, %v117, 0
  %v778 = vsel %vm569, %v118, 0
  %v781 = vsel %vm569, %v119, 0
  %v784 = vsel %vm569, %v120, 0
  %v787 = vsel %vm569, %v121, 0
  %v790 = vsel %vm569, %v122, 0
  %v793 = vsel %vm569, %v123, 0
  %v796 = vsel %vm569, %v124, 0
  %v799 = vsel %vm569, %v125, 0
  %v802 = vsel %vm569, %v126, 0
  %v805 = vsel %vm569, %v127, 0
  %v808 = vsel %vm569, %v128, 0
  %v811 = vsel %vm569, %v129, 0
  %v814 = vsel %vm569, %v130, 0
  %v817 = vsel %vm569, %v131, 0
  %v820 = vsel %vm569, %v132, 0
  %v823 = vsel %vm569, %v133, 0
  %v826 = vsel %vm569, %v134, 0
  %v829 = vsel %vm569, %v135, 0
  %v832 = vsel %vm569, %v136, 0
  %v835 = vsel %vm569, %v137, 0
  %v838 = vsel %vm569, %v138, 0
  %v841 = vsel %vm569, %v139, 0
  %v844 = vsel %vm569, %v140, 0
  %v847 = vsel %vm569, %v141, 0
  %v850 = vsel %vm569, %v142, 0
  %v853 = vsel %vm569, %v143, 0
  %v856 = vsel %vm569, %v144, 0
  %v859 = vsel %vm569, %v145, 0
  %v862 = vsel %vm569, %v146, 0
  %v865 = vsel %vm569, %v147, 0
  %v868 = vsel %vm569, %v148, 0
  %v871 = vsel %vm569, %v149, 0
  %v874 = vsel %vm569, %v150, 0
  %v877 = vsel %vm569, %v151, 0
  %v880 = vsel %vm569, %v152, 0
  %v883 = vsel %vm569, %v153, 0
  %v886 = vsel %vm569, %v154, 0
  %v889 = vsel %vm569, %v155, 0
  %v892 = vsel %vm569, %v156, 0
  %v895 = vsel %vm569, %v157, 0
  %v898 = vsel %vm569, %v158, 0
  %v901 = vsel %vm569, %v159, 0
  %v904 = vsel %vm569, %v160, 0
  %v907 = vsel %vm569, %v161, 0
  %v910 = vsel %vm569, %v162, 0
  %v913 = vsel %vm569, %v163, 0
  %v916 = vsel %vm569, %v164, 0
  %v919 = vsel %vm569, %v165, 0
  %v922 = vsel %vm569, %v166, 0
  %v925 = vsel %vm569, %v167, 0
  %v928 = vsel %vm569, %v168, 0
  %v931 = vsel %vm569, %v169, 0
  %v934 = vsel %vm569, %v170, 0
  %v937 = vsel %vm569, %v171, 0
  %v940 = vsel %vm569, %v172, 0
  %v943 = vsel %vm569, %v173, 0
  %v946 = vsel %vm569, %v174, 0
  %v949 = vsel %vm569, %v175, 0
  %v952 = vsel %vm569, %v176, 0
  %v955 = vsel %vm569, %v177, 0
  %v958 = vsel %vm569, %v178, 0
  %v961 = vsel %vm569, %v179, 0
  %v964 = vsel %vm569, %v180, 0
  %v967 = vsel %vm569, %v181, 0
  %v970 = vsel %vm569, %v182, 0
  %v973 = vsel %vm569, %v183, 0
  %v976 = vsel %vm569, %v184, 0
  %v979 = vsel %vm569, %v185, 0
  %v982 = vsel %vm569, %v186, 0
  %v985 = vsel %vm569, %v187, 0
  %v988 = vsel %vm569, %v188, 0
  %v991 = vsel %vm569, %v189, 0
  %v994 = vsel %vm569, %v190, 0
  %v997 = vsel %vm569, %v191, 0
  %v1000 = vsel %vm569, %v192, 0
  %v1003 = vsel %vm569, %v193, 0
  %v1006 = vsel %vm569, %v194, 0
  %v1009 = vsel %vm569, %v195, 0
  %v1012 = vsel %vm569, %v196, 0
  %v1015 = vsel %vm569, %v197, 0
  %v1018 = vsel %vm569, %v198, 0
  %v1021 = vsel %vm569, %v199, 0
  %v1024 = vsel %vm569, %v200, 0
  %v1027 = vsel %vm569, %v201, 0
  %v1030 = vsel %vm569, %v202, 0
  %v1033 = vsel %vm569, %v203, 0
  %v1036 = vsel %vm569, %v204, 0
  %v1039 = vsel %vm569, %v205, 0
  %v1042 = vsel %vm569, %v206, 0
  %v1045 = vsel %vm569, %v207, 0
  %v1048 = vsel %vm569, %v208, 0
  %v1051 = vsel %vm569, %v209, 0
  %v1054 = vsel %vm569, %v210, 0
  %v1057 = vsel %vm569, %v211, 0
  %v1060 = vsel %vm569, %v212, 0
  %v1063 = vsel %vm569, %v213, 0
  %v1066 = vsel %vm569, %v214, 0
  %v1069 = vsel %vm569, %v215, 0
  %v1072 = vsel %vm569, %v216, 0
  %v1075 = vsel %vm569, %v217, 0
  %v1078 = vsel %vm569, %v218, 0
  %v1081 = vsel %vm569, %v219, 0
  %v1084 = vsel %vm569, %v220, 0
  %v1087 = vsel %vm569, %v221, 0
  %v1090 = vsel %vm569, %v222, 0
  %v1093 = vsel %vm569, %v223, 0
  %v1096 = vsel %vm569, %v224, 0
  %v1099 = vsel %vm569, %v225, 0
  %v1102 = vsel %vm569, %v226, 0
  %v1105 = vsel %vm569, %v227, 0
  %v1108 = vsel %vm569, %v228, 0
  %v1111 = vsel %vm569, %v229, 0
  %v1114 = vsel %vm569, %v230, 0
  %v1117 = vsel %vm569, %v231, 0
  %v1120 = vsel %vm569, %v232, 0
  %v1123 = vsel %vm569, %v233, 0
  %v1126 = vsel %vm569, %v234, 0
  %v1129 = vsel %vm569, %v235, 0
  %v1132 = vsel %vm569, %v236, 0
  %v1135 = vsel %vm569, %v237, 0
  %v1138 = vsel %vm569, %v238, 0
  %v1141 = vsel %vm569, %v239, 0
  %v1144 = vsel %vm569, %v240, 0
  %v1147 = vsel %vm569, %v241, 0
  %v1150 = vsel %vm569, %v242, 0
  %v1153 = vsel %vm569, %v243, 0
  %v1156 = vsel %vm569, %v244, 0
  %v1159 = vsel %vm569, %v245, 0
  %v1162 = vsel %vm569, %v246, 0
  %v1165 = vsel %vm569, %v247, 0
  %v1168 = vsel %vm569, %v248, 0
  %v1171 = vsel %vm569, %v249, 0
  %v1174 = vsel %vm569, %v250, 0
  %v1177 = vsel %vm569, %v251, 0
  %v1180 = vsel %vm569, %v252, 0
  %v1183 = vsel %vm569, %v253, 0
  %v1186 = vsel %vm569, %v254, 0
  %v1189 = vsel %vm569, %v255, 0
  %v1192 = vsel %vm569, %v256, 0
  %v1195 = vsel %vm569, %v257, 0
  %v1198 = vsel %vm569, %v258, 0
  %v1201 = vsel %vm569, %v259, 0
  %v1204 = vsel %vm569, %v260, 0
  %v1207 = vsel %vm569, %v261, 0
  %v1210 = vsel %vm569, %v262, 0
  %v1213 = vsel %vm569, %v263, 0
  %v1216 = vsel %vm569, %v264, 0
  %v1219 = vsel %vm569, %v265, 0
  %v1222 = vsel %vm569, %v266, 0
  %v1225 = vsel %vm569, %v267, 0
  %v1228 = vsel %vm569, %v268, 0
  %v1231 = vsel %vm569, %v269, 0
  %v1234 = vsel %vm569, %v270, 0
  %v1237 = vsel %vm569, %v271, 0
  %v1240 = vsel %vm569, %v272, 0
  %v1243 = vsel %vm569, %v273, 0
  %v1246 = vsel %vm569, %v274, 0
  %v1249 = vsel %vm569, %v275, 0
  %v1252 = vsel %vm569, %v276, 0
  %v1255 = vsel %vm569, %v277, 0
  %v1258 = vsel %vm569, %v278, 0
  %v1261 = vsel %vm569, %v279, 0
  %v1264 = vsel %vm569, %v280, 0
  %v1267 = vsel %vm569, %v281, 0
  %v1270 = vsel %vm569, %v282, 0
  %v1273 = vsel %vm569, %v283, 0
  %v1276 = vsel %vm569, %v284, 0
  %v1279 = vsel %vm569, %v285, 0
  %v1282 = vsel %vm569, %v286, 0
  %v1285 = vsel %vm569, %v287, 0
  %v1288 = vsel %vm569, %v288, 0
  %v1291 = vsel %vm569, %v289, 0
  %v1294 = vsel %vm569, %v290, 0
  %v1297 = vsel %vm569, %v291, 0
  %v1300 = vsel %vm569, %v292, 0
  %v1303 = vsel %vm569, %v293, 0
  %v1306 = vsel %vm569, %v294, 0
  %v1309 = vsel %vm569, %v295, 0
  %v1312 = vsel %vm569, %v296, 0
  %v1315 = vsel %vm569, %v297, 0
  %v1318 = vsel %vm569, %v298, 0
  %v1321 = vsel %vm569, %v299, 0
  %v1324 = vsel %vm569, %v300, 0
  %v1327 = vsel %vm569, %v301, 0
  %v1330 = vsel %vm569, %v302, 0
  %v1333 = vsel %vm569, %v303, 0
  %v1336 = vsel %vm569, %v304, 0
  %v1339 = vsel %vm569, %v305, 0
  %v1342 = vsel %vm569, %v306, 0
  %v1345 = vsel %vm569, %v307, 0
  %v1348 = vsel %vm569, %v308, 0
  %v1351 = vsel %vm569, %v309, 0
  %v1354 = vsel %vm569, %v310, 0
  %v1357 = vsel %vm569, %v311, 0
  %v1360 = vsel %vm569, %v312, 0
  %v1363 = vsel %vm569, %v313, 0
  %v1366 = vsel %vm569, %v314, 0
  %v1369 = vsel %vm569, %v315, 0
  %v1372 = vsel %vm569, %v316, 0
  %v1375 = vsel %vm569, %v317, 0
  %v1378 = vsel %vm569, %v318, 0
  %v1381 = vsel %vm569, %v319, 0
  %v1384 = vsel %vm569, %v320, 0
  %v1387 = vsel %vm569, %v321, 0
  %v1390 = vsel %vm569, %v322, 0
  %v1393 = vsel %vm569, %v323, 0
  %v1396 = vsel %vm569, %v324, 0
  %v1399 = vsel %vm569, %v325, 0
  %v1402 = vsel %vm569, %v326, 0
  %v1405 = vsel %vm569, %v327, 0
  %v1408 = vsel %vm569, %v328, 0
  %v1411 = vsel %vm569, %v329, 0
  %v1414 = vsel %vm569, %v330, 0
  %v1417 = vsel %vm569, %v331, 0
  %v1420 = vsel %vm569, %v332, 0
  %v1423 = vsel %vm569, %v333, 0
  %v1426 = vsel %vm569, %v334, 0
  %v1429 = vsel %vm569, %v335, 0
  %v1432 = vsel %vm569, %v336, 0
  %v1435 = vsel %vm569, %v337, 0
  %v1438 = vsel %vm569, %v338, 0
  %v1441 = vsel %vm569, %v339, 0
  %v1444 = vsel %vm569, %v340, 0
  %v1447 = vsel %vm569, %v341, 0
  %v1450 = vsel %vm569, %v342, 0
  %v1453 = vsel %vm569, %v343, 0
  %v1456 = vsel %vm569, %v344, 0
  %v1459 = vsel %vm569, %v345, 0
  %v1462 = vsel %vm569, %v346, 0
  %v1465 = vsel %vm569, %v347, 0
  %v1468 = vsel %vm569, %v348, 0
  %v1471 = vsel %vm569, %v349, 0
  %v1474 = vsel %vm569, %v350, 0
  %v1477 = vsel %vm569, %v351, 0
  %v1480 = vsel %vm569, %v352, 0
  %v1483 = vsel %vm569, %v353, 0
  %v1486 = vsel %vm569, %v354, 0
  %v1489 = vsel %vm569, %v355, 0
  %v1492 = vsel %vm569, %v356, 0
  %v1495 = vsel %vm569, %v357, 0
  %v1498 = vsel %vm569, %v358, 0
  %v1501 = vsel %vm569, %v359, 0
  %v1504 = vsel %vm569, %v360, 0
  %v1507 = vsel %vm569, %v361, 0
  %v1510 = vsel %vm569, %v362, 0
  %v1513 = vsel %vm569, %v363, 0
  %v1516 = vsel %vm569, %v364, 0
  %v1519 = vsel %vm569, %v365, 0
  %v1522 = vsel %vm569, %v366, 0
  %v1525 = vsel %vm569, %v367, 0
  %v1528 = vsel %vm569, %v368, 0
  %v1531 = vsel %vm569, %v369, 0
  %v1534 = vsel %vm569, %v370, 0
  %v1537 = vsel %vm569, %v371, 0
  %v1540 = vsel %vm569, %v372, 0
  %v1543 = vsel %vm569, %v373, 0
  %v1546 = vsel %vm569, %v374, 0
  %v1549 = vsel %vm569, %v375, 0
  %v1552 = vsel %vm569, %v376, 0
  %v1555 = vsel %vm569, %v377, 0
  %v1558 = vsel %vm569, %v378, 0
  %v1561 = vsel %vm569, %v379, 0
  %v1564 = vsel %vm569, %v380, 0
  %v1567 = vsel %vm569, %v381, 0
  %v1570 = vsel %vm569, %v382, 0
  %v1573 = vsel %vm569, %v383, 0
  %v1576 = vsel %vm569, %v384, 0
  %v1579 = vsel %vm569, %v385, 0
  %v1582 = vsel %vm569, %v386, 0
  %v1585 = vsel %vm569, %v387, 0
  %v1588 = vsel %vm569, %v388, 0
  %v1591 = vsel %vm569, %v389, 0
  %v1594 = vsel %vm569, %v390, 0
  %v1597 = vsel %vm569, %v391, 0
  %v1600 = vsel %vm569, %v392, 0
  %v1603 = vsel %vm569, %v393, 0
  %v1606 = vsel %vm569, %v394, 0
  %v1609 = vsel %vm569, %v395, 0
  %v1612 = vsel %vm569, %v396, 0
  %v1615 = vsel %vm569, %v397, 0
  %v1618 = vsel %vm569, %v398, 0
  %v1621 = vsel %vm569, %v399, 0
  %v1624 = vsel %vm569, %v400, 0
  %v1627 = vsel %vm569, %v401, 0
  %v1630 = vsel %vm569, %v402, 0
  %v1633 = vsel %vm569, %v403, 0
  %v1636 = vsel %vm569, %v404, 0
  %v1639 = vsel %vm569, %v405, 0
  %v1642 = vsel %vm569, %v406, 0
  %v1645 = vsel %vm569, %v407, 0
  %v1648 = vsel %vm569, %v408, 0
  %v1651 = vsel %vm569, %v409, 0
  %v1654 = vsel %vm569, %v410, 0
  %v1657 = vsel %vm569, %v411, 0
  %v1660 = vsel %vm569, %v412, 0
  %v1663 = vsel %vm569, %v413, 0
  %v1666 = vsel %vm569, %v414, 0
  %v1669 = vsel %vm569, %v415, 0
  %v1672 = vsel %vm569, %v416, 0
  %v1675 = vsel %vm569, %v417, 0
  %v1678 = vsel %vm569, %v418, 0
  %v1681 = vsel %vm569, %v419, 0
  %v1684 = vsel %vm569, %v420, 0
  %v1687 = vsel %vm569, %v421, 0
  %v1690 = vsel %vm569, %v422, 0
  %v1693 = vsel %vm569, %v423, 0
  %v1696 = vsel %vm569, %v424, 0
  %v1699 = vsel %vm569, %v425, 0
  %v1702 = vsel %vm569, %v426, 0
  %v1705 = vsel %vm569, %v427, 0
  %v1708 = vsel %vm569, %v428, 0
  %v1711 = vsel %vm569, %v429, 0
  %v1714 = vsel %vm569, %v430, 0
  %v1717 = vsel %vm569, %v431, 0
  %v1720 = vsel %vm569, %v432, 0
  %v1723 = vsel %vm569, %v433, 0
  %v1726 = vsel %vm569, %v434, 0
  %v1729 = vsel %vm569, %v435, 0
  %v1732 = vsel %vm569, %v436, 0
  %v1735 = vsel %vm569, %v437, 0
  %v1738 = vsel %vm569, %v438, 0
  %v1741 = vsel %vm569, %v439, 0
  %v1744 = vsel %vm569, %v440, 0
  %v1747 = vsel %vm569, %v441, 0
  %v1750 = vsel %vm569, %v442, 0
  %v1753 = vsel %vm569, %v443, 0
  %v1756 = vsel %vm569, %v444, 0
  %v1759 = vsel %vm569, %v445, 0
  %v1762 = vsel %vm569, %v446, 0
  %v1765 = vsel %vm569, %v447, 0
  %v1768 = vsel %vm569, %v448, 0
  %v1771 = vsel %vm569, %v449, 0
  %v1774 = vsel %vm569, %v450, 0
  %v1777 = vsel %vm569, %v451, 0
  %v1780 = vsel %vm569, %v452, 0
  %v1783 = vsel %vm569, %v453, 0
  %v1786 = vsel %vm569, %v454, 0
  %v1789 = vsel %vm569, %v455, 0
  %v1792 = vsel %vm569, %v456, 0
  %v1795 = vsel %vm569, %v457, 0
  %v1798 = vsel %vm569, %v458, 0
  %v1801 = vsel %vm569, %v459, 0
  %v1804 = vsel %vm569, %v460, 0
  %v1807 = vsel %vm569, %v461, 0
  %v1810 = vsel %vm569, %v462, 0
  %v1813 = vsel %vm569, %v463, 0
  %v1816 = vsel %vm569, %v464, 0
  %v1819 = vsel %vm569, %v465, 0
  %v1822 = vsel %vm569, %v466, 0
  %v1825 = vsel %vm569, %v467, 0
  %v1828 = vsel %vm569, %v468, 0
  %v1831 = vsel %vm569, %v469, 0
  %v1834 = vsel %vm569, %v470, 0
  %v1837 = vsel %vm569, %v471, 0
  %v1840 = vsel %vm569, %v472, 0
  %v1843 = vsel %vm569, %v473, 0
  %v1846 = vsel %vm569, %v474, 0
  %v1849 = vsel %vm569, %v475, 0
  %v1852 = vsel %vm569, %v476, 0
  %v1855 = vsel %vm569, %v477, 0
  %v1858 = vsel %vm569, %v478, 0
  %v1861 = vsel %vm569, %v479, 0
  %v1864 = vsel %vm569, %v480, 0
  %v1867 = vsel %vm569, %v481, 0
  %v1870 = vsel %vm569, %v482, 0
  %v1873 = vsel %vm569, %v483, 0
  %v1876 = vsel %vm569, %v484, 0
  %v1879 = vsel %vm569, %v485, 0
  %v1882 = vsel %vm569, %v486, 0
  %v1885 = vsel %vm569, %v487, 0
  %v1888 = vsel %vm569, %v488, 0
  %v1891 = vsel %vm569, %v489, 0
  %v1894 = vsel %vm569, %v490, 0
  %v1897 = vsel %vm569, %v491, 0
  %v1900 = vsel %vm569, %v492, 0
  %v1903 = vsel %vm569, %v493, 0
  %v1906 = vsel %vm569, %v494, 0
  %v1909 = vsel %vm569, %v495, 0
  %v1912 = vsel %vm569, %v496, 0
  %v1915 = vsel %vm569, %v497, 0
  %v1918 = vsel %vm569, %v498, 0
  %v1921 = vsel %vm569, %v499, 0
  %v1924 = vsel %vm569, %v500, 0
  %v1927 = vsel %vm569, %v501, 0
  %v1930 = vsel %vm569, %v502, 0
  %v1933 = vsel %vm569, %v503, 0
  %v1936 = vsel %vm569, %v504, 0
  %v1939 = vsel %vm569, %v505, 0
  %v1942 = vsel %vm569, %v506, 0
  %v1945 = vsel %vm569, %v507, 0
  %v1948 = vsel %vm569, %v508, 0
  %v1951 = vsel %vm569, %v509, 0
  %v1954 = vsel %vm569, %v510, 0
  %v1957 = vsel %vm569, %v511, 0
  %v1960 = vsel %vm569, %v512, 0
  %v1963 = vsel %vm569, %v513, 0
  %v1966 = vsel %vm569, %v514, 0
  %v1969 = vsel %vm569, %v515, 0
  %v1972 = vsel %vm569, %v516, 0
  %v1975 = vsel %vm569, %v517, 0
  %v1978 = vsel %vm569, %v518, 0
  %v1981 = vsel %vm569, %v519, 0
  %v1984 = vsel %vm569, %v520, 0
  %v1987 = vsel %vm569, %v521, 0
  %v1990 = vsel %vm569, %v522, 0
  %v1993 = vsel %vm569, %v523, 0
  %v1996 = vsel %vm569, %v524, 0
  %v1999 = vsel %vm569, %v525, 0
  %v2002 = vsel %vm569, %v526, 0
  %v2005 = vsel %vm569, %v527, 0
  %v2008 = vsel %vm569, %v528, 0
  %v2011 = vsel %vm569, %v529, 0
  %v2014 = vsel %vm569, %v530, 0
  %v2017 = vsel %vm569, %v531, 0
  %v2020 = vsel %vm569, %v532, 0
  %v2023 = vsel %vm569, %v533, 0
  %v2026 = vsel %vm569, %v534, 0
  %v2029 = vsel %vm569, %v535, 0
  %v2032 = vsel %vm569, %v536, 0
  %v2035 = vsel %vm569, %v537, 0
  %v2038 = vsel %vm569, %v538, 0
  %v2041 = vsel %vm569, %v539, 0
  %v2044 = vsel %vm569, %v540, 0
  %v2047 = vsel %vm569, %v541, 0
  %v2050 = vsel %vm569, %v542, 0
  %v2053 = vsel %vm569, %v543, 0
  %v2056 = vsel %vm569, %v544, 0
  %v2059 = vsel %vm569, %v545, 0
  %v2062 = vsel %vm569, %v546, 0
  %v2065 = vsel %vm569, %v547, 0
  %v2068 = vsel %vm569, %v548, 0
  %v2071 = vsel %vm569, %v549, 0
  %v2074 = vsel %vm569, %v550, 0
  %v2077 = vsel %vm569, %v551, 0
  %v2080 = vsel %vm569, %v552, 0
  %v2083 = vsel %vm569, %v553, 0
  %v2086 = vsel %vm569, %v554, 0
  %v2089 = vsel %vm569, %v555, 0
  %v2092 = vsel %vm569, %v556, 0
  %v2095 = vsel %vm569, %v557, 0
  %v2098 = vsel %vm569, %v558, 0
  %v2101 = vsel %vm569, %v559, 0
  %v2104 = vsel %vm569, %v560, 0
  %vm2106 = vcmask 1042432
  %v2108 = vsel %vm2106, %v564, 0
  %2110 = vmatpush.msra.mxu0 0.0
  %2111 = vmatpush.msra.mxu0 0.0
  %2112 = vmatpush.msra.mxu0 0.0
  %2113 = vmatpush.msra.mxu0 0.0
  %2114 = vmatpush.msra.mxu0 0.0
  %2115 = vmatpush.msra.mxu0 0.0
  %2116 = vmatpush.msra.mxu0 0.0
  %2117 = vmatpush.msra.mxu0 0.0
  %2118 = vmatpush.msra.mxu0 0.0
  %2119 = vmatpush.msra.mxu0 0.0
  %2120 = vmatpush.msra.mxu0 0.0
  %2121 = vmatpush.msra.mxu0 0.0
  %2122 = vmatpush.msra.mxu0 %v2108
  %2123 = vmatpush.msra.mxu0 %v563
  %2124 = vmatpush.msra.mxu0 %v562
  %2125 = vmatpush.msra.mxu0 %v561
  %2126 = vmatmul.f32.gmra.mxu0 %v571
  %v2127 = vpop.f32.mrf.mxu0
  %v2128 = vadd.f32 %v567, %v2127
  %2129 = vmatmul.f32.gmra.mxu0 %v574
  %v2130 = vpop.f32.mrf.mxu0
  %v2131 = vadd.f32 %v567, %v2130
  %2132 = vmatmul.f32.gmra.mxu0 %v577
  %v2133 = vpop.f32.mrf.mxu0
  %v2134 = vadd.f32 %v567, %v2133
  %2135 = vmatmul.f32.gmra.mxu0 %v580
  %v2136 = vpop.f32.mrf.mxu0
  %v2137 = vadd.f32 %v567, %v2136
  %2138 = vmatmul.f32.gmra.mxu0 %v583
  %v2139 = vpop.f32.mrf.mxu0
  %v2140 = vadd.f32 %v567, %v2139
  %2141 = vmatmul.f32.gmra.mxu0 %v586
  %v2142 = vpop.f32.mrf.mxu0
  %v2143 = vadd.f32 %v567, %v2142
  %2144 = vmatmul.f32.gmra.mxu0 %v589
  %v2145 = vpop.f32.mrf.mxu0
  %v2146 = vadd.f32 %v567, %v2145
  %2147 = vmatmul.f32.gmra.mxu0 %v592
  %v2148 = vpop.f32.mrf.mxu0
  %v2149 = vadd.f32 %v567, %v2148
  %2150 = vmatmul.f32.gmra.mxu0 %v595
  %v2151 = vpop.f32.mrf.mxu0
  %v2152 = vadd.f32 %v567, %v2151
  %2153 = vmatmul.f32.gmra.mxu0 %v598
  %v2154 = vpop.f32.mrf.mxu0
  %v2155 = vadd.f32 %v567, %v2154
  %2156 = vmatmul.f32.gmra.mxu0 %v601
  %v2157 = vpop.f32.mrf.mxu0
  %v2158 = vadd.f32 %v567, %v2157
  %2159 = vmatmul.f32.gmra.mxu0 %v604
  %v2160 = vpop.f32.mrf.mxu0
  %v2161 = vadd.f32 %v567, %v2160
  %2162 = vmatmul.f32.gmra.mxu0 %v607
  %v2163 = vpop.f32.mrf.mxu0
  %v2164 = vadd.f32 %v567, %v2163
  %2165 = vmatmul.f32.gmra.mxu0 %v610
  %v2166 = vpop.f32.mrf.mxu0
  %v2167 = vadd.f32 %v567, %v2166
  %2168 = vmatmul.f32.gmra.mxu0 %v613
  %v2169 = vpop.f32.mrf.mxu0
  %v2170 = vadd.f32 %v567, %v2169
  %2171 = vmatmul.f32.gmra.mxu0 %v616
  %v2172 = vpop.f32.mrf.mxu0
  %v2173 = vadd.f32 %v567, %v2172
  %2174 = vmatmul.f32.gmra.mxu0 %v619
  %v2175 = vpop.f32.mrf.mxu0
  %v2176 = vadd.f32 %v567, %v2175
  %2177 = vmatmul.f32.gmra.mxu0 %v622
  %v2178 = vpop.f32.mrf.mxu0
  %v2179 = vadd.f32 %v567, %v2178
  %2180 = vmatmul.f32.gmra.mxu0 %v625
  %v2181 = vpop.f32.mrf.mxu0
  %v2182 = vadd.f32 %v567, %v2181
  %2183 = vmatmul.f32.gmra.mxu0 %v628
  %v2184 = vpop.f32.mrf.mxu0
  %v2185 = vadd.f32 %v567, %v2184
  %2186 = vmatmul.f32.gmra.mxu0 %v631
  %v2187 = vpop.f32.mrf.mxu0
  %v2188 = vadd.f32 %v567, %v2187
  %2189 = vmatmul.f32.gmra.mxu0 %v634
  %v2190 = vpop.f32.mrf.mxu0
  %v2191 = vadd.f32 %v567, %v2190
  %2192 = vmatmul.f32.gmra.mxu0 %v637
  %v2193 = vpop.f32.mrf.mxu0
  %v2194 = vadd.f32 %v567, %v2193
  %2195 = vmatmul.f32.gmra.mxu0 %v640
  %v2196 = vpop.f32.mrf.mxu0
  %v2197 = vadd.f32 %v567, %v2196
  %2198 = vmatmul.f32.gmra.mxu0 %v643
  %v2199 = vpop.f32.mrf.mxu0
  %v2200 = vadd.f32 %v567, %v2199
  %2201 = vmatmul.f32.gmra.mxu0 %v646
  %v2202 = vpop.f32.mrf.mxu0
  %v2203 = vadd.f32 %v567, %v2202
  %2204 = vmatmul.f32.gmra.mxu0 %v649
  %v2205 = vpop.f32.mrf.mxu0
  %v2206 = vadd.f32 %v567, %v2205
  %2207 = vmatmul.f32.gmra.mxu0 %v652
  %v2208 = vpop.f32.mrf.mxu0
  %v2209 = vadd.f32 %v567, %v2208
  %2210 = vmatmul.f32.gmra.mxu0 %v655
  %v2211 = vpop.f32.mrf.mxu0
  %v2212 = vadd.f32 %v567, %v2211
  %2213 = vmatmul.f32.gmra.mxu0 %v658
  %v2214 = vpop.f32.mrf.mxu0
  %v2215 = vadd.f32 %v567, %v2214
  %2216 = vmatmul.f32.gmra.mxu0 %v661
  %v2217 = vpop.f32.mrf.mxu0
  %v2218 = vadd.f32 %v567, %v2217
  %2219 = vmatmul.f32.gmra.mxu0 %v664
  %v2220 = vpop.f32.mrf.mxu0
  %v2221 = vadd.f32 %v567, %v2220
  %2222 = vmatmul.f32.gmra.mxu0 %v667
  %v2223 = vpop.f32.mrf.mxu0
  %v2224 = vadd.f32 %v567, %v2223
  %2225 = vmatmul.f32.gmra.mxu0 %v670
  %v2226 = vpop.f32.mrf.mxu0
  %v2227 = vadd.f32 %v567, %v2226
  %2228 = vmatmul.f32.gmra.mxu0 %v673
  %v2229 = vpop.f32.mrf.mxu0
  %v2230 = vadd.f32 %v567, %v2229
  %2231 = vmatmul.f32.gmra.mxu0 %v676
  %v2232 = vpop.f32.mrf.mxu0
  %v2233 = vadd.f32 %v567, %v2232
  %2234 = vmatmul.f32.gmra.mxu0 %v679
  %v2235 = vpop.f32.mrf.mxu0
  %v2236 = vadd.f32 %v567, %v2235
  %2237 = vmatmul.f32.gmra.mxu0 %v682
  %v2238 = vpop.f32.mrf.mxu0
  %v2239 = vadd.f32 %v567, %v2238
  %2240 = vmatmul.f32.gmra.mxu0 %v685
  %v2241 = vpop.f32.mrf.mxu0
  %v2242 = vadd.f32 %v567, %v2241
  %2243 = vmatmul.f32.gmra.mxu0 %v688
  %v2244 = vpop.f32.mrf.mxu0
  %v2245 = vadd.f32 %v567, %v2244
  %2246 = vmatmul.f32.gmra.mxu0 %v691
  %v2247 = vpop.f32.mrf.mxu0
  %v2248 = vadd.f32 %v567, %v2247
  %2249 = vmatmul.f32.gmra.mxu0 %v694
  %v2250 = vpop.f32.mrf.mxu0
  %v2251 = vadd.f32 %v567, %v2250
  %2252 = vmatmul.f32.gmra.mxu0 %v697
  %v2253 = vpop.f32.mrf.mxu0
  %v2254 = vadd.f32 %v567, %v2253
  %2255 = vmatmul.f32.gmra.mxu0 %v700
  %v2256 = vpop.f32.mrf.mxu0
  %v2257 = vadd.f32 %v567, %v2256
  %2258 = vmatmul.f32.gmra.mxu0 %v703
  %v2259 = vpop.f32.mrf.mxu0
  %v2260 = vadd.f32 %v567, %v2259
  %2261 = vmatmul.f32.gmra.mxu0 %v706
  %v2262 = vpop.f32.mrf.mxu0
  %v2263 = vadd.f32 %v567, %v2262
  %2264 = vmatmul.f32.gmra.mxu0 %v709
  %v2265 = vpop.f32.mrf.mxu0
  %v2266 = vadd.f32 %v567, %v2265
  %2267 = vmatmul.f32.gmra.mxu0 %v712
  %v2268 = vpop.f32.mrf.mxu0
  %v2269 = vadd.f32 %v567, %v2268
  %2270 = vmatmul.f32.gmra.mxu0 %v715
  %v2271 = vpop.f32.mrf.mxu0
  %v2272 = vadd.f32 %v567, %v2271
  %2273 = vmatmul.f32.gmra.mxu0 %v718
  %v2274 = vpop.f32.mrf.mxu0
  %v2275 = vadd.f32 %v567, %v2274
  %2276 = vmatmul.f32.gmra.mxu0 %v721
  %v2277 = vpop.f32.mrf.mxu0
  %v2278 = vadd.f32 %v567, %v2277
  %2279 = vmatmul.f32.gmra.mxu0 %v724
  %v2280 = vpop.f32.mrf.mxu0
  %v2281 = vadd.f32 %v567, %v2280
  %2282 = vmatmul.f32.gmra.mxu0 %v727
  %v2283 = vpop.f32.mrf.mxu0
  %v2284 = vadd.f32 %v567, %v2283
  %2285 = vmatmul.f32.gmra.mxu0 %v730
  %v2286 = vpop.f32.mrf.mxu0
  %v2287 = vadd.f32 %v567, %v2286
  %2288 = vmatmul.f32.gmra.mxu0 %v733
  %v2289 = vpop.f32.mrf.mxu0
  %v2290 = vadd.f32 %v567, %v2289
  %2291 = vmatmul.f32.gmra.mxu0 %v736
  %v2292 = vpop.f32.mrf.mxu0
  %v2293 = vadd.f32 %v567, %v2292
  %2294 = vmatmul.f32.gmra.mxu0 %v739
  %v2295 = vpop.f32.mrf.mxu0
  %v2296 = vadd.f32 %v567, %v2295
  %2297 = vmatmul.f32.gmra.mxu0 %v742
  %v2298 = vpop.f32.mrf.mxu0
  %v2299 = vadd.f32 %v567, %v2298
  %2300 = vmatmul.f32.gmra.mxu0 %v745
  %v2301 = vpop.f32.mrf.mxu0
  %v2302 = vadd.f32 %v567, %v2301
  %2303 = vmatmul.f32.gmra.mxu0 %v748
  %v2304 = vpop.f32.mrf.mxu0
  %v2305 = vadd.f32 %v567, %v2304
  %2306 = vmatmul.f32.gmra.mxu0 %v751
  %v2307 = vpop.f32.mrf.mxu0
  %v2308 = vadd.f32 %v567, %v2307
  %2309 = vmatmul.f32.gmra.mxu0 %v754
  %v2310 = vpop.f32.mrf.mxu0
  %v2311 = vadd.f32 %v567, %v2310
  %2312 = vmatmul.f32.gmra.mxu0 %v757
  %v2313 = vpop.f32.mrf.mxu0
  %v2314 = vadd.f32 %v567, %v2313
  %2315 = vmatmul.f32.gmra.mxu0 %v760
  %v2316 = vpop.f32.mrf.mxu0
  %v2317 = vadd.f32 %v567, %v2316
  %2318 = vmatmul.f32.gmra.mxu0 %v763
  %v2319 = vpop.f32.mrf.mxu0
  %v2320 = vadd.f32 %v567, %v2319
  %2321 = vmatmul.f32.gmra.mxu0 %v766
  %v2322 = vpop.f32.mrf.mxu0
  %v2323 = vadd.f32 %v567, %v2322
  %2324 = vmatmul.f32.gmra.mxu0 %v769
  %v2325 = vpop.f32.mrf.mxu0
  %v2326 = vadd.f32 %v567, %v2325
  %2327 = vmatmul.f32.gmra.mxu0 %v772
  %v2328 = vpop.f32.mrf.mxu0
  %v2329 = vadd.f32 %v567, %v2328
  %2330 = vmatmul.f32.gmra.mxu0 %v775
  %v2331 = vpop.f32.mrf.mxu0
  %v2332 = vadd.f32 %v567, %v2331
  %2333 = vmatmul.f32.gmra.mxu0 %v778
  %v2334 = vpop.f32.mrf.mxu0
  %v2335 = vadd.f32 %v567, %v2334
  %2336 = vmatmul.f32.gmra.mxu0 %v781
  %v2337 = vpop.f32.mrf.mxu0
  %v2338 = vadd.f32 %v567, %v2337
  %2339 = vmatmul.f32.gmra.mxu0 %v784
  %v2340 = vpop.f32.mrf.mxu0
  %v2341 = vadd.f32 %v567, %v2340
  %2342 = vmatmul.f32.gmra.mxu0 %v787
  %v2343 = vpop.f32.mrf.mxu0
  %v2344 = vadd.f32 %v567, %v2343
  %2345 = vmatmul.f32.gmra.mxu0 %v790
  %v2346 = vpop.f32.mrf.mxu0
  %v2347 = vadd.f32 %v567, %v2346
  %2348 = vmatmul.f32.gmra.mxu0 %v793
  %v2349 = vpop.f32.mrf.mxu0
  %v2350 = vadd.f32 %v567, %v2349
  %2351 = vmatmul.f32.gmra.mxu0 %v796
  %v2352 = vpop.f32.mrf.mxu0
  %v2353 = vadd.f32 %v567, %v2352
  %2354 = vmatmul.f32.gmra.mxu0 %v799
  %v2355 = vpop.f32.mrf.mxu0
  %v2356 = vadd.f32 %v567, %v2355
  %2357 = vmatmul.f32.gmra.mxu0 %v802
  %v2358 = vpop.f32.mrf.mxu0
  %v2359 = vadd.f32 %v567, %v2358
  %2360 = vmatmul.f32.gmra.mxu0 %v805
  %v2361 = vpop.f32.mrf.mxu0
  %v2362 = vadd.f32 %v567, %v2361
  %2363 = vmatmul.f32.gmra.mxu0 %v808
  %v2364 = vpop.f32.mrf.mxu0
  %v2365 = vadd.f32 %v567, %v2364
  %2366 = vmatmul.f32.gmra.mxu0 %v811
  %v2367 = vpop.f32.mrf.mxu0
  %v2368 = vadd.f32 %v567, %v2367
  %2369 = vmatmul.f32.gmra.mxu0 %v814
  %v2370 = vpop.f32.mrf.mxu0
  %v2371 = vadd.f32 %v567, %v2370
  %2372 = vmatmul.f32.gmra.mxu0 %v817
  %v2373 = vpop.f32.mrf.mxu0
  %v2374 = vadd.f32 %v567, %v2373
  %2375 = vmatmul.f32.gmra.mxu0 %v820
  %v2376 = vpop.f32.mrf.mxu0
  %v2377 = vadd.f32 %v567, %v2376
  %2378 = vmatmul.f32.gmra.mxu0 %v823
  %v2379 = vpop.f32.mrf.mxu0
  %v2380 = vadd.f32 %v567, %v2379
  %2381 = vmatmul.f32.gmra.mxu0 %v826
  %v2382 = vpop.f32.mrf.mxu0
  %v2383 = vadd.f32 %v567, %v2382
  %2384 = vmatmul.f32.gmra.mxu0 %v829
  %v2385 = vpop.f32.mrf.mxu0
  %v2386 = vadd.f32 %v567, %v2385
  %2387 = vmatmul.f32.gmra.mxu0 %v832
  %v2388 = vpop.f32.mrf.mxu0
  %v2389 = vadd.f32 %v567, %v2388
  %2390 = vmatmul.f32.gmra.mxu0 %v835
  %v2391 = vpop.f32.mrf.mxu0
  %v2392 = vadd.f32 %v567, %v2391
  %2393 = vmatmul.f32.gmra.mxu0 %v838
  %v2394 = vpop.f32.mrf.mxu0
  %v2395 = vadd.f32 %v567, %v2394
  %2396 = vmatmul.f32.gmra.mxu0 %v841
  %v2397 = vpop.f32.mrf.mxu0
  %v2398 = vadd.f32 %v567, %v2397
  %2399 = vmatmul.f32.gmra.mxu0 %v844
  %v2400 = vpop.f32.mrf.mxu0
  %v2401 = vadd.f32 %v567, %v2400
  %2402 = vmatmul.f32.gmra.mxu0 %v847
  %v2403 = vpop.f32.mrf.mxu0
  %v2404 = vadd.f32 %v567, %v2403
  %2405 = vmatmul.f32.gmra.mxu0 %v850
  %v2406 = vpop.f32.mrf.mxu0
  %v2407 = vadd.f32 %v567, %v2406
  %2408 = vmatmul.f32.gmra.mxu0 %v853
  %v2409 = vpop.f32.mrf.mxu0
  %v2410 = vadd.f32 %v567, %v2409
  %2411 = vmatmul.f32.gmra.mxu0 %v856
  %v2412 = vpop.f32.mrf.mxu0
  %v2413 = vadd.f32 %v567, %v2412
  %2414 = vmatmul.f32.gmra.mxu0 %v859
  %v2415 = vpop.f32.mrf.mxu0
  %v2416 = vadd.f32 %v567, %v2415
  %2417 = vmatmul.f32.gmra.mxu0 %v862
  %v2418 = vpop.f32.mrf.mxu0
  %v2419 = vadd.f32 %v567, %v2418
  %2420 = vmatmul.f32.gmra.mxu0 %v865
  %v2421 = vpop.f32.mrf.mxu0
  %v2422 = vadd.f32 %v567, %v2421
  %2423 = vmatmul.f32.gmra.mxu0 %v868
  %v2424 = vpop.f32.mrf.mxu0
  %v2425 = vadd.f32 %v567, %v2424
  %2426 = vmatmul.f32.gmra.mxu0 %v871
  %v2427 = vpop.f32.mrf.mxu0
  %v2428 = vadd.f32 %v567, %v2427
  %2429 = vmatmul.f32.gmra.mxu0 %v874
  %v2430 = vpop.f32.mrf.mxu0
  %v2431 = vadd.f32 %v567, %v2430
  %2432 = vmatmul.f32.gmra.mxu0 %v877
  %v2433 = vpop.f32.mrf.mxu0
  %v2434 = vadd.f32 %v567, %v2433
  %2435 = vmatmul.f32.gmra.mxu0 %v880
  %v2436 = vpop.f32.mrf.mxu0
  %v2437 = vadd.f32 %v567, %v2436
  %2438 = vmatmul.f32.gmra.mxu0 %v883
  %v2439 = vpop.f32.mrf.mxu0
  %v2440 = vadd.f32 %v567, %v2439
  %2441 = vmatmul.f32.gmra.mxu0 %v886
  %v2442 = vpop.f32.mrf.mxu0
  %v2443 = vadd.f32 %v567, %v2442
  %2444 = vmatmul.f32.gmra.mxu0 %v889
  %v2445 = vpop.f32.mrf.mxu0
  %v2446 = vadd.f32 %v567, %v2445
  %2447 = vmatmul.f32.gmra.mxu0 %v892
  %v2448 = vpop.f32.mrf.mxu0
  %v2449 = vadd.f32 %v567, %v2448
  %2450 = vmatmul.f32.gmra.mxu0 %v895
  %v2451 = vpop.f32.mrf.mxu0
  %v2452 = vadd.f32 %v567, %v2451
  %2453 = vmatmul.f32.gmra.mxu0 %v898
  %v2454 = vpop.f32.mrf.mxu0
  %v2455 = vadd.f32 %v567, %v2454
  %2456 = vmatmul.f32.gmra.mxu0 %v901
  %v2457 = vpop.f32.mrf.mxu0
  %v2458 = vadd.f32 %v567, %v2457
  %2459 = vmatmul.f32.gmra.mxu0 %v904
  %v2460 = vpop.f32.mrf.mxu0
  %v2461 = vadd.f32 %v567, %v2460
  %2462 = vmatmul.f32.gmra.mxu0 %v907
  %v2463 = vpop.f32.mrf.mxu0
  %v2464 = vadd.f32 %v567, %v2463
  %2465 = vmatmul.f32.gmra.mxu0 %v910
  %v2466 = vpop.f32.mrf.mxu0
  %v2467 = vadd.f32 %v567, %v2466
  %2468 = vmatmul.f32.gmra.mxu0 %v913
  %v2469 = vpop.f32.mrf.mxu0
  %v2470 = vadd.f32 %v567, %v2469
  %2471 = vmatmul.f32.gmra.mxu0 %v916
  %v2472 = vpop.f32.mrf.mxu0
  %v2473 = vadd.f32 %v567, %v2472
  %2474 = vmatmul.f32.gmra.mxu0 %v919
  %v2475 = vpop.f32.mrf.mxu0
  %v2476 = vadd.f32 %v567, %v2475
  %2477 = vmatmul.f32.gmra.mxu0 %v922
  %v2478 = vpop.f32.mrf.mxu0
  %v2479 = vadd.f32 %v567, %v2478
  %2480 = vmatmul.f32.gmra.mxu0 %v925
  %v2481 = vpop.f32.mrf.mxu0
  %v2482 = vadd.f32 %v567, %v2481
  %2483 = vmatmul.f32.gmra.mxu0 %v928
  %v2484 = vpop.f32.mrf.mxu0
  %v2485 = vadd.f32 %v567, %v2484
  %2486 = vmatmul.f32.gmra.mxu0 %v931
  %v2487 = vpop.f32.mrf.mxu0
  %v2488 = vadd.f32 %v567, %v2487
  %2489 = vmatmul.f32.gmra.mxu0 %v934
  %v2490 = vpop.f32.mrf.mxu0
  %v2491 = vadd.f32 %v567, %v2490
  %2492 = vmatmul.f32.gmra.mxu0 %v937
  %v2493 = vpop.f32.mrf.mxu0
  %v2494 = vadd.f32 %v567, %v2493
  %2495 = vmatmul.f32.gmra.mxu0 %v940
  %v2496 = vpop.f32.mrf.mxu0
  %v2497 = vadd.f32 %v567, %v2496
  %2498 = vmatmul.f32.gmra.mxu0 %v943
  %v2499 = vpop.f32.mrf.mxu0
  %v2500 = vadd.f32 %v567, %v2499
  %2501 = vmatmul.f32.gmra.mxu0 %v946
  %v2502 = vpop.f32.mrf.mxu0
  %v2503 = vadd.f32 %v567, %v2502
  %2504 = vmatmul.f32.gmra.mxu0 %v949
  %v2505 = vpop.f32.mrf.mxu0
  %v2506 = vadd.f32 %v567, %v2505
  %2507 = vmatmul.f32.gmra.mxu0 %v952
  %v2508 = vpop.f32.mrf.mxu0
  %v2509 = vadd.f32 %v567, %v2508
  %2510 = vmatmul.f32.gmra.mxu0 %v955
  %v2511 = vpop.f32.mrf.mxu0
  %v2512 = vadd.f32 %v567, %v2511
  %2513 = vmatmul.f32.gmra.mxu0 %v958
  %v2514 = vpop.f32.mrf.mxu0
  %v2515 = vadd.f32 %v567, %v2514
  %2516 = vmatmul.f32.gmra.mxu0 %v961
  %v2517 = vpop.f32.mrf.mxu0
  %v2518 = vadd.f32 %v567, %v2517
  %2519 = vmatmul.f32.gmra.mxu0 %v964
  %v2520 = vpop.f32.mrf.mxu0
  %v2521 = vadd.f32 %v567, %v2520
  %2522 = vmatmul.f32.gmra.mxu0 %v967
  %v2523 = vpop.f32.mrf.mxu0
  %v2524 = vadd.f32 %v567, %v2523
  %2525 = vmatmul.f32.gmra.mxu0 %v970
  %v2526 = vpop.f32.mrf.mxu0
  %v2527 = vadd.f32 %v567, %v2526
  %2528 = vmatmul.f32.gmra.mxu0 %v973
  %v2529 = vpop.f32.mrf.mxu0
  %v2530 = vadd.f32 %v567, %v2529
  %2531 = vmatmul.f32.gmra.mxu0 %v976
  %v2532 = vpop.f32.mrf.mxu0
  %v2533 = vadd.f32 %v567, %v2532
  %2534 = vmatmul.f32.gmra.mxu0 %v979
  %v2535 = vpop.f32.mrf.mxu0
  %v2536 = vadd.f32 %v567, %v2535
  %2537 = vmatmul.f32.gmra.mxu0 %v982
  %v2538 = vpop.f32.mrf.mxu0
  %v2539 = vadd.f32 %v567, %v2538
  %2540 = vmatmul.f32.gmra.mxu0 %v985
  %v2541 = vpop.f32.mrf.mxu0
  %v2542 = vadd.f32 %v567, %v2541
  %2543 = vmatmul.f32.gmra.mxu0 %v988
  %v2544 = vpop.f32.mrf.mxu0
  %v2545 = vadd.f32 %v567, %v2544
  %2546 = vmatmul.f32.gmra.mxu0 %v991
  %v2547 = vpop.f32.mrf.mxu0
  %v2548 = vadd.f32 %v567, %v2547
  %2549 = vmatmul.f32.gmra.mxu0 %v994
  %v2550 = vpop.f32.mrf.mxu0
  %v2551 = vadd.f32 %v567, %v2550
  %2552 = vmatmul.f32.gmra.mxu0 %v997
  %v2553 = vpop.f32.mrf.mxu0
  %v2554 = vadd.f32 %v567, %v2553
  %2555 = vmatmul.f32.gmra.mxu0 %v1000
  %v2556 = vpop.f32.mrf.mxu0
  %v2557 = vadd.f32 %v567, %v2556
  %2558 = vmatmul.f32.gmra.mxu0 %v1003
  %v2559 = vpop.f32.mrf.mxu0
  %v2560 = vadd.f32 %v567, %v2559
  %2561 = vmatmul.f32.gmra.mxu0 %v1006
  %v2562 = vpop.f32.mrf.mxu0
  %v2563 = vadd.f32 %v567, %v2562
  %2564 = vmatmul.f32.gmra.mxu0 %v1009
  %v2565 = vpop.f32.mrf.mxu0
  %v2566 = vadd.f32 %v567, %v2565
  %2567 = vmatmul.f32.gmra.mxu0 %v1012
  %v2568 = vpop.f32.mrf.mxu0
  %v2569 = vadd.f32 %v567, %v2568
  %2570 = vmatmul.f32.gmra.mxu0 %v1015
  %v2571 = vpop.f32.mrf.mxu0
  %v2572 = vadd.f32 %v567, %v2571
  %2573 = vmatmul.f32.gmra.mxu0 %v1018
  %v2574 = vpop.f32.mrf.mxu0
  %v2575 = vadd.f32 %v567, %v2574
  %2576 = vmatmul.f32.gmra.mxu0 %v1021
  %v2577 = vpop.f32.mrf.mxu0
  %v2578 = vadd.f32 %v567, %v2577
  %2579 = vmatmul.f32.gmra.mxu0 %v1024
  %v2580 = vpop.f32.mrf.mxu0
  %v2581 = vadd.f32 %v567, %v2580
  %2582 = vmatmul.f32.gmra.mxu0 %v1027
  %v2583 = vpop.f32.mrf.mxu0
  %v2584 = vadd.f32 %v567, %v2583
  %2585 = vmatmul.f32.gmra.mxu0 %v1030
  %v2586 = vpop.f32.mrf.mxu0
  %v2587 = vadd.f32 %v567, %v2586
  %2588 = vmatmul.f32.gmra.mxu0 %v1033
  %v2589 = vpop.f32.mrf.mxu0
  %v2590 = vadd.f32 %v567, %v2589
  %2591 = vmatmul.f32.gmra.mxu0 %v1036
  %v2592 = vpop.f32.mrf.mxu0
  %v2593 = vadd.f32 %v567, %v2592
  %2594 = vmatmul.f32.gmra.mxu0 %v1039
  %v2595 = vpop.f32.mrf.mxu0
  %v2596 = vadd.f32 %v567, %v2595
  %2597 = vmatmul.f32.gmra.mxu0 %v1042
  %v2598 = vpop.f32.mrf.mxu0
  %v2599 = vadd.f32 %v567, %v2598
  %2600 = vmatmul.f32.gmra.mxu0 %v1045
  %v2601 = vpop.f32.mrf.mxu0
  %v2602 = vadd.f32 %v567, %v2601
  %2603 = vmatmul.f32.gmra.mxu0 %v1048
  %v2604 = vpop.f32.mrf.mxu0
  %v2605 = vadd.f32 %v567, %v2604
  %2606 = vmatmul.f32.gmra.mxu0 %v1051
  %v2607 = vpop.f32.mrf.mxu0
  %v2608 = vadd.f32 %v567, %v2607
  %2609 = vmatmul.f32.gmra.mxu0 %v1054
  %v2610 = vpop.f32.mrf.mxu0
  %v2611 = vadd.f32 %v567, %v2610
  %2612 = vmatmul.f32.gmra.mxu0 %v1057
  %v2613 = vpop.f32.mrf.mxu0
  %v2614 = vadd.f32 %v567, %v2613
  %2615 = vmatmul.f32.gmra.mxu0 %v1060
  %v2616 = vpop.f32.mrf.mxu0
  %v2617 = vadd.f32 %v567, %v2616
  %2618 = vmatmul.f32.gmra.mxu0 %v1063
  %v2619 = vpop.f32.mrf.mxu0
  %v2620 = vadd.f32 %v567, %v2619
  %2621 = vmatmul.f32.gmra.mxu0 %v1066
  %v2622 = vpop.f32.mrf.mxu0
  %v2623 = vadd.f32 %v567, %v2622
  %2624 = vmatmul.f32.gmra.mxu0 %v1069
  %v2625 = vpop.f32.mrf.mxu0
  %v2626 = vadd.f32 %v567, %v2625
  %2627 = vmatmul.f32.gmra.mxu0 %v1072
  %v2628 = vpop.f32.mrf.mxu0
  %v2629 = vadd.f32 %v567, %v2628
  %2630 = vmatmul.f32.gmra.mxu0 %v1075
  %v2631 = vpop.f32.mrf.mxu0
  %v2632 = vadd.f32 %v567, %v2631
  %2633 = vmatmul.f32.gmra.mxu0 %v1078
  %v2634 = vpop.f32.mrf.mxu0
  %v2635 = vadd.f32 %v567, %v2634
  %2636 = vmatmul.f32.gmra.mxu0 %v1081
  %v2637 = vpop.f32.mrf.mxu0
  %v2638 = vadd.f32 %v567, %v2637
  %2639 = vmatmul.f32.gmra.mxu0 %v1084
  %v2640 = vpop.f32.mrf.mxu0
  %v2641 = vadd.f32 %v567, %v2640
  %2642 = vmatmul.f32.gmra.mxu0 %v1087
  %v2643 = vpop.f32.mrf.mxu0
  %v2644 = vadd.f32 %v567, %v2643
  %2645 = vmatmul.f32.gmra.mxu0 %v1090
  %v2646 = vpop.f32.mrf.mxu0
  %v2647 = vadd.f32 %v567, %v2646
  %2648 = vmatmul.f32.gmra.mxu0 %v1093
  %v2649 = vpop.f32.mrf.mxu0
  %v2650 = vadd.f32 %v567, %v2649
  %2651 = vmatmul.f32.gmra.mxu0 %v1096
  %v2652 = vpop.f32.mrf.mxu0
  %v2653 = vadd.f32 %v567, %v2652
  %2654 = vmatmul.f32.gmra.mxu0 %v1099
  %v2655 = vpop.f32.mrf.mxu0
  %v2656 = vadd.f32 %v567, %v2655
  %2657 = vmatmul.f32.gmra.mxu0 %v1102
  %v2658 = vpop.f32.mrf.mxu0
  %v2659 = vadd.f32 %v567, %v2658
  %2660 = vmatmul.f32.gmra.mxu0 %v1105
  %v2661 = vpop.f32.mrf.mxu0
  %v2662 = vadd.f32 %v567, %v2661
  %2663 = vmatmul.f32.gmra.mxu0 %v1108
  %v2664 = vpop.f32.mrf.mxu0
  %v2665 = vadd.f32 %v567, %v2664
  %2666 = vmatmul.f32.gmra.mxu0 %v1111
  %v2667 = vpop.f32.mrf.mxu0
  %v2668 = vadd.f32 %v567, %v2667
  %2669 = vmatmul.f32.gmra.mxu0 %v1114
  %v2670 = vpop.f32.mrf.mxu0
  %v2671 = vadd.f32 %v567, %v2670
  %2672 = vmatmul.f32.gmra.mxu0 %v1117
  %v2673 = vpop.f32.mrf.mxu0
  %v2674 = vadd.f32 %v567, %v2673
  %2675 = vmatmul.f32.gmra.mxu0 %v1120
  %v2676 = vpop.f32.mrf.mxu0
  %v2677 = vadd.f32 %v567, %v2676
  %2678 = vmatmul.f32.gmra.mxu0 %v1123
  %v2679 = vpop.f32.mrf.mxu0
  %v2680 = vadd.f32 %v567, %v2679
  %2681 = vmatmul.f32.gmra.mxu0 %v1126
  %v2682 = vpop.f32.mrf.mxu0
  %v2683 = vadd.f32 %v567, %v2682
  %2684 = vmatmul.f32.gmra.mxu0 %v1129
  %v2685 = vpop.f32.mrf.mxu0
  %v2686 = vadd.f32 %v567, %v2685
  %2687 = vmatmul.f32.gmra.mxu0 %v1132
  %v2688 = vpop.f32.mrf.mxu0
  %v2689 = vadd.f32 %v567, %v2688
  %2690 = vmatmul.f32.gmra.mxu0 %v1135
  %v2691 = vpop.f32.mrf.mxu0
  %v2692 = vadd.f32 %v567, %v2691
  %2693 = vmatmul.f32.gmra.mxu0 %v1138
  %v2694 = vpop.f32.mrf.mxu0
  %v2695 = vadd.f32 %v567, %v2694
  %2696 = vmatmul.f32.gmra.mxu0 %v1141
  %v2697 = vpop.f32.mrf.mxu0
  %v2698 = vadd.f32 %v567, %v2697
  %2699 = vmatmul.f32.gmra.mxu0 %v1144
  %v2700 = vpop.f32.mrf.mxu0
  %v2701 = vadd.f32 %v567, %v2700
  %2702 = vmatmul.f32.gmra.mxu0 %v1147
  %v2703 = vpop.f32.mrf.mxu0
  %v2704 = vadd.f32 %v567, %v2703
  %2705 = vmatmul.f32.gmra.mxu0 %v1150
  %v2706 = vpop.f32.mrf.mxu0
  %v2707 = vadd.f32 %v567, %v2706
  %2708 = vmatmul.f32.gmra.mxu0 %v1153
  %v2709 = vpop.f32.mrf.mxu0
  %v2710 = vadd.f32 %v567, %v2709
  %2711 = vmatmul.f32.gmra.mxu0 %v1156
  %v2712 = vpop.f32.mrf.mxu0
  %v2713 = vadd.f32 %v567, %v2712
  %2714 = vmatmul.f32.gmra.mxu0 %v1159
  %v2715 = vpop.f32.mrf.mxu0
  %v2716 = vadd.f32 %v567, %v2715
  %2717 = vmatmul.f32.gmra.mxu0 %v1162
  %v2718 = vpop.f32.mrf.mxu0
  %v2719 = vadd.f32 %v567, %v2718
  %2720 = vmatmul.f32.gmra.mxu0 %v1165
  %v2721 = vpop.f32.mrf.mxu0
  %v2722 = vadd.f32 %v567, %v2721
  %2723 = vmatmul.f32.gmra.mxu0 %v1168
  %v2724 = vpop.f32.mrf.mxu0
  %v2725 = vadd.f32 %v567, %v2724
  %2726 = vmatmul.f32.gmra.mxu0 %v1171
  %v2727 = vpop.f32.mrf.mxu0
  %v2728 = vadd.f32 %v567, %v2727
  %2729 = vmatmul.f32.gmra.mxu0 %v1174
  %v2730 = vpop.f32.mrf.mxu0
  %v2731 = vadd.f32 %v567, %v2730
  %2732 = vmatmul.f32.gmra.mxu0 %v1177
  %v2733 = vpop.f32.mrf.mxu0
  %v2734 = vadd.f32 %v567, %v2733
  %2735 = vmatmul.f32.gmra.mxu0 %v1180
  %v2736 = vpop.f32.mrf.mxu0
  %v2737 = vadd.f32 %v567, %v2736
  %2738 = vmatmul.f32.gmra.mxu0 %v1183
  %v2739 = vpop.f32.mrf.mxu0
  %v2740 = vadd.f32 %v567, %v2739
  %2741 = vmatmul.f32.gmra.mxu0 %v1186
  %v2742 = vpop.f32.mrf.mxu0
  %v2743 = vadd.f32 %v567, %v2742
  %2744 = vmatmul.f32.gmra.mxu0 %v1189
  %v2745 = vpop.f32.mrf.mxu0
  %v2746 = vadd.f32 %v567, %v2745
  %2747 = vmatmul.f32.gmra.mxu0 %v1192
  %v2748 = vpop.f32.mrf.mxu0
  %v2749 = vadd.f32 %v567, %v2748
  %2750 = vmatmul.f32.gmra.mxu0 %v1195
  %v2751 = vpop.f32.mrf.mxu0
  %v2752 = vadd.f32 %v567, %v2751
  %2753 = vmatmul.f32.gmra.mxu0 %v1198
  %v2754 = vpop.f32.mrf.mxu0
  %v2755 = vadd.f32 %v567, %v2754
  %2756 = vmatmul.f32.gmra.mxu0 %v1201
  %v2757 = vpop.f32.mrf.mxu0
  %v2758 = vadd.f32 %v567, %v2757
  %2759 = vmatmul.f32.gmra.mxu0 %v1204
  %v2760 = vpop.f32.mrf.mxu0
  %v2761 = vadd.f32 %v567, %v2760
  %2762 = vmatmul.f32.gmra.mxu0 %v1207
  %v2763 = vpop.f32.mrf.mxu0
  %v2764 = vadd.f32 %v567, %v2763
  %2765 = vmatmul.f32.gmra.mxu0 %v1210
  %v2766 = vpop.f32.mrf.mxu0
  %v2767 = vadd.f32 %v567, %v2766
  %2768 = vmatmul.f32.gmra.mxu0 %v1213
  %v2769 = vpop.f32.mrf.mxu0
  %v2770 = vadd.f32 %v567, %v2769
  %2771 = vmatmul.f32.gmra.mxu0 %v1216
  %v2772 = vpop.f32.mrf.mxu0
  %v2773 = vadd.f32 %v567, %v2772
  %2774 = vmatmul.f32.gmra.mxu0 %v1219
  %v2775 = vpop.f32.mrf.mxu0
  %v2776 = vadd.f32 %v567, %v2775
  %2777 = vmatmul.f32.gmra.mxu0 %v1222
  %v2778 = vpop.f32.mrf.mxu0
  %v2779 = vadd.f32 %v567, %v2778
  %2780 = vmatmul.f32.gmra.mxu0 %v1225
  %v2781 = vpop.f32.mrf.mxu0
  %v2782 = vadd.f32 %v567, %v2781
  %2783 = vmatmul.f32.gmra.mxu0 %v1228
  %v2784 = vpop.f32.mrf.mxu0
  %v2785 = vadd.f32 %v567, %v2784
  %2786 = vmatmul.f32.gmra.mxu0 %v1231
  %v2787 = vpop.f32.mrf.mxu0
  %v2788 = vadd.f32 %v567, %v2787
  %2789 = vmatmul.f32.gmra.mxu0 %v1234
  %v2790 = vpop.f32.mrf.mxu0
  %v2791 = vadd.f32 %v567, %v2790
  %2792 = vmatmul.f32.gmra.mxu0 %v1237
  %v2793 = vpop.f32.mrf.mxu0
  %v2794 = vadd.f32 %v567, %v2793
  %2795 = vmatmul.f32.gmra.mxu0 %v1240
  %v2796 = vpop.f32.mrf.mxu0
  %v2797 = vadd.f32 %v567, %v2796
  %2798 = vmatmul.f32.gmra.mxu0 %v1243
  %v2799 = vpop.f32.mrf.mxu0
  %v2800 = vadd.f32 %v567, %v2799
  %2801 = vmatmul.f32.gmra.mxu0 %v1246
  %v2802 = vpop.f32.mrf.mxu0
  %v2803 = vadd.f32 %v567, %v2802
  %2804 = vmatmul.f32.gmra.mxu0 %v1249
  %v2805 = vpop.f32.mrf.mxu0
  %v2806 = vadd.f32 %v567, %v2805
  %2807 = vmatmul.f32.gmra.mxu0 %v1252
  %v2808 = vpop.f32.mrf.mxu0
  %v2809 = vadd.f32 %v567, %v2808
  %2810 = vmatmul.f32.gmra.mxu0 %v1255
  %v2811 = vpop.f32.mrf.mxu0
  %v2812 = vadd.f32 %v567, %v2811
  %2813 = vmatmul.f32.gmra.mxu0 %v1258
  %v2814 = vpop.f32.mrf.mxu0
  %v2815 = vadd.f32 %v567, %v2814
  %2816 = vmatmul.f32.gmra.mxu0 %v1261
  %v2817 = vpop.f32.mrf.mxu0
  %v2818 = vadd.f32 %v567, %v2817
  %2819 = vmatmul.f32.gmra.mxu0 %v1264
  %v2820 = vpop.f32.mrf.mxu0
  %v2821 = vadd.f32 %v567, %v2820
  %2822 = vmatmul.f32.gmra.mxu0 %v1267
  %v2823 = vpop.f32.mrf.mxu0
  %v2824 = vadd.f32 %v567, %v2823
  %2825 = vmatmul.f32.gmra.mxu0 %v1270
  %v2826 = vpop.f32.mrf.mxu0
  %v2827 = vadd.f32 %v567, %v2826
  %2828 = vmatmul.f32.gmra.mxu0 %v1273
  %v2829 = vpop.f32.mrf.mxu0
  %v2830 = vadd.f32 %v567, %v2829
  %2831 = vmatmul.f32.gmra.mxu0 %v1276
  %v2832 = vpop.f32.mrf.mxu0
  %v2833 = vadd.f32 %v567, %v2832
  %2834 = vmatmul.f32.gmra.mxu0 %v1279
  %v2835 = vpop.f32.mrf.mxu0
  %v2836 = vadd.f32 %v567, %v2835
  %2837 = vmatmul.f32.gmra.mxu0 %v1282
  %v2838 = vpop.f32.mrf.mxu0
  %v2839 = vadd.f32 %v567, %v2838
  %2840 = vmatmul.f32.gmra.mxu0 %v1285
  %v2841 = vpop.f32.mrf.mxu0
  %v2842 = vadd.f32 %v567, %v2841
  %2843 = vmatmul.f32.gmra.mxu0 %v1288
  %v2844 = vpop.f32.mrf.mxu0
  %v2845 = vadd.f32 %v567, %v2844
  %2846 = vmatmul.f32.gmra.mxu0 %v1291
  %v2847 = vpop.f32.mrf.mxu0
  %v2848 = vadd.f32 %v567, %v2847
  %2849 = vmatmul.f32.gmra.mxu0 %v1294
  %v2850 = vpop.f32.mrf.mxu0
  %v2851 = vadd.f32 %v567, %v2850
  %2852 = vmatmul.f32.gmra.mxu0 %v1297
  %v2853 = vpop.f32.mrf.mxu0
  %v2854 = vadd.f32 %v567, %v2853
  %2855 = vmatmul.f32.gmra.mxu0 %v1300
  %v2856 = vpop.f32.mrf.mxu0
  %v2857 = vadd.f32 %v567, %v2856
  %2858 = vmatmul.f32.gmra.mxu0 %v1303
  %v2859 = vpop.f32.mrf.mxu0
  %v2860 = vadd.f32 %v567, %v2859
  %2861 = vmatmul.f32.gmra.mxu0 %v1306
  %v2862 = vpop.f32.mrf.mxu0
  %v2863 = vadd.f32 %v567, %v2862
  %2864 = vmatmul.f32.gmra.mxu0 %v1309
  %v2865 = vpop.f32.mrf.mxu0
  %v2866 = vadd.f32 %v567, %v2865
  %2867 = vmatmul.f32.gmra.mxu0 %v1312
  %v2868 = vpop.f32.mrf.mxu0
  %v2869 = vadd.f32 %v567, %v2868
  %2870 = vmatmul.f32.gmra.mxu0 %v1315
  %v2871 = vpop.f32.mrf.mxu0
  %v2872 = vadd.f32 %v567, %v2871
  %2873 = vmatmul.f32.gmra.mxu0 %v1318
  %v2874 = vpop.f32.mrf.mxu0
  %v2875 = vadd.f32 %v567, %v2874
  %2876 = vmatmul.f32.gmra.mxu0 %v1321
  %v2877 = vpop.f32.mrf.mxu0
  %v2878 = vadd.f32 %v567, %v2877
  %2879 = vmatmul.f32.gmra.mxu0 %v1324
  %v2880 = vpop.f32.mrf.mxu0
  %v2881 = vadd.f32 %v567, %v2880
  %2882 = vmatmul.f32.gmra.mxu0 %v1327
  %v2883 = vpop.f32.mrf.mxu0
  %v2884 = vadd.f32 %v567, %v2883
  %2885 = vmatmul.f32.gmra.mxu0 %v1330
  %v2886 = vpop.f32.mrf.mxu0
  %v2887 = vadd.f32 %v567, %v2886
  %2888 = vmatmul.f32.gmra.mxu0 %v1333
  %v2889 = vpop.f32.mrf.mxu0
  %v2890 = vadd.f32 %v567, %v2889
  %2891 = vmatmul.f32.gmra.mxu0 %v1336
  %v2892 = vpop.f32.mrf.mxu0
  %v2893 = vadd.f32 %v567, %v2892
  %2894 = vmatmul.f32.gmra.mxu0 %v1339
  %v2895 = vpop.f32.mrf.mxu0
  %v2896 = vadd.f32 %v567, %v2895
  %2897 = vmatmul.f32.gmra.mxu0 %v1342
  %v2898 = vpop.f32.mrf.mxu0
  %v2899 = vadd.f32 %v567, %v2898
  %2900 = vmatmul.f32.gmra.mxu0 %v1345
  %v2901 = vpop.f32.mrf.mxu0
  %v2902 = vadd.f32 %v567, %v2901
  %2903 = vmatmul.f32.gmra.mxu0 %v1348
  %v2904 = vpop.f32.mrf.mxu0
  %v2905 = vadd.f32 %v567, %v2904
  %2906 = vmatmul.f32.gmra.mxu0 %v1351
  %v2907 = vpop.f32.mrf.mxu0
  %v2908 = vadd.f32 %v567, %v2907
  %2909 = vmatmul.f32.gmra.mxu0 %v1354
  %v2910 = vpop.f32.mrf.mxu0
  %v2911 = vadd.f32 %v567, %v2910
  %2912 = vmatmul.f32.gmra.mxu0 %v1357
  %v2913 = vpop.f32.mrf.mxu0
  %v2914 = vadd.f32 %v567, %v2913
  %2915 = vmatmul.f32.gmra.mxu0 %v1360
  %v2916 = vpop.f32.mrf.mxu0
  %v2917 = vadd.f32 %v567, %v2916
  %2918 = vmatmul.f32.gmra.mxu0 %v1363
  %v2919 = vpop.f32.mrf.mxu0
  %v2920 = vadd.f32 %v567, %v2919
  %2921 = vmatmul.f32.gmra.mxu0 %v1366
  %v2922 = vpop.f32.mrf.mxu0
  %v2923 = vadd.f32 %v567, %v2922
  %2924 = vmatmul.f32.gmra.mxu0 %v1369
  %v2925 = vpop.f32.mrf.mxu0
  %v2926 = vadd.f32 %v567, %v2925
  %2927 = vmatmul.f32.gmra.mxu0 %v1372
  %v2928 = vpop.f32.mrf.mxu0
  %v2929 = vadd.f32 %v567, %v2928
  %2930 = vmatmul.f32.gmra.mxu0 %v1375
  %v2931 = vpop.f32.mrf.mxu0
  %v2932 = vadd.f32 %v567, %v2931
  %2933 = vmatmul.f32.gmra.mxu0 %v1378
  %v2934 = vpop.f32.mrf.mxu0
  %v2935 = vadd.f32 %v567, %v2934
  %2936 = vmatmul.f32.gmra.mxu0 %v1381
  %v2937 = vpop.f32.mrf.mxu0
  %v2938 = vadd.f32 %v567, %v2937
  %2939 = vmatmul.f32.gmra.mxu0 %v1384
  %v2940 = vpop.f32.mrf.mxu0
  %v2941 = vadd.f32 %v567, %v2940
  %2942 = vmatmul.f32.gmra.mxu0 %v1387
  %v2943 = vpop.f32.mrf.mxu0
  %v2944 = vadd.f32 %v567, %v2943
  %2945 = vmatmul.f32.gmra.mxu0 %v1390
  %v2946 = vpop.f32.mrf.mxu0
  %v2947 = vadd.f32 %v567, %v2946
  %2948 = vmatmul.f32.gmra.mxu0 %v1393
  %v2949 = vpop.f32.mrf.mxu0
  %v2950 = vadd.f32 %v567, %v2949
  %2951 = vmatmul.f32.gmra.mxu0 %v1396
  %v2952 = vpop.f32.mrf.mxu0
  %v2953 = vadd.f32 %v567, %v2952
  %2954 = vmatmul.f32.gmra.mxu0 %v1399
  %v2955 = vpop.f32.mrf.mxu0
  %v2956 = vadd.f32 %v567, %v2955
  %2957 = vmatmul.f32.gmra.mxu0 %v1402
  %v2958 = vpop.f32.mrf.mxu0
  %v2959 = vadd.f32 %v567, %v2958
  %2960 = vmatmul.f32.gmra.mxu0 %v1405
  %v2961 = vpop.f32.mrf.mxu0
  %v2962 = vadd.f32 %v567, %v2961
  %2963 = vmatmul.f32.gmra.mxu0 %v1408
  %v2964 = vpop.f32.mrf.mxu0
  %v2965 = vadd.f32 %v567, %v2964
  %2966 = vmatmul.f32.gmra.mxu0 %v1411
  %v2967 = vpop.f32.mrf.mxu0
  %v2968 = vadd.f32 %v567, %v2967
  %2969 = vmatmul.f32.gmra.mxu0 %v1414
  %v2970 = vpop.f32.mrf.mxu0
  %v2971 = vadd.f32 %v567, %v2970
  %2972 = vmatmul.f32.gmra.mxu0 %v1417
  %v2973 = vpop.f32.mrf.mxu0
  %v2974 = vadd.f32 %v567, %v2973
  %2975 = vmatmul.f32.gmra.mxu0 %v1420
  %v2976 = vpop.f32.mrf.mxu0
  %v2977 = vadd.f32 %v567, %v2976
  %2978 = vmatmul.f32.gmra.mxu0 %v1423
  %v2979 = vpop.f32.mrf.mxu0
  %v2980 = vadd.f32 %v567, %v2979
  %2981 = vmatmul.f32.gmra.mxu0 %v1426
  %v2982 = vpop.f32.mrf.mxu0
  %v2983 = vadd.f32 %v567, %v2982
  %2984 = vmatmul.f32.gmra.mxu0 %v1429
  %v2985 = vpop.f32.mrf.mxu0
  %v2986 = vadd.f32 %v567, %v2985
  %2987 = vmatmul.f32.gmra.mxu0 %v1432
  %v2988 = vpop.f32.mrf.mxu0
  %v2989 = vadd.f32 %v567, %v2988
  %2990 = vmatmul.f32.gmra.mxu0 %v1435
  %v2991 = vpop.f32.mrf.mxu0
  %v2992 = vadd.f32 %v567, %v2991
  %2993 = vmatmul.f32.gmra.mxu0 %v1438
  %v2994 = vpop.f32.mrf.mxu0
  %v2995 = vadd.f32 %v567, %v2994
  %2996 = vmatmul.f32.gmra.mxu0 %v1441
  %v2997 = vpop.f32.mrf.mxu0
  %v2998 = vadd.f32 %v567, %v2997
  %2999 = vmatmul.f32.gmra.mxu0 %v1444
  %v3000 = vpop.f32.mrf.mxu0
  %v3001 = vadd.f32 %v567, %v3000
  %3002 = vmatmul.f32.gmra.mxu0 %v1447
  %v3003 = vpop.f32.mrf.mxu0
  %v3004 = vadd.f32 %v567, %v3003
  %3005 = vmatmul.f32.gmra.mxu0 %v1450
  %v3006 = vpop.f32.mrf.mxu0
  %v3007 = vadd.f32 %v567, %v3006
  %3008 = vmatmul.f32.gmra.mxu0 %v1453
  %v3009 = vpop.f32.mrf.mxu0
  %v3010 = vadd.f32 %v567, %v3009
  %3011 = vmatmul.f32.gmra.mxu0 %v1456
  %v3012 = vpop.f32.mrf.mxu0
  %v3013 = vadd.f32 %v567, %v3012
  %3014 = vmatmul.f32.gmra.mxu0 %v1459
  %v3015 = vpop.f32.mrf.mxu0
  %v3016 = vadd.f32 %v567, %v3015
  %3017 = vmatmul.f32.gmra.mxu0 %v1462
  %v3018 = vpop.f32.mrf.mxu0
  %v3019 = vadd.f32 %v567, %v3018
  %3020 = vmatmul.f32.gmra.mxu0 %v1465
  %v3021 = vpop.f32.mrf.mxu0
  %v3022 = vadd.f32 %v567, %v3021
  %3023 = vmatmul.f32.gmra.mxu0 %v1468
  %v3024 = vpop.f32.mrf.mxu0
  %v3025 = vadd.f32 %v567, %v3024
  %3026 = vmatmul.f32.gmra.mxu0 %v1471
  %v3027 = vpop.f32.mrf.mxu0
  %v3028 = vadd.f32 %v567, %v3027
  %3029 = vmatmul.f32.gmra.mxu0 %v1474
  %v3030 = vpop.f32.mrf.mxu0
  %v3031 = vadd.f32 %v567, %v3030
  %3032 = vmatmul.f32.gmra.mxu0 %v1477
  %v3033 = vpop.f32.mrf.mxu0
  %v3034 = vadd.f32 %v567, %v3033
  %3035 = vmatmul.f32.gmra.mxu0 %v1480
  %v3036 = vpop.f32.mrf.mxu0
  %v3037 = vadd.f32 %v567, %v3036
  %3038 = vmatmul.f32.gmra.mxu0 %v1483
  %v3039 = vpop.f32.mrf.mxu0
  %v3040 = vadd.f32 %v567, %v3039
  %3041 = vmatmul.f32.gmra.mxu0 %v1486
  %v3042 = vpop.f32.mrf.mxu0
  %v3043 = vadd.f32 %v567, %v3042
  %3044 = vmatmul.f32.gmra.mxu0 %v1489
  %v3045 = vpop.f32.mrf.mxu0
  %v3046 = vadd.f32 %v567, %v3045
  %3047 = vmatmul.f32.gmra.mxu0 %v1492
  %v3048 = vpop.f32.mrf.mxu0
  %v3049 = vadd.f32 %v567, %v3048
  %3050 = vmatmul.f32.gmra.mxu0 %v1495
  %v3051 = vpop.f32.mrf.mxu0
  %v3052 = vadd.f32 %v567, %v3051
  %3053 = vmatmul.f32.gmra.mxu0 %v1498
  %v3054 = vpop.f32.mrf.mxu0
  %v3055 = vadd.f32 %v567, %v3054
  %3056 = vmatmul.f32.gmra.mxu0 %v1501
  %v3057 = vpop.f32.mrf.mxu0
  %v3058 = vadd.f32 %v567, %v3057
  %3059 = vmatmul.f32.gmra.mxu0 %v1504
  %v3060 = vpop.f32.mrf.mxu0
  %v3061 = vadd.f32 %v567, %v3060
  %3062 = vmatmul.f32.gmra.mxu0 %v1507
  %v3063 = vpop.f32.mrf.mxu0
  %v3064 = vadd.f32 %v567, %v3063
  %3065 = vmatmul.f32.gmra.mxu0 %v1510
  %v3066 = vpop.f32.mrf.mxu0
  %v3067 = vadd.f32 %v567, %v3066
  %3068 = vmatmul.f32.gmra.mxu0 %v1513
  %v3069 = vpop.f32.mrf.mxu0
  %v3070 = vadd.f32 %v567, %v3069
  %3071 = vmatmul.f32.gmra.mxu0 %v1516
  %v3072 = vpop.f32.mrf.mxu0
  %v3073 = vadd.f32 %v567, %v3072
  %3074 = vmatmul.f32.gmra.mxu0 %v1519
  %v3075 = vpop.f32.mrf.mxu0
  %v3076 = vadd.f32 %v567, %v3075
  %3077 = vmatmul.f32.gmra.mxu0 %v1522
  %v3078 = vpop.f32.mrf.mxu0
  %v3079 = vadd.f32 %v567, %v3078
  %3080 = vmatmul.f32.gmra.mxu0 %v1525
  %v3081 = vpop.f32.mrf.mxu0
  %v3082 = vadd.f32 %v567, %v3081
  %3083 = vmatmul.f32.gmra.mxu0 %v1528
  %v3084 = vpop.f32.mrf.mxu0
  %v3085 = vadd.f32 %v567, %v3084
  %3086 = vmatmul.f32.gmra.mxu0 %v1531
  %v3087 = vpop.f32.mrf.mxu0
  %v3088 = vadd.f32 %v567, %v3087
  %3089 = vmatmul.f32.gmra.mxu0 %v1534
  %v3090 = vpop.f32.mrf.mxu0
  %v3091 = vadd.f32 %v567, %v3090
  %3092 = vmatmul.f32.gmra.mxu0 %v1537
  %v3093 = vpop.f32.mrf.mxu0
  %v3094 = vadd.f32 %v567, %v3093
  %3095 = vmatmul.f32.gmra.mxu0 %v1540
  %v3096 = vpop.f32.mrf.mxu0
  %v3097 = vadd.f32 %v567, %v3096
  %3098 = vmatmul.f32.gmra.mxu0 %v1543
  %v3099 = vpop.f32.mrf.mxu0
  %v3100 = vadd.f32 %v567, %v3099
  %3101 = vmatmul.f32.gmra.mxu0 %v1546
  %v3102 = vpop.f32.mrf.mxu0
  %v3103 = vadd.f32 %v567, %v3102
  %3104 = vmatmul.f32.gmra.mxu0 %v1549
  %v3105 = vpop.f32.mrf.mxu0
  %v3106 = vadd.f32 %v567, %v3105
  %3107 = vmatmul.f32.gmra.mxu0 %v1552
  %v3108 = vpop.f32.mrf.mxu0
  %v3109 = vadd.f32 %v567, %v3108
  %3110 = vmatmul.f32.gmra.mxu0 %v1555
  %v3111 = vpop.f32.mrf.mxu0
  %v3112 = vadd.f32 %v567, %v3111
  %3113 = vmatmul.f32.gmra.mxu0 %v1558
  %v3114 = vpop.f32.mrf.mxu0
  %v3115 = vadd.f32 %v567, %v3114
  %3116 = vmatmul.f32.gmra.mxu0 %v1561
  %v3117 = vpop.f32.mrf.mxu0
  %v3118 = vadd.f32 %v567, %v3117
  %3119 = vmatmul.f32.gmra.mxu0 %v1564
  %v3120 = vpop.f32.mrf.mxu0
  %v3121 = vadd.f32 %v567, %v3120
  %3122 = vmatmul.f32.gmra.mxu0 %v1567
  %v3123 = vpop.f32.mrf.mxu0
  %v3124 = vadd.f32 %v567, %v3123
  %3125 = vmatmul.f32.gmra.mxu0 %v1570
  %v3126 = vpop.f32.mrf.mxu0
  %v3127 = vadd.f32 %v567, %v3126
  %3128 = vmatmul.f32.gmra.mxu0 %v1573
  %v3129 = vpop.f32.mrf.mxu0
  %v3130 = vadd.f32 %v567, %v3129
  %3131 = vmatmul.f32.gmra.mxu0 %v1576
  %v3132 = vpop.f32.mrf.mxu0
  %v3133 = vadd.f32 %v567, %v3132
  %3134 = vmatmul.f32.gmra.mxu0 %v1579
  %v3135 = vpop.f32.mrf.mxu0
  %v3136 = vadd.f32 %v567, %v3135
  %3137 = vmatmul.f32.gmra.mxu0 %v1582
  %v3138 = vpop.f32.mrf.mxu0
  %v3139 = vadd.f32 %v567, %v3138
  %3140 = vmatmul.f32.gmra.mxu0 %v1585
  %v3141 = vpop.f32.mrf.mxu0
  %v3142 = vadd.f32 %v567, %v3141
  %3143 = vmatmul.f32.gmra.mxu0 %v1588
  %v3144 = vpop.f32.mrf.mxu0
  %v3145 = vadd.f32 %v567, %v3144
  %3146 = vmatmul.f32.gmra.mxu0 %v1591
  %v3147 = vpop.f32.mrf.mxu0
  %v3148 = vadd.f32 %v567, %v3147
  %3149 = vmatmul.f32.gmra.mxu0 %v1594
  %v3150 = vpop.f32.mrf.mxu0
  %v3151 = vadd.f32 %v567, %v3150
  %3152 = vmatmul.f32.gmra.mxu0 %v1597
  %v3153 = vpop.f32.mrf.mxu0
  %v3154 = vadd.f32 %v567, %v3153
  %3155 = vmatmul.f32.gmra.mxu0 %v1600
  %v3156 = vpop.f32.mrf.mxu0
  %v3157 = vadd.f32 %v567, %v3156
  %3158 = vmatmul.f32.gmra.mxu0 %v1603
  %v3159 = vpop.f32.mrf.mxu0
  %v3160 = vadd.f32 %v567, %v3159
  %3161 = vmatmul.f32.gmra.mxu0 %v1606
  %v3162 = vpop.f32.mrf.mxu0
  %v3163 = vadd.f32 %v567, %v3162
  %3164 = vmatmul.f32.gmra.mxu0 %v1609
  %v3165 = vpop.f32.mrf.mxu0
  %v3166 = vadd.f32 %v567, %v3165
  %3167 = vmatmul.f32.gmra.mxu0 %v1612
  %v3168 = vpop.f32.mrf.mxu0
  %v3169 = vadd.f32 %v567, %v3168
  %3170 = vmatmul.f32.gmra.mxu0 %v1615
  %v3171 = vpop.f32.mrf.mxu0
  %v3172 = vadd.f32 %v567, %v3171
  %3173 = vmatmul.f32.gmra.mxu0 %v1618
  %v3174 = vpop.f32.mrf.mxu0
  %v3175 = vadd.f32 %v567, %v3174
  %3176 = vmatmul.f32.gmra.mxu0 %v1621
  %v3177 = vpop.f32.mrf.mxu0
  %v3178 = vadd.f32 %v567, %v3177
  %3179 = vmatmul.f32.gmra.mxu0 %v1624
  %v3180 = vpop.f32.mrf.mxu0
  %v3181 = vadd.f32 %v567, %v3180
  %3182 = vmatmul.f32.gmra.mxu0 %v1627
  %v3183 = vpop.f32.mrf.mxu0
  %v3184 = vadd.f32 %v567, %v3183
  %3185 = vmatmul.f32.gmra.mxu0 %v1630
  %v3186 = vpop.f32.mrf.mxu0
  %v3187 = vadd.f32 %v567, %v3186
  %3188 = vmatmul.f32.gmra.mxu0 %v1633
  %v3189 = vpop.f32.mrf.mxu0
  %v3190 = vadd.f32 %v567, %v3189
  %3191 = vmatmul.f32.gmra.mxu0 %v1636
  %v3192 = vpop.f32.mrf.mxu0
  %v3193 = vadd.f32 %v567, %v3192
  %3194 = vmatmul.f32.gmra.mxu0 %v1639
  %v3195 = vpop.f32.mrf.mxu0
  %v3196 = vadd.f32 %v567, %v3195
  %3197 = vmatmul.f32.gmra.mxu0 %v1642
  %v3198 = vpop.f32.mrf.mxu0
  %v3199 = vadd.f32 %v567, %v3198
  %3200 = vmatmul.f32.gmra.mxu0 %v1645
  %v3201 = vpop.f32.mrf.mxu0
  %v3202 = vadd.f32 %v567, %v3201
  %3203 = vmatmul.f32.gmra.mxu0 %v1648
  %v3204 = vpop.f32.mrf.mxu0
  %v3205 = vadd.f32 %v567, %v3204
  %3206 = vmatmul.f32.gmra.mxu0 %v1651
  %v3207 = vpop.f32.mrf.mxu0
  %v3208 = vadd.f32 %v567, %v3207
  %3209 = vmatmul.f32.gmra.mxu0 %v1654
  %v3210 = vpop.f32.mrf.mxu0
  %v3211 = vadd.f32 %v567, %v3210
  %3212 = vmatmul.f32.gmra.mxu0 %v1657
  %v3213 = vpop.f32.mrf.mxu0
  %v3214 = vadd.f32 %v567, %v3213
  %3215 = vmatmul.f32.gmra.mxu0 %v1660
  %v3216 = vpop.f32.mrf.mxu0
  %v3217 = vadd.f32 %v567, %v3216
  %3218 = vmatmul.f32.gmra.mxu0 %v1663
  %v3219 = vpop.f32.mrf.mxu0
  %v3220 = vadd.f32 %v567, %v3219
  %3221 = vmatmul.f32.gmra.mxu0 %v1666
  %v3222 = vpop.f32.mrf.mxu0
  %v3223 = vadd.f32 %v567, %v3222
  %3224 = vmatmul.f32.gmra.mxu0 %v1669
  %v3225 = vpop.f32.mrf.mxu0
  %v3226 = vadd.f32 %v567, %v3225
  %3227 = vmatmul.f32.gmra.mxu0 %v1672
  %v3228 = vpop.f32.mrf.mxu0
  %v3229 = vadd.f32 %v567, %v3228
  %3230 = vmatmul.f32.gmra.mxu0 %v1675
  %v3231 = vpop.f32.mrf.mxu0
  %v3232 = vadd.f32 %v567, %v3231
  %3233 = vmatmul.f32.gmra.mxu0 %v1678
  %v3234 = vpop.f32.mrf.mxu0
  %v3235 = vadd.f32 %v567, %v3234
  %3236 = vmatmul.f32.gmra.mxu0 %v1681
  %v3237 = vpop.f32.mrf.mxu0
  %v3238 = vadd.f32 %v567, %v3237
  %3239 = vmatmul.f32.gmra.mxu0 %v1684
  %v3240 = vpop.f32.mrf.mxu0
  %v3241 = vadd.f32 %v567, %v3240
  %3242 = vmatmul.f32.gmra.mxu0 %v1687
  %v3243 = vpop.f32.mrf.mxu0
  %v3244 = vadd.f32 %v567, %v3243
  %3245 = vmatmul.f32.gmra.mxu0 %v1690
  %v3246 = vpop.f32.mrf.mxu0
  %v3247 = vadd.f32 %v567, %v3246
  %3248 = vmatmul.f32.gmra.mxu0 %v1693
  %v3249 = vpop.f32.mrf.mxu0
  %v3250 = vadd.f32 %v567, %v3249
  %3251 = vmatmul.f32.gmra.mxu0 %v1696
  %v3252 = vpop.f32.mrf.mxu0
  %v3253 = vadd.f32 %v567, %v3252
  %3254 = vmatmul.f32.gmra.mxu0 %v1699
  %v3255 = vpop.f32.mrf.mxu0
  %v3256 = vadd.f32 %v567, %v3255
  %3257 = vmatmul.f32.gmra.mxu0 %v1702
  %v3258 = vpop.f32.mrf.mxu0
  %v3259 = vadd.f32 %v567, %v3258
  %3260 = vmatmul.f32.gmra.mxu0 %v1705
  %v3261 = vpop.f32.mrf.mxu0
  %v3262 = vadd.f32 %v567, %v3261
  %3263 = vmatmul.f32.gmra.mxu0 %v1708
  %v3264 = vpop.f32.mrf.mxu0
  %v3265 = vadd.f32 %v567, %v3264
  %3266 = vmatmul.f32.gmra.mxu0 %v1711
  %v3267 = vpop.f32.mrf.mxu0
  %v3268 = vadd.f32 %v567, %v3267
  %3269 = vmatmul.f32.gmra.mxu0 %v1714
  %v3270 = vpop.f32.mrf.mxu0
  %v3271 = vadd.f32 %v567, %v3270
  %3272 = vmatmul.f32.gmra.mxu0 %v1717
  %v3273 = vpop.f32.mrf.mxu0
  %v3274 = vadd.f32 %v567, %v3273
  %3275 = vmatmul.f32.gmra.mxu0 %v1720
  %v3276 = vpop.f32.mrf.mxu0
  %v3277 = vadd.f32 %v567, %v3276
  %3278 = vmatmul.f32.gmra.mxu0 %v1723
  %v3279 = vpop.f32.mrf.mxu0
  %v3280 = vadd.f32 %v567, %v3279
  %3281 = vmatmul.f32.gmra.mxu0 %v1726
  %v3282 = vpop.f32.mrf.mxu0
  %v3283 = vadd.f32 %v567, %v3282
  %3284 = vmatmul.f32.gmra.mxu0 %v1729
  %v3285 = vpop.f32.mrf.mxu0
  %v3286 = vadd.f32 %v567, %v3285
  %3287 = vmatmul.f32.gmra.mxu0 %v1732
  %v3288 = vpop.f32.mrf.mxu0
  %v3289 = vadd.f32 %v567, %v3288
  %3290 = vmatmul.f32.gmra.mxu0 %v1735
  %v3291 = vpop.f32.mrf.mxu0
  %v3292 = vadd.f32 %v567, %v3291
  %3293 = vmatmul.f32.gmra.mxu0 %v1738
  %v3294 = vpop.f32.mrf.mxu0
  %v3295 = vadd.f32 %v567, %v3294
  %3296 = vmatmul.f32.gmra.mxu0 %v1741
  %v3297 = vpop.f32.mrf.mxu0
  %v3298 = vadd.f32 %v567, %v3297
  %3299 = vmatmul.f32.gmra.mxu0 %v1744
  %v3300 = vpop.f32.mrf.mxu0
  %v3301 = vadd.f32 %v567, %v3300
  %3302 = vmatmul.f32.gmra.mxu0 %v1747
  %v3303 = vpop.f32.mrf.mxu0
  %v3304 = vadd.f32 %v567, %v3303
  %3305 = vmatmul.f32.gmra.mxu0 %v1750
  %v3306 = vpop.f32.mrf.mxu0
  %v3307 = vadd.f32 %v567, %v3306
  %3308 = vmatmul.f32.gmra.mxu0 %v1753
  %v3309 = vpop.f32.mrf.mxu0
  %v3310 = vadd.f32 %v567, %v3309
  %3311 = vmatmul.f32.gmra.mxu0 %v1756
  %v3312 = vpop.f32.mrf.mxu0
  %v3313 = vadd.f32 %v567, %v3312
  %3314 = vmatmul.f32.gmra.mxu0 %v1759
  %v3315 = vpop.f32.mrf.mxu0
  %v3316 = vadd.f32 %v567, %v3315
  %3317 = vmatmul.f32.gmra.mxu0 %v1762
  %v3318 = vpop.f32.mrf.mxu0
  %v3319 = vadd.f32 %v567, %v3318
  %3320 = vmatmul.f32.gmra.mxu0 %v1765
  %v3321 = vpop.f32.mrf.mxu0
  %v3322 = vadd.f32 %v567, %v3321
  %3323 = vmatmul.f32.gmra.mxu0 %v1768
  %v3324 = vpop.f32.mrf.mxu0
  %v3325 = vadd.f32 %v567, %v3324
  %3326 = vmatmul.f32.gmra.mxu0 %v1771
  %v3327 = vpop.f32.mrf.mxu0
  %v3328 = vadd.f32 %v567, %v3327
  %3329 = vmatmul.f32.gmra.mxu0 %v1774
  %v3330 = vpop.f32.mrf.mxu0
  %v3331 = vadd.f32 %v567, %v3330
  %3332 = vmatmul.f32.gmra.mxu0 %v1777
  %v3333 = vpop.f32.mrf.mxu0
  %v3334 = vadd.f32 %v567, %v3333
  %3335 = vmatmul.f32.gmra.mxu0 %v1780
  %v3336 = vpop.f32.mrf.mxu0
  %v3337 = vadd.f32 %v567, %v3336
  %3338 = vmatmul.f32.gmra.mxu0 %v1783
  %v3339 = vpop.f32.mrf.mxu0
  %v3340 = vadd.f32 %v567, %v3339
  %3341 = vmatmul.f32.gmra.mxu0 %v1786
  %v3342 = vpop.f32.mrf.mxu0
  %v3343 = vadd.f32 %v567, %v3342
  %3344 = vmatmul.f32.gmra.mxu0 %v1789
  %v3345 = vpop.f32.mrf.mxu0
  %v3346 = vadd.f32 %v567, %v3345
  %3347 = vmatmul.f32.gmra.mxu0 %v1792
  %v3348 = vpop.f32.mrf.mxu0
  %v3349 = vadd.f32 %v567, %v3348
  %3350 = vmatmul.f32.gmra.mxu0 %v1795
  %v3351 = vpop.f32.mrf.mxu0
  %v3352 = vadd.f32 %v567, %v3351
  %3353 = vmatmul.f32.gmra.mxu0 %v1798
  %v3354 = vpop.f32.mrf.mxu0
  %v3355 = vadd.f32 %v567, %v3354
  %3356 = vmatmul.f32.gmra.mxu0 %v1801
  %v3357 = vpop.f32.mrf.mxu0
  %v3358 = vadd.f32 %v567, %v3357
  %3359 = vmatmul.f32.gmra.mxu0 %v1804
  %v3360 = vpop.f32.mrf.mxu0
  %v3361 = vadd.f32 %v567, %v3360
  %3362 = vmatmul.f32.gmra.mxu0 %v1807
  %v3363 = vpop.f32.mrf.mxu0
  %v3364 = vadd.f32 %v567, %v3363
  %3365 = vmatmul.f32.gmra.mxu0 %v1810
  %v3366 = vpop.f32.mrf.mxu0
  %v3367 = vadd.f32 %v567, %v3366
  %3368 = vmatmul.f32.gmra.mxu0 %v1813
  %v3369 = vpop.f32.mrf.mxu0
  %v3370 = vadd.f32 %v567, %v3369
  %3371 = vmatmul.f32.gmra.mxu0 %v1816
  %v3372 = vpop.f32.mrf.mxu0
  %v3373 = vadd.f32 %v567, %v3372
  %3374 = vmatmul.f32.gmra.mxu0 %v1819
  %v3375 = vpop.f32.mrf.mxu0
  %v3376 = vadd.f32 %v567, %v3375
  %3377 = vmatmul.f32.gmra.mxu0 %v1822
  %v3378 = vpop.f32.mrf.mxu0
  %v3379 = vadd.f32 %v567, %v3378
  %3380 = vmatmul.f32.gmra.mxu0 %v1825
  %v3381 = vpop.f32.mrf.mxu0
  %v3382 = vadd.f32 %v567, %v3381
  %3383 = vmatmul.f32.gmra.mxu0 %v1828
  %v3384 = vpop.f32.mrf.mxu0
  %v3385 = vadd.f32 %v567, %v3384
  %3386 = vmatmul.f32.gmra.mxu0 %v1831
  %v3387 = vpop.f32.mrf.mxu0
  %v3388 = vadd.f32 %v567, %v3387
  %3389 = vmatmul.f32.gmra.mxu0 %v1834
  %v3390 = vpop.f32.mrf.mxu0
  %v3391 = vadd.f32 %v567, %v3390
  %3392 = vmatmul.f32.gmra.mxu0 %v1837
  %v3393 = vpop.f32.mrf.mxu0
  %v3394 = vadd.f32 %v567, %v3393
  %3395 = vmatmul.f32.gmra.mxu0 %v1840
  %v3396 = vpop.f32.mrf.mxu0
  %v3397 = vadd.f32 %v567, %v3396
  %3398 = vmatmul.f32.gmra.mxu0 %v1843
  %v3399 = vpop.f32.mrf.mxu0
  %v3400 = vadd.f32 %v567, %v3399
  %3401 = vmatmul.f32.gmra.mxu0 %v1846
  %v3402 = vpop.f32.mrf.mxu0
  %v3403 = vadd.f32 %v567, %v3402
  %3404 = vmatmul.f32.gmra.mxu0 %v1849
  %v3405 = vpop.f32.mrf.mxu0
  %v3406 = vadd.f32 %v567, %v3405
  %3407 = vmatmul.f32.gmra.mxu0 %v1852
  %v3408 = vpop.f32.mrf.mxu0
  %v3409 = vadd.f32 %v567, %v3408
  %3410 = vmatmul.f32.gmra.mxu0 %v1855
  %v3411 = vpop.f32.mrf.mxu0
  %v3412 = vadd.f32 %v567, %v3411
  %3413 = vmatmul.f32.gmra.mxu0 %v1858
  %v3414 = vpop.f32.mrf.mxu0
  %v3415 = vadd.f32 %v567, %v3414
  %3416 = vmatmul.f32.gmra.mxu0 %v1861
  %v3417 = vpop.f32.mrf.mxu0
  %v3418 = vadd.f32 %v567, %v3417
  %3419 = vmatmul.f32.gmra.mxu0 %v1864
  %v3420 = vpop.f32.mrf.mxu0
  %v3421 = vadd.f32 %v567, %v3420
  %3422 = vmatmul.f32.gmra.mxu0 %v1867
  %v3423 = vpop.f32.mrf.mxu0
  %v3424 = vadd.f32 %v567, %v3423
  %3425 = vmatmul.f32.gmra.mxu0 %v1870
  %v3426 = vpop.f32.mrf.mxu0
  %v3427 = vadd.f32 %v567, %v3426
  %3428 = vmatmul.f32.gmra.mxu0 %v1873
  %v3429 = vpop.f32.mrf.mxu0
  %v3430 = vadd.f32 %v567, %v3429
  %3431 = vmatmul.f32.gmra.mxu0 %v1876
  %v3432 = vpop.f32.mrf.mxu0
  %v3433 = vadd.f32 %v567, %v3432
  %3434 = vmatmul.f32.gmra.mxu0 %v1879
  %v3435 = vpop.f32.mrf.mxu0
  %v3436 = vadd.f32 %v567, %v3435
  %3437 = vmatmul.f32.gmra.mxu0 %v1882
  %v3438 = vpop.f32.mrf.mxu0
  %v3439 = vadd.f32 %v567, %v3438
  %3440 = vmatmul.f32.gmra.mxu0 %v1885
  %v3441 = vpop.f32.mrf.mxu0
  %v3442 = vadd.f32 %v567, %v3441
  %3443 = vmatmul.f32.gmra.mxu0 %v1888
  %v3444 = vpop.f32.mrf.mxu0
  %v3445 = vadd.f32 %v567, %v3444
  %3446 = vmatmul.f32.gmra.mxu0 %v1891
  %v3447 = vpop.f32.mrf.mxu0
  %v3448 = vadd.f32 %v567, %v3447
  %3449 = vmatmul.f32.gmra.mxu0 %v1894
  %v3450 = vpop.f32.mrf.mxu0
  %v3451 = vadd.f32 %v567, %v3450
  %3452 = vmatmul.f32.gmra.mxu0 %v1897
  %v3453 = vpop.f32.mrf.mxu0
  %v3454 = vadd.f32 %v567, %v3453
  %3455 = vmatmul.f32.gmra.mxu0 %v1900
  %v3456 = vpop.f32.mrf.mxu0
  %v3457 = vadd.f32 %v567, %v3456
  %3458 = vmatmul.f32.gmra.mxu0 %v1903
  %v3459 = vpop.f32.mrf.mxu0
  %v3460 = vadd.f32 %v567, %v3459
  %3461 = vmatmul.f32.gmra.mxu0 %v1906
  %v3462 = vpop.f32.mrf.mxu0
  %v3463 = vadd.f32 %v567, %v3462
  %3464 = vmatmul.f32.gmra.mxu0 %v1909
  %v3465 = vpop.f32.mrf.mxu0
  %v3466 = vadd.f32 %v567, %v3465
  %3467 = vmatmul.f32.gmra.mxu0 %v1912
  %v3468 = vpop.f32.mrf.mxu0
  %v3469 = vadd.f32 %v567, %v3468
  %3470 = vmatmul.f32.gmra.mxu0 %v1915
  %v3471 = vpop.f32.mrf.mxu0
  %v3472 = vadd.f32 %v567, %v3471
  %3473 = vmatmul.f32.gmra.mxu0 %v1918
  %v3474 = vpop.f32.mrf.mxu0
  %v3475 = vadd.f32 %v567, %v3474
  %3476 = vmatmul.f32.gmra.mxu0 %v1921
  %v3477 = vpop.f32.mrf.mxu0
  %v3478 = vadd.f32 %v567, %v3477
  %3479 = vmatmul.f32.gmra.mxu0 %v1924
  %v3480 = vpop.f32.mrf.mxu0
  %v3481 = vadd.f32 %v567, %v3480
  %3482 = vmatmul.f32.gmra.mxu0 %v1927
  %v3483 = vpop.f32.mrf.mxu0
  %v3484 = vadd.f32 %v567, %v3483
  %3485 = vmatmul.f32.gmra.mxu0 %v1930
  %v3486 = vpop.f32.mrf.mxu0
  %v3487 = vadd.f32 %v567, %v3486
  %3488 = vmatmul.f32.gmra.mxu0 %v1933
  %v3489 = vpop.f32.mrf.mxu0
  %v3490 = vadd.f32 %v567, %v3489
  %3491 = vmatmul.f32.gmra.mxu0 %v1936
  %v3492 = vpop.f32.mrf.mxu0
  %v3493 = vadd.f32 %v567, %v3492
  %3494 = vmatmul.f32.gmra.mxu0 %v1939
  %v3495 = vpop.f32.mrf.mxu0
  %v3496 = vadd.f32 %v567, %v3495
  %3497 = vmatmul.f32.gmra.mxu0 %v1942
  %v3498 = vpop.f32.mrf.mxu0
  %v3499 = vadd.f32 %v567, %v3498
  %3500 = vmatmul.f32.gmra.mxu0 %v1945
  %v3501 = vpop.f32.mrf.mxu0
  %v3502 = vadd.f32 %v567, %v3501
  %3503 = vmatmul.f32.gmra.mxu0 %v1948
  %v3504 = vpop.f32.mrf.mxu0
  %v3505 = vadd.f32 %v567, %v3504
  %3506 = vmatmul.f32.gmra.mxu0 %v1951
  %v3507 = vpop.f32.mrf.mxu0
  %v3508 = vadd.f32 %v567, %v3507
  %3509 = vmatmul.f32.gmra.mxu0 %v1954
  %v3510 = vpop.f32.mrf.mxu0
  %v3511 = vadd.f32 %v567, %v3510
  %3512 = vmatmul.f32.gmra.mxu0 %v1957
  %v3513 = vpop.f32.mrf.mxu0
  %v3514 = vadd.f32 %v567, %v3513
  %3515 = vmatmul.f32.gmra.mxu0 %v1960
  %v3516 = vpop.f32.mrf.mxu0
  %v3517 = vadd.f32 %v567, %v3516
  %3518 = vmatmul.f32.gmra.mxu0 %v1963
  %v3519 = vpop.f32.mrf.mxu0
  %v3520 = vadd.f32 %v567, %v3519
  %3521 = vmatmul.f32.gmra.mxu0 %v1966
  %v3522 = vpop.f32.mrf.mxu0
  %v3523 = vadd.f32 %v567, %v3522
  %3524 = vmatmul.f32.gmra.mxu0 %v1969
  %v3525 = vpop.f32.mrf.mxu0
  %v3526 = vadd.f32 %v567, %v3525
  %3527 = vmatmul.f32.gmra.mxu0 %v1972
  %v3528 = vpop.f32.mrf.mxu0
  %v3529 = vadd.f32 %v567, %v3528
  %3530 = vmatmul.f32.gmra.mxu0 %v1975
  %v3531 = vpop.f32.mrf.mxu0
  %v3532 = vadd.f32 %v567, %v3531
  %3533 = vmatmul.f32.gmra.mxu0 %v1978
  %v3534 = vpop.f32.mrf.mxu0
  %v3535 = vadd.f32 %v567, %v3534
  %3536 = vmatmul.f32.gmra.mxu0 %v1981
  %v3537 = vpop.f32.mrf.mxu0
  %v3538 = vadd.f32 %v567, %v3537
  %3539 = vmatmul.f32.gmra.mxu0 %v1984
  %v3540 = vpop.f32.mrf.mxu0
  %v3541 = vadd.f32 %v567, %v3540
  %3542 = vmatmul.f32.gmra.mxu0 %v1987
  %v3543 = vpop.f32.mrf.mxu0
  %v3544 = vadd.f32 %v567, %v3543
  %3545 = vmatmul.f32.gmra.mxu0 %v1990
  %v3546 = vpop.f32.mrf.mxu0
  %v3547 = vadd.f32 %v567, %v3546
  %3548 = vmatmul.f32.gmra.mxu0 %v1993
  %v3549 = vpop.f32.mrf.mxu0
  %v3550 = vadd.f32 %v567, %v3549
  %3551 = vmatmul.f32.gmra.mxu0 %v1996
  %v3552 = vpop.f32.mrf.mxu0
  %v3553 = vadd.f32 %v567, %v3552
  %3554 = vmatmul.f32.gmra.mxu0 %v1999
  %v3555 = vpop.f32.mrf.mxu0
  %v3556 = vadd.f32 %v567, %v3555
  %3557 = vmatmul.f32.gmra.mxu0 %v2002
  %v3558 = vpop.f32.mrf.mxu0
  %v3559 = vadd.f32 %v567, %v3558
  %3560 = vmatmul.f32.gmra.mxu0 %v2005
  %v3561 = vpop.f32.mrf.mxu0
  %v3562 = vadd.f32 %v567, %v3561
  %3563 = vmatmul.f32.gmra.mxu0 %v2008
  %v3564 = vpop.f32.mrf.mxu0
  %v3565 = vadd.f32 %v567, %v3564
  %3566 = vmatmul.f32.gmra.mxu0 %v2011
  %v3567 = vpop.f32.mrf.mxu0
  %v3568 = vadd.f32 %v567, %v3567
  %3569 = vmatmul.f32.gmra.mxu0 %v2014
  %v3570 = vpop.f32.mrf.mxu0
  %v3571 = vadd.f32 %v567, %v3570
  %3572 = vmatmul.f32.gmra.mxu0 %v2017
  %v3573 = vpop.f32.mrf.mxu0
  %v3574 = vadd.f32 %v567, %v3573
  %3575 = vmatmul.f32.gmra.mxu0 %v2020
  %v3576 = vpop.f32.mrf.mxu0
  %v3577 = vadd.f32 %v567, %v3576
  %3578 = vmatmul.f32.gmra.mxu0 %v2023
  %v3579 = vpop.f32.mrf.mxu0
  %v3580 = vadd.f32 %v567, %v3579
  %3581 = vmatmul.f32.gmra.mxu0 %v2026
  %v3582 = vpop.f32.mrf.mxu0
  %v3583 = vadd.f32 %v567, %v3582
  %3584 = vmatmul.f32.gmra.mxu0 %v2029
  %v3585 = vpop.f32.mrf.mxu0
  %v3586 = vadd.f32 %v567, %v3585
  %3587 = vmatmul.f32.gmra.mxu0 %v2032
  %v3588 = vpop.f32.mrf.mxu0
  %v3589 = vadd.f32 %v567, %v3588
  %3590 = vmatmul.f32.gmra.mxu0 %v2035
  %v3591 = vpop.f32.mrf.mxu0
  %v3592 = vadd.f32 %v567, %v3591
  %3593 = vmatmul.f32.gmra.mxu0 %v2038
  %v3594 = vpop.f32.mrf.mxu0
  %v3595 = vadd.f32 %v567, %v3594
  %3596 = vmatmul.f32.gmra.mxu0 %v2041
  %v3597 = vpop.f32.mrf.mxu0
  %v3598 = vadd.f32 %v567, %v3597
  %3599 = vmatmul.f32.gmra.mxu0 %v2044
  %v3600 = vpop.f32.mrf.mxu0
  %v3601 = vadd.f32 %v567, %v3600
  %3602 = vmatmul.f32.gmra.mxu0 %v2047
  %v3603 = vpop.f32.mrf.mxu0
  %v3604 = vadd.f32 %v567, %v3603
  %3605 = vmatmul.f32.gmra.mxu0 %v2050
  %v3606 = vpop.f32.mrf.mxu0
  %v3607 = vadd.f32 %v567, %v3606
  %3608 = vmatmul.f32.gmra.mxu0 %v2053
  %v3609 = vpop.f32.mrf.mxu0
  %v3610 = vadd.f32 %v567, %v3609
  %3611 = vmatmul.f32.gmra.mxu0 %v2056
  %v3612 = vpop.f32.mrf.mxu0
  %v3613 = vadd.f32 %v567, %v3612
  %3614 = vmatmul.f32.gmra.mxu0 %v2059
  %v3615 = vpop.f32.mrf.mxu0
  %v3616 = vadd.f32 %v567, %v3615
  %3617 = vmatmul.f32.gmra.mxu0 %v2062
  %v3618 = vpop.f32.mrf.mxu0
  %v3619 = vadd.f32 %v567, %v3618
  %3620 = vmatmul.f32.gmra.mxu0 %v2065
  %v3621 = vpop.f32.mrf.mxu0
  %v3622 = vadd.f32 %v567, %v3621
  %3623 = vmatmul.f32.gmra.mxu0 %v2068
  %v3624 = vpop.f32.mrf.mxu0
  %v3625 = vadd.f32 %v567, %v3624
  %3626 = vmatmul.f32.gmra.mxu0 %v2071
  %v3627 = vpop.f32.mrf.mxu0
  %v3628 = vadd.f32 %v567, %v3627
  %3629 = vmatmul.f32.gmra.mxu0 %v2074
  %v3630 = vpop.f32.mrf.mxu0
  %v3631 = vadd.f32 %v567, %v3630
  %3632 = vmatmul.f32.gmra.mxu0 %v2077
  %v3633 = vpop.f32.mrf.mxu0
  %v3634 = vadd.f32 %v567, %v3633
  %3635 = vmatmul.f32.gmra.mxu0 %v2080
  %v3636 = vpop.f32.mrf.mxu0
  %v3637 = vadd.f32 %v567, %v3636
  %3638 = vmatmul.f32.gmra.mxu0 %v2083
  %v3639 = vpop.f32.mrf.mxu0
  %v3640 = vadd.f32 %v567, %v3639
  %3641 = vmatmul.f32.gmra.mxu0 %v2086
  %v3642 = vpop.f32.mrf.mxu0
  %v3643 = vadd.f32 %v567, %v3642
  %3644 = vmatmul.f32.gmra.mxu0 %v2089
  %v3645 = vpop.f32.mrf.mxu0
  %v3646 = vadd.f32 %v567, %v3645
  %3647 = vmatmul.f32.gmra.mxu0 %v2092
  %v3648 = vpop.f32.mrf.mxu0
  %v3649 = vadd.f32 %v567, %v3648
  %3650 = vmatmul.f32.gmra.mxu0 %v2095
  %v3651 = vpop.f32.mrf.mxu0
  %v3652 = vadd.f32 %v567, %v3651
  %3653 = vmatmul.f32.gmra.mxu0 %v2098
  %v3654 = vpop.f32.mrf.mxu0
  %v3655 = vadd.f32 %v567, %v3654
  %3656 = vmatmul.f32.gmra.mxu0 %v2101
  %v3657 = vpop.f32.mrf.mxu0
  %v3658 = vadd.f32 %v567, %v3657
  %3659 = vmatmul.f32.gmra.mxu0 %v2104
  %v3660 = vpop.f32.mrf.mxu0
  %v3661 = vadd.f32 %v567, %v3660
  %3662 = vdwg.mxu0
  %v3663 = vmax.f32 %v2128, 0.0
  %v3664 = vmax.f32 %v2131, 0.0
  %v3665 = vmax.f32 %v2134, 0.0
  %v3666 = vmax.f32 %v2137, 0.0
  %v3667 = vmax.f32 %v2140, 0.0
  %v3668 = vmax.f32 %v2143, 0.0
  %v3669 = vmax.f32 %v2146, 0.0
  %v3670 = vmax.f32 %v2149, 0.0
  %v3671 = vmax.f32 %v2152, 0.0
  %v3672 = vmax.f32 %v2155, 0.0
  %v3673 = vmax.f32 %v2158, 0.0
  %v3674 = vmax.f32 %v2161, 0.0
  %v3675 = vmax.f32 %v2164, 0.0
  %v3676 = vmax.f32 %v2167, 0.0
  %v3677 = vmax.f32 %v2170, 0.0
  %v3678 = vmax.f32 %v2173, 0.0
  %v3679 = vmax.f32 %v2176, 0.0
  %v3680 = vmax.f32 %v2179, 0.0
  %v3681 = vmax.f32 %v2182, 0.0
  %v3682 = vmax.f32 %v2185, 0.0
  %v3683 = vmax.f32 %v2188, 0.0
  %v3684 = vmax.f32 %v2191, 0.0
  %v3685 = vmax.f32 %v2194, 0.0
  %v3686 = vmax.f32 %v2197, 0.0
  %v3687 = vmax.f32 %v2200, 0.0
  %v3688 = vmax.f32 %v2203, 0.0
  %v3689 = vmax.f32 %v2206, 0.0
  %v3690 = vmax.f32 %v2209, 0.0
  %v3691 = vmax.f32 %v2212, 0.0
  %v3692 = vmax.f32 %v2215, 0.0
  %v3693 = vmax.f32 %v2218, 0.0
  %v3694 = vmax.f32 %v2221, 0.0
  %v3695 = vmax.f32 %v2224, 0.0
  %v3696 = vmax.f32 %v2227, 0.0
  %v3697 = vmax.f32 %v2230, 0.0
  %v3698 = vmax.f32 %v2233, 0.0
  %v3699 = vmax.f32 %v2236, 0.0
  %v3700 = vmax.f32 %v2239, 0.0
  %v3701 = vmax.f32 %v2242, 0.0
  %v3702 = vmax.f32 %v2245, 0.0
  %v3703 = vmax.f32 %v2248, 0.0
  %v3704 = vmax.f32 %v2251, 0.0
  %v3705 = vmax.f32 %v2254, 0.0
  %v3706 = vmax.f32 %v2257, 0.0
  %v3707 = vmax.f32 %v2260, 0.0
  %v3708 = vmax.f32 %v2263, 0.0
  %v3709 = vmax.f32 %v2266, 0.0
  %v3710 = vmax.f32 %v2269, 0.0
  %v3711 = vmax.f32 %v2272, 0.0
  %v3712 = vmax.f32 %v2275, 0.0
  %v3713 = vmax.f32 %v2278, 0.0
  %v3714 = vmax.f32 %v2281, 0.0
  %v3715 = vmax.f32 %v2284, 0.0
  %v3716 = vmax.f32 %v2287, 0.0
  %v3717 = vmax.f32 %v2290, 0.0
  %v3718 = vmax.f32 %v2293, 0.0
  %v3719 = vmax.f32 %v2296, 0.0
  %v3720 = vmax.f32 %v2299, 0.0
  %v3721 = vmax.f32 %v2302, 0.0
  %v3722 = vmax.f32 %v2305, 0.0
  %v3723 = vmax.f32 %v2308, 0.0
  %v3724 = vmax.f32 %v2311, 0.0
  %v3725 = vmax.f32 %v2314, 0.0
  %v3726 = vmax.f32 %v2317, 0.0
  %v3727 = vmax.f32 %v2320, 0.0
  %v3728 = vmax.f32 %v2323, 0.0
  %v3729 = vmax.f32 %v2326, 0.0
  %v3730 = vmax.f32 %v2329, 0.0
  %v3731 = vmax.f32 %v2332, 0.0
  %v3732 = vmax.f32 %v2335, 0.0
  %v3733 = vmax.f32 %v2338, 0.0
  %v3734 = vmax.f32 %v2341, 0.0
  %v3735 = vmax.f32 %v2344, 0.0
  %v3736 = vmax.f32 %v2347, 0.0
  %v3737 = vmax.f32 %v2350, 0.0
  %v3738 = vmax.f32 %v2353, 0.0
  %v3739 = vmax.f32 %v2356, 0.0
  %v3740 = vmax.f32 %v2359, 0.0
  %v3741 = vmax.f32 %v2362, 0.0
  %v3742 = vmax.f32 %v2365, 0.0
  %v3743 = vmax.f32 %v2368, 0.0
  %v3744 = vmax.f32 %v2371, 0.0
  %v3745 = vmax.f32 %v2374, 0.0
  %v3746 = vmax.f32 %v2377, 0.0
  %v3747 = vmax.f32 %v2380, 0.0
  %v3748 = vmax.f32 %v2383, 0.0
  %v3749 = vmax.f32 %v2386, 0.0
  %v3750 = vmax.f32 %v2389, 0.0
  %v3751 = vmax.f32 %v2392, 0.0
  %v3752 = vmax.f32 %v2395, 0.0
  %v3753 = vmax.f32 %v2398, 0.0
  %v3754 = vmax.f32 %v2401, 0.0
  %v3755 = vmax.f32 %v2404, 0.0
  %v3756 = vmax.f32 %v2407, 0.0
  %v3757 = vmax.f32 %v2410, 0.0
  %v3758 = vmax.f32 %v2413, 0.0
  %v3759 = vmax.f32 %v2416, 0.0
  %v3760 = vmax.f32 %v2419, 0.0
  %v3761 = vmax.f32 %v2422, 0.0
  %v3762 = vmax.f32 %v2425, 0.0
  %v3763 = vmax.f32 %v2428, 0.0
  %v3764 = vmax.f32 %v2431, 0.0
  %v3765 = vmax.f32 %v2434, 0.0
  %v3766 = vmax.f32 %v2437, 0.0
  %v3767 = vmax.f32 %v2440, 0.0
  %v3768 = vmax.f32 %v2443, 0.0
  %v3769 = vmax.f32 %v2446, 0.0
  %v3770 = vmax.f32 %v2449, 0.0
  %v3771 = vmax.f32 %v2452, 0.0
  %v3772 = vmax.f32 %v2455, 0.0
  %v3773 = vmax.f32 %v2458, 0.0
  %v3774 = vmax.f32 %v2461, 0.0
  %v3775 = vmax.f32 %v2464, 0.0
  %v3776 = vmax.f32 %v2467, 0.0
  %v3777 = vmax.f32 %v2470, 0.0
  %v3778 = vmax.f32 %v2473, 0.0
  %v3779 = vmax.f32 %v2476, 0.0
  %v3780 = vmax.f32 %v2479, 0.0
  %v3781 = vmax.f32 %v2482, 0.0
  %v3782 = vmax.f32 %v2485, 0.0
  %v3783 = vmax.f32 %v2488, 0.0
  %v3784 = vmax.f32 %v2491, 0.0
  %v3785 = vmax.f32 %v2494, 0.0
  %v3786 = vmax.f32 %v2497, 0.0
  %v3787 = vmax.f32 %v2500, 0.0
  %v3788 = vmax.f32 %v2503, 0.0
  %v3789 = vmax.f32 %v2506, 0.0
  %v3790 = vmax.f32 %v2509, 0.0
  %v3791 = vmax.f32 %v2512, 0.0
  %v3792 = vmax.f32 %v2515, 0.0
  %v3793 = vmax.f32 %v2518, 0.0
  %v3794 = vmax.f32 %v2521, 0.0
  %v3795 = vmax.f32 %v2524, 0.0
  %v3796 = vmax.f32 %v2527, 0.0
  %v3797 = vmax.f32 %v2530, 0.0
  %v3798 = vmax.f32 %v2533, 0.0
  %v3799 = vmax.f32 %v2536, 0.0
  %v3800 = vmax.f32 %v2539, 0.0
  %v3801 = vmax.f32 %v2542, 0.0
  %v3802 = vmax.f32 %v2545, 0.0
  %v3803 = vmax.f32 %v2548, 0.0
  %v3804 = vmax.f32 %v2551, 0.0
  %v3805 = vmax.f32 %v2554, 0.0
  %v3806 = vmax.f32 %v2557, 0.0
  %v3807 = vmax.f32 %v2560, 0.0
  %v3808 = vmax.f32 %v2563, 0.0
  %v3809 = vmax.f32 %v2566, 0.0
  %v3810 = vmax.f32 %v2569, 0.0
  %v3811 = vmax.f32 %v2572, 0.0
  %v3812 = vmax.f32 %v2575, 0.0
  %v3813 = vmax.f32 %v2578, 0.0
  %v3814 = vmax.f32 %v2581, 0.0
  %v3815 = vmax.f32 %v2584, 0.0
  %v3816 = vmax.f32 %v2587, 0.0
  %v3817 = vmax.f32 %v2590, 0.0
  %v3818 = vmax.f32 %v2593, 0.0
  %v3819 = vmax.f32 %v2596, 0.0
  %v3820 = vmax.f32 %v2599, 0.0
  %v3821 = vmax.f32 %v2602, 0.0
  %v3822 = vmax.f32 %v2605, 0.0
  %v3823 = vmax.f32 %v2608, 0.0
  %v3824 = vmax.f32 %v2611, 0.0
  %v3825 = vmax.f32 %v2614, 0.0
  %v3826 = vmax.f32 %v2617, 0.0
  %v3827 = vmax.f32 %v2620, 0.0
  %v3828 = vmax.f32 %v2623, 0.0
  %v3829 = vmax.f32 %v2626, 0.0
  %v3830 = vmax.f32 %v2629, 0.0
  %v3831 = vmax.f32 %v2632, 0.0
  %v3832 = vmax.f32 %v2635, 0.0
  %v3833 = vmax.f32 %v2638, 0.0
  %v3834 = vmax.f32 %v2641, 0.0
  %v3835 = vmax.f32 %v2644, 0.0
  %v3836 = vmax.f32 %v2647, 0.0
  %v3837 = vmax.f32 %v2650, 0.0
  %v3838 = vmax.f32 %v2653, 0.0
  %v3839 = vmax.f32 %v2656, 0.0
  %v3840 = vmax.f32 %v2659, 0.0
  %v3841 = vmax.f32 %v2662, 0.0
  %v3842 = vmax.f32 %v2665, 0.0
  %v3843 = vmax.f32 %v2668, 0.0
  %v3844 = vmax.f32 %v2671, 0.0
  %v3845 = vmax.f32 %v2674, 0.0
  %v3846 = vmax.f32 %v2677, 0.0
  %v3847 = vmax.f32 %v2680, 0.0
  %v3848 = vmax.f32 %v2683, 0.0
  %v3849 = vmax.f32 %v2686, 0.0
  %v3850 = vmax.f32 %v2689, 0.0
  %v3851 = vmax.f32 %v2692, 0.0
  %v3852 = vmax.f32 %v2695, 0.0
  %v3853 = vmax.f32 %v2698, 0.0
  %v3854 = vmax.f32 %v2701, 0.0
  %v3855 = vmax.f32 %v2704, 0.0
  %v3856 = vmax.f32 %v2707, 0.0
  %v3857 = vmax.f32 %v2710, 0.0
  %v3858 = vmax.f32 %v2713, 0.0
  %v3859 = vmax.f32 %v2716, 0.0
  %v3860 = vmax.f32 %v2719, 0.0
  %v3861 = vmax.f32 %v2722, 0.0
  %v3862 = vmax.f32 %v2725, 0.0
  %v3863 = vmax.f32 %v2728, 0.0
  %v3864 = vmax.f32 %v2731, 0.0
  %v3865 = vmax.f32 %v2734, 0.0
  %v3866 = vmax.f32 %v2737, 0.0
  %v3867 = vmax.f32 %v2740, 0.0
  %v3868 = vmax.f32 %v2743, 0.0
  %v3869 = vmax.f32 %v2746, 0.0
  %v3870 = vmax.f32 %v2749, 0.0
  %v3871 = vmax.f32 %v2752, 0.0
  %v3872 = vmax.f32 %v2755, 0.0
  %v3873 = vmax.f32 %v2758, 0.0
  %v3874 = vmax.f32 %v2761, 0.0
  %v3875 = vmax.f32 %v2764, 0.0
  %v3876 = vmax.f32 %v2767, 0.0
  %v3877 = vmax.f32 %v2770, 0.0
  %v3878 = vmax.f32 %v2773, 0.0
  %v3879 = vmax.f32 %v2776, 0.0
  %v3880 = vmax.f32 %v2779, 0.0
  %v3881 = vmax.f32 %v2782, 0.0
  %v3882 = vmax.f32 %v2785, 0.0
  %v3883 = vmax.f32 %v2788, 0.0
  %v3884 = vmax.f32 %v2791, 0.0
  %v3885 = vmax.f32 %v2794, 0.0
  %v3886 = vmax.f32 %v2797, 0.0
  %v3887 = vmax.f32 %v2800, 0.0
  %v3888 = vmax.f32 %v2803, 0.0
  %v3889 = vmax.f32 %v2806, 0.0
  %v3890 = vmax.f32 %v2809, 0.0
  %v3891 = vmax.f32 %v2812, 0.0
  %v3892 = vmax.f32 %v2815, 0.0
  %v3893 = vmax.f32 %v2818, 0.0
  %v3894 = vmax.f32 %v2821, 0.0
  %v3895 = vmax.f32 %v2824, 0.0
  %v3896 = vmax.f32 %v2827, 0.0
  %v3897 = vmax.f32 %v2830, 0.0
  %v3898 = vmax.f32 %v2833, 0.0
  %v3899 = vmax.f32 %v2836, 0.0
  %v3900 = vmax.f32 %v2839, 0.0
  %v3901 = vmax.f32 %v2842, 0.0
  %v3902 = vmax.f32 %v2845, 0.0
  %v3903 = vmax.f32 %v2848, 0.0
  %v3904 = vmax.f32 %v2851, 0.0
  %v3905 = vmax.f32 %v2854, 0.0
  %v3906 = vmax.f32 %v2857, 0.0
  %v3907 = vmax.f32 %v2860, 0.0
  %v3908 = vmax.f32 %v2863, 0.0
  %v3909 = vmax.f32 %v2866, 0.0
  %v3910 = vmax.f32 %v2869, 0.0
  %v3911 = vmax.f32 %v2872, 0.0
  %v3912 = vmax.f32 %v2875, 0.0
  %v3913 = vmax.f32 %v2878, 0.0
  %v3914 = vmax.f32 %v2881, 0.0
  %v3915 = vmax.f32 %v2884, 0.0
  %v3916 = vmax.f32 %v2887, 0.0
  %v3917 = vmax.f32 %v2890, 0.0
  %v3918 = vmax.f32 %v2893, 0.0
  %v3919 = vmax.f32 %v2896, 0.0
  %v3920 = vmax.f32 %v2899, 0.0
  %v3921 = vmax.f32 %v2902, 0.0
  %v3922 = vmax.f32 %v2905, 0.0
  %v3923 = vmax.f32 %v2908, 0.0
  %v3924 = vmax.f32 %v2911, 0.0
  %v3925 = vmax.f32 %v2914, 0.0
  %v3926 = vmax.f32 %v2917, 0.0
  %v3927 = vmax.f32 %v2920, 0.0
  %v3928 = vmax.f32 %v2923, 0.0
  %v3929 = vmax.f32 %v2926, 0.0
  %v3930 = vmax.f32 %v2929, 0.0
  %v3931 = vmax.f32 %v2932, 0.0
  %v3932 = vmax.f32 %v2935, 0.0
  %v3933 = vmax.f32 %v2938, 0.0
  %v3934 = vmax.f32 %v2941, 0.0
  %v3935 = vmax.f32 %v2944, 0.0
  %v3936 = vmax.f32 %v2947, 0.0
  %v3937 = vmax.f32 %v2950, 0.0
  %v3938 = vmax.f32 %v2953, 0.0
  %v3939 = vmax.f32 %v2956, 0.0
  %v3940 = vmax.f32 %v2959, 0.0
  %v3941 = vmax.f32 %v2962, 0.0
  %v3942 = vmax.f32 %v2965, 0.0
  %v3943 = vmax.f32 %v2968, 0.0
  %v3944 = vmax.f32 %v2971, 0.0
  %v3945 = vmax.f32 %v2974, 0.0
  %v3946 = vmax.f32 %v2977, 0.0
  %v3947 = vmax.f32 %v2980, 0.0
  %v3948 = vmax.f32 %v2983, 0.0
  %v3949 = vmax.f32 %v2986, 0.0
  %v3950 = vmax.f32 %v2989, 0.0
  %v3951 = vmax.f32 %v2992, 0.0
  %v3952 = vmax.f32 %v2995, 0.0
  %v3953 = vmax.f32 %v2998, 0.0
  %v3954 = vmax.f32 %v3001, 0.0
  %v3955 = vmax.f32 %v3004, 0.0
  %v3956 = vmax.f32 %v3007, 0.0
  %v3957 = vmax.f32 %v3010, 0.0
  %v3958 = vmax.f32 %v3013, 0.0
  %v3959 = vmax.f32 %v3016, 0.0
  %v3960 = vmax.f32 %v3019, 0.0
  %v3961 = vmax.f32 %v3022, 0.0
  %v3962 = vmax.f32 %v3025, 0.0
  %v3963 = vmax.f32 %v3028, 0.0
  %v3964 = vmax.f32 %v3031, 0.0
  %v3965 = vmax.f32 %v3034, 0.0
  %v3966 = vmax.f32 %v3037, 0.0
  %v3967 = vmax.f32 %v3040, 0.0
  %v3968 = vmax.f32 %v3043, 0.0
  %v3969 = vmax.f32 %v3046, 0.0
  %v3970 = vmax.f32 %v3049, 0.0
  %v3971 = vmax.f32 %v3052, 0.0
  %v3972 = vmax.f32 %v3055, 0.0
  %v3973 = vmax.f32 %v3058, 0.0
  %v3974 = vmax.f32 %v3061, 0.0
  %v3975 = vmax.f32 %v3064, 0.0
  %v3976 = vmax.f32 %v3067, 0.0
  %v3977 = vmax.f32 %v3070, 0.0
  %v3978 = vmax.f32 %v3073, 0.0
  %v3979 = vmax.f32 %v3076, 0.0
  %v3980 = vmax.f32 %v3079, 0.0
  %v3981 = vmax.f32 %v3082, 0.0
  %v3982 = vmax.f32 %v3085, 0.0
  %v3983 = vmax.f32 %v3088, 0.0
  %v3984 = vmax.f32 %v3091, 0.0
  %v3985 = vmax.f32 %v3094, 0.0
  %v3986 = vmax.f32 %v3097, 0.0
  %v3987 = vmax.f32 %v3100, 0.0
  %v3988 = vmax.f32 %v3103, 0.0
  %v3989 = vmax.f32 %v3106, 0.0
  %v3990 = vmax.f32 %v3109, 0.0
  %v3991 = vmax.f32 %v3112, 0.0
  %v3992 = vmax.f32 %v3115, 0.0
  %v3993 = vmax.f32 %v3118, 0.0
  %v3994 = vmax.f32 %v3121, 0.0
  %v3995 = vmax.f32 %v3124, 0.0
  %v3996 = vmax.f32 %v3127, 0.0
  %v3997 = vmax.f32 %v3130, 0.0
  %v3998 = vmax.f32 %v3133, 0.0
  %v3999 = vmax.f32 %v3136, 0.0
  %v4000 = vmax.f32 %v3139, 0.0
  %v4001 = vmax.f32 %v3142, 0.0
  %v4002 = vmax.f32 %v3145, 0.0
  %v4003 = vmax.f32 %v3148, 0.0
  %v4004 = vmax.f32 %v3151, 0.0
  %v4005 = vmax.f32 %v3154, 0.0
  %v4006 = vmax.f32 %v3157, 0.0
  %v4007 = vmax.f32 %v3160, 0.0
  %v4008 = vmax.f32 %v3163, 0.0
  %v4009 = vmax.f32 %v3166, 0.0
  %v4010 = vmax.f32 %v3169, 0.0
  %v4011 = vmax.f32 %v3172, 0.0
  %v4012 = vmax.f32 %v3175, 0.0
  %v4013 = vmax.f32 %v3178, 0.0
  %v4014 = vmax.f32 %v3181, 0.0
  %v4015 = vmax.f32 %v3184, 0.0
  %v4016 = vmax.f32 %v3187, 0.0
  %v4017 = vmax.f32 %v3190, 0.0
  %v4018 = vmax.f32 %v3193, 0.0
  %v4019 = vmax.f32 %v3196, 0.0
  %v4020 = vmax.f32 %v3199, 0.0
  %v4021 = vmax.f32 %v3202, 0.0
  %v4022 = vmax.f32 %v3205, 0.0
  %v4023 = vmax.f32 %v3208, 0.0
  %v4024 = vmax.f32 %v3211, 0.0
  %v4025 = vmax.f32 %v3214, 0.0
  %v4026 = vmax.f32 %v3217, 0.0
  %v4027 = vmax.f32 %v3220, 0.0
  %v4028 = vmax.f32 %v3223, 0.0
  %v4029 = vmax.f32 %v3226, 0.0
  %v4030 = vmax.f32 %v3229, 0.0
  %v4031 = vmax.f32 %v3232, 0.0
  %v4032 = vmax.f32 %v3235, 0.0
  %v4033 = vmax.f32 %v3238, 0.0
  %v4034 = vmax.f32 %v3241, 0.0
  %v4035 = vmax.f32 %v3244, 0.0
  %v4036 = vmax.f32 %v3247, 0.0
  %v4037 = vmax.f32 %v3250, 0.0
  %v4038 = vmax.f32 %v3253, 0.0
  %v4039 = vmax.f32 %v3256, 0.0
  %v4040 = vmax.f32 %v3259, 0.0
  %v4041 = vmax.f32 %v3262, 0.0
  %v4042 = vmax.f32 %v3265, 0.0
  %v4043 = vmax.f32 %v3268, 0.0
  %v4044 = vmax.f32 %v3271, 0.0
  %v4045 = vmax.f32 %v3274, 0.0
  %v4046 = vmax.f32 %v3277, 0.0
  %v4047 = vmax.f32 %v3280, 0.0
  %v4048 = vmax.f32 %v3283, 0.0
  %v4049 = vmax.f32 %v3286, 0.0
  %v4050 = vmax.f32 %v3289, 0.0
  %v4051 = vmax.f32 %v3292, 0.0
  %v4052 = vmax.f32 %v3295, 0.0
  %v4053 = vmax.f32 %v3298, 0.0
  %v4054 = vmax.f32 %v3301, 0.0
  %v4055 = vmax.f32 %v3304, 0.0
  %v4056 = vmax.f32 %v3307, 0.0
  %v4057 = vmax.f32 %v3310, 0.0
  %v4058 = vmax.f32 %v3313, 0.0
  %v4059 = vmax.f32 %v3316, 0.0
  %v4060 = vmax.f32 %v3319, 0.0
  %v4061 = vmax.f32 %v3322, 0.0
  %v4062 = vmax.f32 %v3325, 0.0
  %v4063 = vmax.f32 %v3328, 0.0
  %v4064 = vmax.f32 %v3331, 0.0
  %v4065 = vmax.f32 %v3334, 0.0
  %v4066 = vmax.f32 %v3337, 0.0
  %v4067 = vmax.f32 %v3340, 0.0
  %v4068 = vmax.f32 %v3343, 0.0
  %v4069 = vmax.f32 %v3346, 0.0
  %v4070 = vmax.f32 %v3349, 0.0
  %v4071 = vmax.f32 %v3352, 0.0
  %v4072 = vmax.f32 %v3355, 0.0
  %v4073 = vmax.f32 %v3358, 0.0
  %v4074 = vmax.f32 %v3361, 0.0
  %v4075 = vmax.f32 %v3364, 0.0
  %v4076 = vmax.f32 %v3367, 0.0
  %v4077 = vmax.f32 %v3370, 0.0
  %v4078 = vmax.f32 %v3373, 0.0
  %v4079 = vmax.f32 %v3376, 0.0
  %v4080 = vmax.f32 %v3379, 0.0
  %v4081 = vmax.f32 %v3382, 0.0
  %v4082 = vmax.f32 %v3385, 0.0
  %v4083 = vmax.f32 %v3388, 0.0
  %v4084 = vmax.f32 %v3391, 0.0
  %v4085 = vmax.f32 %v3394, 0.0
  %v4086 = vmax.f32 %v3397, 0.0
  %v4087 = vmax.f32 %v3400, 0.0
  %v4088 = vmax.f32 %v3403, 0.0
  %v4089 = vmax.f32 %v3406, 0.0
  %v4090 = vmax.f32 %v3409, 0.0
  %v4091 = vmax.f32 %v3412, 0.0
  %v4092 = vmax.f32 %v3415, 0.0
  %v4093 = vmax.f32 %v3418, 0.0
  %v4094 = vmax.f32 %v3421, 0.0
  %v4095 = vmax.f32 %v3424, 0.0
  %v4096 = vmax.f32 %v3427, 0.0
  %v4097 = vmax.f32 %v3430, 0.0
  %v4098 = vmax.f32 %v3433, 0.0
  %v4099 = vmax.f32 %v3436, 0.0
  %v4100 = vmax.f32 %v3439, 0.0
  %v4101 = vmax.f32 %v3442, 0.0
  %v4102 = vmax.f32 %v3445, 0.0
  %v4103 = vmax.f32 %v3448, 0.0
  %v4104 = vmax.f32 %v3451, 0.0
  %v4105 = vmax.f32 %v3454, 0.0
  %v4106 = vmax.f32 %v3457, 0.0
  %v4107 = vmax.f32 %v3460, 0.0
  %v4108 = vmax.f32 %v3463, 0.0
  %v4109 = vmax.f32 %v3466, 0.0
  %v4110 = vmax.f32 %v3469, 0.0
  %v4111 = vmax.f32 %v3472, 0.0
  %v4112 = vmax.f32 %v3475, 0.0
  %v4113 = vmax.f32 %v3478, 0.0
  %v4114 = vmax.f32 %v3481, 0.0
  %v4115 = vmax.f32 %v3484, 0.0
  %v4116 = vmax.f32 %v3487, 0.0
  %v4117 = vmax.f32 %v3490, 0.0
  %v4118 = vmax.f32 %v3493, 0.0
  %v4119 = vmax.f32 %v3496, 0.0
  %v4120 = vmax.f32 %v3499, 0.0
  %v4121 = vmax.f32 %v3502, 0.0
  %v4122 = vmax.f32 %v3505, 0.0
  %v4123 = vmax.f32 %v3508, 0.0
  %v4124 = vmax.f32 %v3511, 0.0
  %v4125 = vmax.f32 %v3514, 0.0
  %v4126 = vmax.f32 %v3517, 0.0
  %v4127 = vmax.f32 %v3520, 0.0
  %v4128 = vmax.f32 %v3523, 0.0
  %v4129 = vmax.f32 %v3526, 0.0
  %v4130 = vmax.f32 %v3529, 0.0
  %v4131 = vmax.f32 %v3532, 0.0
  %v4132 = vmax.f32 %v3535, 0.0
  %v4133 = vmax.f32 %v3538, 0.0
  %v4134 = vmax.f32 %v3541, 0.0
  %v4135 = vmax.f32 %v3544, 0.0
  %v4136 = vmax.f32 %v3547, 0.0
  %v4137 = vmax.f32 %v3550, 0.0
  %v4138 = vmax.f32 %v3553, 0.0
  %v4139 = vmax.f32 %v3556, 0.0
  %v4140 = vmax.f32 %v3559, 0.0
  %v4141 = vmax.f32 %v3562, 0.0
  %v4142 = vmax.f32 %v3565, 0.0
  %v4143 = vmax.f32 %v3568, 0.0
  %v4144 = vmax.f32 %v3571, 0.0
  %v4145 = vmax.f32 %v3574, 0.0
  %v4146 = vmax.f32 %v3577, 0.0
  %v4147 = vmax.f32 %v3580, 0.0
  %v4148 = vmax.f32 %v3583, 0.0
  %v4149 = vmax.f32 %v3586, 0.0
  %v4150 = vmax.f32 %v3589, 0.0
  %v4151 = vmax.f32 %v3592, 0.0
  %v4152 = vmax.f32 %v3595, 0.0
  %v4153 = vmax.f32 %v3598, 0.0
  %v4154 = vmax.f32 %v3601, 0.0
  %v4155 = vmax.f32 %v3604, 0.0
  %v4156 = vmax.f32 %v3607, 0.0
  %v4157 = vmax.f32 %v3610, 0.0
  %v4158 = vmax.f32 %v3613, 0.0
  %v4159 = vmax.f32 %v3616, 0.0
  %v4160 = vmax.f32 %v3619, 0.0
  %v4161 = vmax.f32 %v3622, 0.0
  %v4162 = vmax.f32 %v3625, 0.0
  %v4163 = vmax.f32 %v3628, 0.0
  %v4164 = vmax.f32 %v3631, 0.0
  %v4165 = vmax.f32 %v3634, 0.0
  %v4166 = vmax.f32 %v3637, 0.0
  %v4167 = vmax.f32 %v3640, 0.0
  %v4168 = vmax.f32 %v3643, 0.0
  %v4169 = vmax.f32 %v3646, 0.0
  %v4170 = vmax.f32 %v3649, 0.0
  %v4171 = vmax.f32 %v3652, 0.0
  %v4172 = vmax.f32 %v3655, 0.0
  %v4173 = vmax.f32 %v3658, 0.0
  %v4174 = vmax.f32 %v3661, 0.0
  %v4175 = vld [vmem:[%s1] sm:$0xff]
  %v4176 = vld [vmem:[%s1 + $0x8] sm:$0xff]
  %v4177 = vld [vmem:[%s1 + $0x10] sm:$0xff]
  %v4178 = vld [vmem:[%s1 + $0x18] sm:$0xff]
  %v4179 = vld [vmem:[%s1 + $0x20] sm:$0xff]
  %v4180 = vld [vmem:[%s1 + $0x28] sm:$0xff]
  %v4181 = vld [vmem:[%s1 + $0x30] sm:$0xff]
  %v4182 = vld [vmem:[%s1 + $0x38] sm:$0xff]
  %v4183 = vld [vmem:[%s1 + $0x40] sm:$0xff]
  %v4184 = vld [vmem:[%s1 + $0x48] sm:$0xff]
  %v4185 = vld [vmem:[%s1 + $0x50] sm:$0xff]
  %v4186 = vld [vmem:[%s1 + $0x58] sm:$0xff]
  %v4187 = vld [vmem:[%s1 + $0x60] sm:$0xff]
  %v4188 = vld [vmem:[%s1 + $0x68] sm:$0xff]
  %v4189 = vld [vmem:[%s1 + $0x70] sm:$0xff]
  %v4190 = vld [vmem:[%s1 + $0x78] sm:$0xff]
  %v4191 = vld [vmem:[%s1 + $0x80] sm:$0xff]
  %v4192 = vld [vmem:[%s1 + $0x88] sm:$0xff]
  %v4193 = vld [vmem:[%s1 + $0x90] sm:$0xff]
  %v4194 = vld [vmem:[%s1 + $0x98] sm:$0xff]
  %v4195 = vld [vmem:[%s1 + $0xa0] sm:$0xff]
  %v4196 = vld [vmem:[%s1 + $0xa8] sm:$0xff]
  %v4197 = vld [vmem:[%s1 + $0xb0] sm:$0xff]
  %v4198 = vld [vmem:[%s1 + $0xb8] sm:$0xff]
  %v4199 = vld [vmem:[%s1 + $0xc0] sm:$0xff]
  %v4200 = vld [vmem:[%s1 + $0xc8] sm:$0xff]
  %v4201 = vld [vmem:[%s1 + $0xd0] sm:$0xff]
  %v4202 = vld [vmem:[%s1 + $0xd8] sm:$0xff]
  %v4203 = vld [vmem:[%s1 + $0xe0] sm:$0xff]
  %v4204 = vld [vmem:[%s1 + $0xe8] sm:$0xff]
  %v4205 = vld [vmem:[%s1 + $0xf0] sm:$0xff]
  %v4206 = vld [vmem:[%s1 + $0xf8] sm:$0xff]
  %v4207 = vld [vmem:[%s1 + $0x100] sm:$0xff]
  %v4208 = vld [vmem:[%s1 + $0x108] sm:$0xff]
  %v4209 = vld [vmem:[%s1 + $0x110] sm:$0xff]
  %v4210 = vld [vmem:[%s1 + $0x118] sm:$0xff]
  %v4211 = vld [vmem:[%s1 + $0x120] sm:$0xff]
  %v4212 = vld [vmem:[%s1 + $0x128] sm:$0xff]
  %v4213 = vld [vmem:[%s1 + $0x130] sm:$0xff]
  %v4214 = vld [vmem:[%s1 + $0x138] sm:$0xff]
  %v4215 = vld [vmem:[%s1 + $0x140] sm:$0xff]
  %v4216 = vld [vmem:[%s1 + $0x148] sm:$0xff]
  %v4217 = vld [vmem:[%s1 + $0x150] sm:$0xff]
  %v4218 = vld [vmem:[%s1 + $0x158] sm:$0xff]
  %v4219 = vld [vmem:[%s1 + $0x160] sm:$0xff]
  %v4220 = vld [vmem:[%s1 + $0x168] sm:$0xff]
  %v4221 = vld [vmem:[%s1 + $0x170] sm:$0xff]
  %v4222 = vld [vmem:[%s1 + $0x178] sm:$0xff]
  %v4223 = vld [vmem:[%s1 + $0x180] sm:$0xff]
  %v4224 = vld [vmem:[%s1 + $0x188] sm:$0xff]
  %v4225 = vld [vmem:[%s1 + $0x190] sm:$0xff]
  %v4226 = vld [vmem:[%s1 + $0x198] sm:$0xff]
  %v4227 = vld [vmem:[%s1 + $0x1a0] sm:$0xff]
  %v4228 = vld [vmem:[%s1 + $0x1a8] sm:$0xff]
  %v4229 = vld [vmem:[%s1 + $0x1b0] sm:$0xff]
  %v4230 = vld [vmem:[%s1 + $0x1b8] sm:$0xff]
  %v4231 = vld [vmem:[%s1 + $0x1c0] sm:$0xff]
  %v4232 = vld [vmem:[%s1 + $0x1c8] sm:$0xff]
  %v4233 = vld [vmem:[%s1 + $0x1d0] sm:$0xff]
  %v4234 = vld [vmem:[%s1 + $0x1d8] sm:$0xff]
  %v4235 = vld [vmem:[%s1 + $0x1e0] sm:$0xff]
  %v4236 = vld [vmem:[%s1 + $0x1e8] sm:$0xff]
  %v4237 = vld [vmem:[%s1 + $0x1f0] sm:$0xff]
  %v4238 = vld [vmem:[%s1 + $0x1f8] sm:$0xff]
  %4239 = vmatpush.msra.mxu0 %v3678
  %4240 = vmatpush.msra.mxu0 %v3677
  %4241 = vmatpush.msra.mxu0 %v3676
  %4242 = vmatpush.msra.mxu0 %v3675
  %4243 = vmatpush.msra.mxu0 %v3674
  %4244 = vmatpush.msra.mxu0 %v3673
  %4245 = vmatpush.msra.mxu0 %v3672
  %4246 = vmatpush.msra.mxu0 %v3671
  %4247 = vmatpush.msra.mxu0 %v3670
  %4248 = vmatpush.msra.mxu0 %v3669
  %4249 = vmatpush.msra.mxu0 %v3668
  %4250 = vmatpush.msra.mxu0 %v3667
  %4251 = vmatpush.msra.mxu0 %v3666
  %4252 = vmatpush.msra.mxu0 %v3665
  %4253 = vmatpush.msra.mxu0 %v3664
  %4254 = vmatpush.msra.mxu0 %v3663
  %4255 = vmatmul.f32.gmra.mxu0 %v4175
  %v4256 = vpop.f32.mrf.mxu0
  %v4257 = vadd.f32 0.0, %v4256
  %4258 = vmatmul.f32.gmra.mxu0 %v4207
  %v4259 = vpop.f32.mrf.mxu0
  %v4260 = vadd.f32 0.0, %v4259
  %4261 = vdwg.mxu0
  %4262 = vmatpush.msra.mxu0 %v3694
  %4263 = vmatpush.msra.mxu0 %v3693
  %4264 = vmatpush.msra.mxu0 %v3692
  %4265 = vmatpush.msra.mxu0 %v3691
  %4266 = vmatpush.msra.mxu0 %v3690
  %4267 = vmatpush.msra.mxu0 %v3689
  %4268 = vmatpush.msra.mxu0 %v3688
  %4269 = vmatpush.msra.mxu0 %v3687
  %4270 = vmatpush.msra.mxu0 %v3686
  %4271 = vmatpush.msra.mxu0 %v3685
  %4272 = vmatpush.msra.mxu0 %v3684
  %4273 = vmatpush.msra.mxu0 %v3683
  %4274 = vmatpush.msra.mxu0 %v3682
  %4275 = vmatpush.msra.mxu0 %v3681
  %4276 = vmatpush.msra.mxu0 %v3680
  %4277 = vmatpush.msra.mxu0 %v3679
  %4278 = vmatmul.f32.gmra.mxu0 %v4176
  %v4279 = vpop.f32.mrf.mxu0
  %v4280 = vadd.f32 %v4257, %v4279
  %4281 = vmatmul.f32.gmra.mxu0 %v4208
  %v4282 = vpop.f32.mrf.mxu0
  %v4283 = vadd.f32 %v4260, %v4282
  %4284 = vdwg.mxu0
  %4285 = vmatpush.msra.mxu0 %v3710
  %4286 = vmatpush.msra.mxu0 %v3709
  %4287 = vmatpush.msra.mxu0 %v3708
  %4288 = vmatpush.msra.mxu0 %v3707
  %4289 = vmatpush.msra.mxu0 %v3706
  %4290 = vmatpush.msra.mxu0 %v3705
  %4291 = vmatpush.msra.mxu0 %v3704
  %4292 = vmatpush.msra.mxu0 %v3703
  %4293 = vmatpush.msra.mxu0 %v3702
  %4294 = vmatpush.msra.mxu0 %v3701
  %4295 = vmatpush.msra.mxu0 %v3700
  %4296 = vmatpush.msra.mxu0 %v3699
  %4297 = vmatpush.msra.mxu0 %v3698
  %4298 = vmatpush.msra.mxu0 %v3697
  %4299 = vmatpush.msra.mxu0 %v3696
  %4300 = vmatpush.msra.mxu0 %v3695
  %4301 = vmatmul.f32.gmra.mxu0 %v4177
  %v4302 = vpop.f32.mrf.mxu0
  %v4303 = vadd.f32 %v4280, %v4302
  %4304 = vmatmul.f32.gmra.mxu0 %v4209
  %v4305 = vpop.f32.mrf.mxu0
  %v4306 = vadd.f32 %v4283, %v4305
  %4307 = vdwg.mxu0
  %4308 = vmatpush.msra.mxu0 %v3726
  %4309 = vmatpush.msra.mxu0 %v3725
  %4310 = vmatpush.msra.mxu0 %v3724
  %4311 = vmatpush.msra.mxu0 %v3723
  %4312 = vmatpush.msra.mxu0 %v3722
  %4313 = vmatpush.msra.mxu0 %v3721
  %4314 = vmatpush.msra.mxu0 %v3720
  %4315 = vmatpush.msra.mxu0 %v3719
  %4316 = vmatpush.msra.mxu0 %v3718
  %4317 = vmatpush.msra.mxu0 %v3717
  %4318 = vmatpush.msra.mxu0 %v3716
  %4319 = vmatpush.msra.mxu0 %v3715
  %4320 = vmatpush.msra.mxu0 %v3714
  %4321 = vmatpush.msra.mxu0 %v3713
  %4322 = vmatpush.msra.mxu0 %v3712
  %4323 = vmatpush.msra.mxu0 %v3711
  %4324 = vmatmul.f32.gmra.mxu0 %v4178
  %v4325 = vpop.f32.mrf.mxu0
  %v4326 = vadd.f32 %v4303, %v4325
  %4327 = vmatmul.f32.gmra.mxu0 %v4210
  %v4328 = vpop.f32.mrf.mxu0
  %v4329 = vadd.f32 %v4306, %v4328
  %4330 = vdwg.mxu0
  %4331 = vmatpush.msra.mxu0 %v3742
  %4332 = vmatpush.msra.mxu0 %v3741
  %4333 = vmatpush.msra.mxu0 %v3740
  %4334 = vmatpush.msra.mxu0 %v3739
  %4335 = vmatpush.msra.mxu0 %v3738
  %4336 = vmatpush.msra.mxu0 %v3737
  %4337 = vmatpush.msra.mxu0 %v3736
  %4338 = vmatpush.msra.mxu0 %v3735
  %4339 = vmatpush.msra.mxu0 %v3734
  %4340 = vmatpush.msra.mxu0 %v3733
  %4341 = vmatpush.msra.mxu0 %v3732
  %4342 = vmatpush.msra.mxu0 %v3731
  %4343 = vmatpush.msra.mxu0 %v3730
  %4344 = vmatpush.msra.mxu0 %v3729
  %4345 = vmatpush.msra.mxu0 %v3728
  %4346 = vmatpush.msra.mxu0 %v3727
  %4347 = vmatmul.f32.gmra.mxu0 %v4179
  %v4348 = vpop.f32.mrf.mxu0
  %v4349 = vadd.f32 %v4326, %v4348
  %4350 = vmatmul.f32.gmra.mxu0 %v4211
  %v4351 = vpop.f32.mrf.mxu0
  %v4352 = vadd.f32 %v4329, %v4351
  %4353 = vdwg.mxu0
  %4354 = vmatpush.msra.mxu0 %v3758
  %4355 = vmatpush.msra.mxu0 %v3757
  %4356 = vmatpush.msra.mxu0 %v3756
  %4357 = vmatpush.msra.mxu0 %v3755
  %4358 = vmatpush.msra.mxu0 %v3754
  %4359 = vmatpush.msra.mxu0 %v3753
  %4360 = vmatpush.msra.mxu0 %v3752
  %4361 = vmatpush.msra.mxu0 %v3751
  %4362 = vmatpush.msra.mxu0 %v3750
  %4363 = vmatpush.msra.mxu0 %v3749
  %4364 = vmatpush.msra.mxu0 %v3748
  %4365 = vmatpush.msra.mxu0 %v3747
  %4366 = vmatpush.msra.mxu0 %v3746
  %4367 = vmatpush.msra.mxu0 %v3745
  %4368 = vmatpush.msra.mxu0 %v3744
  %4369 = vmatpush.msra.mxu0 %v3743
  %4370 = vmatmul.f32.gmra.mxu0 %v4180
  %v4371 = vpop.f32.mrf.mxu0
  %v4372 = vadd.f32 %v4349, %v4371
  %4373 = vmatmul.f32.gmra.mxu0 %v4212
  %v4374 = vpop.f32.mrf.mxu0
  %v4375 = vadd.f32 %v4352, %v4374
  %4376 = vdwg.mxu0
  %4377 = vmatpush.msra.mxu0 %v3774
  %4378 = vmatpush.msra.mxu0 %v3773
  %4379 = vmatpush.msra.mxu0 %v3772
  %4380 = vmatpush.msra.mxu0 %v3771
  %4381 = vmatpush.msra.mxu0 %v3770
  %4382 = vmatpush.msra.mxu0 %v3769
  %4383 = vmatpush.msra.mxu0 %v3768
  %4384 = vmatpush.msra.mxu0 %v3767
  %4385 = vmatpush.msra.mxu0 %v3766
  %4386 = vmatpush.msra.mxu0 %v3765
  %4387 = vmatpush.msra.mxu0 %v3764
  %4388 = vmatpush.msra.mxu0 %v3763
  %4389 = vmatpush.msra.mxu0 %v3762
  %4390 = vmatpush.msra.mxu0 %v3761
  %4391 = vmatpush.msra.mxu0 %v3760
  %4392 = vmatpush.msra.mxu0 %v3759
  %4393 = vmatmul.f32.gmra.mxu0 %v4181
  %v4394 = vpop.f32.mrf.mxu0
  %v4395 = vadd.f32 %v4372, %v4394
  %4396 = vmatmul.f32.gmra.mxu0 %v4213
  %v4397 = vpop.f32.mrf.mxu0
  %v4398 = vadd.f32 %v4375, %v4397
  %4399 = vdwg.mxu0
  %4400 = vmatpush.msra.mxu0 %v3790
  %4401 = vmatpush.msra.mxu0 %v3789
  %4402 = vmatpush.msra.mxu0 %v3788
  %4403 = vmatpush.msra.mxu0 %v3787
  %4404 = vmatpush.msra.mxu0 %v3786
  %4405 = vmatpush.msra.mxu0 %v3785
  %4406 = vmatpush.msra.mxu0 %v3784
  %4407 = vmatpush.msra.mxu0 %v3783
  %4408 = vmatpush.msra.mxu0 %v3782
  %4409 = vmatpush.msra.mxu0 %v3781
  %4410 = vmatpush.msra.mxu0 %v3780
  %4411 = vmatpush.msra.mxu0 %v3779
  %4412 = vmatpush.msra.mxu0 %v3778
  %4413 = vmatpush.msra.mxu0 %v3777
  %4414 = vmatpush.msra.mxu0 %v3776
  %4415 = vmatpush.msra.mxu0 %v3775
  %4416 = vmatmul.f32.gmra.mxu0 %v4182
  %v4417 = vpop.f32.mrf.mxu0
  %v4418 = vadd.f32 %v4395, %v4417
  %4419 = vmatmul.f32.gmra.mxu0 %v4214
  %v4420 = vpop.f32.mrf.mxu0
  %v4421 = vadd.f32 %v4398, %v4420
  %4422 = vdwg.mxu0
  %4423 = vmatpush.msra.mxu0 %v3806
  %4424 = vmatpush.msra.mxu0 %v3805
  %4425 = vmatpush.msra.mxu0 %v3804
  %4426 = vmatpush.msra.mxu0 %v3803
  %4427 = vmatpush.msra.mxu0 %v3802
  %4428 = vmatpush.msra.mxu0 %v3801
  %4429 = vmatpush.msra.mxu0 %v3800
  %4430 = vmatpush.msra.mxu0 %v3799
  %4431 = vmatpush.msra.mxu0 %v3798
  %4432 = vmatpush.msra.mxu0 %v3797
  %4433 = vmatpush.msra.mxu0 %v3796
  %4434 = vmatpush.msra.mxu0 %v3795
  %4435 = vmatpush.msra.mxu0 %v3794
  %4436 = vmatpush.msra.mxu0 %v3793
  %4437 = vmatpush.msra.mxu0 %v3792
  %4438 = vmatpush.msra.mxu0 %v3791
  %4439 = vmatmul.f32.gmra.mxu0 %v4183
  %v4440 = vpop.f32.mrf.mxu0
  %v4441 = vadd.f32 %v4418, %v4440
  %4442 = vmatmul.f32.gmra.mxu0 %v4215
  %v4443 = vpop.f32.mrf.mxu0
  %v4444 = vadd.f32 %v4421, %v4443
  %4445 = vdwg.mxu0
  %4446 = vmatpush.msra.mxu0 %v3822
  %4447 = vmatpush.msra.mxu0 %v3821
  %4448 = vmatpush.msra.mxu0 %v3820
  %4449 = vmatpush.msra.mxu0 %v3819
  %4450 = vmatpush.msra.mxu0 %v3818
  %4451 = vmatpush.msra.mxu0 %v3817
  %4452 = vmatpush.msra.mxu0 %v3816
  %4453 = vmatpush.msra.mxu0 %v3815
  %4454 = vmatpush.msra.mxu0 %v3814
  %4455 = vmatpush.msra.mxu0 %v3813
  %4456 = vmatpush.msra.mxu0 %v3812
  %4457 = vmatpush.msra.mxu0 %v3811
  %4458 = vmatpush.msra.mxu0 %v3810
  %4459 = vmatpush.msra.mxu0 %v3809
  %4460 = vmatpush.msra.mxu0 %v3808
  %4461 = vmatpush.msra.mxu0 %v3807
  %4462 = vmatmul.f32.gmra.mxu0 %v4184
  %v4463 = vpop.f32.mrf.mxu0
  %v4464 = vadd.f32 %v4441, %v4463
  %4465 = vmatmul.f32.gmra.mxu0 %v4216
  %v4466 = vpop.f32.mrf.mxu0
  %v4467 = vadd.f32 %v4444, %v4466
  %4468 = vdwg.mxu0
  %4469 = vmatpush.msra.mxu0 %v3838
  %4470 = vmatpush.msra.mxu0 %v3837
  %4471 = vmatpush.msra.mxu0 %v3836
  %4472 = vmatpush.msra.mxu0 %v3835
  %4473 = vmatpush.msra.mxu0 %v3834
  %4474 = vmatpush.msra.mxu0 %v3833
  %4475 = vmatpush.msra.mxu0 %v3832
  %4476 = vmatpush.msra.mxu0 %v3831
  %4477 = vmatpush.msra.mxu0 %v3830
  %4478 = vmatpush.msra.mxu0 %v3829
  %4479 = vmatpush.msra.mxu0 %v3828
  %4480 = vmatpush.msra.mxu0 %v3827
  %4481 = vmatpush.msra.mxu0 %v3826
  %4482 = vmatpush.msra.mxu0 %v3825
  %4483 = vmatpush.msra.mxu0 %v3824
  %4484 = vmatpush.msra.mxu0 %v3823
  %4485 = vmatmul.f32.gmra.mxu0 %v4185
  %v4486 = vpop.f32.mrf.mxu0
  %v4487 = vadd.f32 %v4464, %v4486
  %4488 = vmatmul.f32.gmra.mxu0 %v4217
  %v4489 = vpop.f32.mrf.mxu0
  %v4490 = vadd.f32 %v4467, %v4489
  %4491 = vdwg.mxu0
  %4492 = vmatpush.msra.mxu0 %v3854
  %4493 = vmatpush.msra.mxu0 %v3853
  %4494 = vmatpush.msra.mxu0 %v3852
  %4495 = vmatpush.msra.mxu0 %v3851
  %4496 = vmatpush.msra.mxu0 %v3850
  %4497 = vmatpush.msra.mxu0 %v3849
  %4498 = vmatpush.msra.mxu0 %v3848
  %4499 = vmatpush.msra.mxu0 %v3847
  %4500 = vmatpush.msra.mxu0 %v3846
  %4501 = vmatpush.msra.mxu0 %v3845
  %4502 = vmatpush.msra.mxu0 %v3844
  %4503 = vmatpush.msra.mxu0 %v3843
  %4504 = vmatpush.msra.mxu0 %v3842
  %4505 = vmatpush.msra.mxu0 %v3841
  %4506 = vmatpush.msra.mxu0 %v3840
  %4507 = vmatpush.msra.mxu0 %v3839
  %4508 = vmatmul.f32.gmra.mxu0 %v4186
  %v4509 = vpop.f32.mrf.mxu0
  %v4510 = vadd.f32 %v4487, %v4509
  %4511 = vmatmul.f32.gmra.mxu0 %v4218
  %v4512 = vpop.f32.mrf.mxu0
  %v4513 = vadd.f32 %v4490, %v4512
  %4514 = vdwg.mxu0
  %4515 = vmatpush.msra.mxu0 %v3870
  %4516 = vmatpush.msra.mxu0 %v3869
  %4517 = vmatpush.msra.mxu0 %v3868
  %4518 = vmatpush.msra.mxu0 %v3867
  %4519 = vmatpush.msra.mxu0 %v3866
  %4520 = vmatpush.msra.mxu0 %v3865
  %4521 = vmatpush.msra.mxu0 %v3864
  %4522 = vmatpush.msra.mxu0 %v3863
  %4523 = vmatpush.msra.mxu0 %v3862
  %4524 = vmatpush.msra.mxu0 %v3861
  %4525 = vmatpush.msra.mxu0 %v3860
  %4526 = vmatpush.msra.mxu0 %v3859
  %4527 = vmatpush.msra.mxu0 %v3858
  %4528 = vmatpush.msra.mxu0 %v3857
  %4529 = vmatpush.msra.mxu0 %v3856
  %4530 = vmatpush.msra.mxu0 %v3855
  %4531 = vmatmul.f32.gmra.mxu0 %v4187
  %v4532 = vpop.f32.mrf.mxu0
  %v4533 = vadd.f32 %v4510, %v4532
  %4534 = vmatmul.f32.gmra.mxu0 %v4219
  %v4535 = vpop.f32.mrf.mxu0
  %v4536 = vadd.f32 %v4513, %v4535
  %4537 = vdwg.mxu0
  %4538 = vmatpush.msra.mxu0 %v3886
  %4539 = vmatpush.msra.mxu0 %v3885
  %4540 = vmatpush.msra.mxu0 %v3884
  %4541 = vmatpush.msra.mxu0 %v3883
  %4542 = vmatpush.msra.mxu0 %v3882
  %4543 = vmatpush.msra.mxu0 %v3881
  %4544 = vmatpush.msra.mxu0 %v3880
  %4545 = vmatpush.msra.mxu0 %v3879
  %4546 = vmatpush.msra.mxu0 %v3878
  %4547 = vmatpush.msra.mxu0 %v3877
  %4548 = vmatpush.msra.mxu0 %v3876
  %4549 = vmatpush.msra.mxu0 %v3875
  %4550 = vmatpush.msra.mxu0 %v3874
  %4551 = vmatpush.msra.mxu0 %v3873
  %4552 = vmatpush.msra.mxu0 %v3872
  %4553 = vmatpush.msra.mxu0 %v3871
  %4554 = vmatmul.f32.gmra.mxu0 %v4188
  %v4555 = vpop.f32.mrf.mxu0
  %v4556 = vadd.f32 %v4533, %v4555
  %4557 = vmatmul.f32.gmra.mxu0 %v4220
  %v4558 = vpop.f32.mrf.mxu0
  %v4559 = vadd.f32 %v4536, %v4558
  %4560 = vdwg.mxu0
  %4561 = vmatpush.msra.mxu0 %v3902
  %4562 = vmatpush.msra.mxu0 %v3901
  %4563 = vmatpush.msra.mxu0 %v3900
  %4564 = vmatpush.msra.mxu0 %v3899
  %4565 = vmatpush.msra.mxu0 %v3898
  %4566 = vmatpush.msra.mxu0 %v3897
  %4567 = vmatpush.msra.mxu0 %v3896
  %4568 = vmatpush.msra.mxu0 %v3895
  %4569 = vmatpush.msra.mxu0 %v3894
  %4570 = vmatpush.msra.mxu0 %v3893
  %4571 = vmatpush.msra.mxu0 %v3892
  %4572 = vmatpush.msra.mxu0 %v3891
  %4573 = vmatpush.msra.mxu0 %v3890
  %4574 = vmatpush.msra.mxu0 %v3889
  %4575 = vmatpush.msra.mxu0 %v3888
  %4576 = vmatpush.msra.mxu0 %v3887
  %4577 = vmatmul.f32.gmra.mxu0 %v4189
  %v4578 = vpop.f32.mrf.mxu0
  %v4579 = vadd.f32 %v4556, %v4578
  %4580 = vmatmul.f32.gmra.mxu0 %v4221
  %v4581 = vpop.f32.mrf.mxu0
  %v4582 = vadd.f32 %v4559, %v4581
  %4583 = vdwg.mxu0
  %4584 = vmatpush.msra.mxu0 %v3918
  %4585 = vmatpush.msra.mxu0 %v3917
  %4586 = vmatpush.msra.mxu0 %v3916
  %4587 = vmatpush.msra.mxu0 %v3915
  %4588 = vmatpush.msra.mxu0 %v3914
  %4589 = vmatpush.msra.mxu0 %v3913
  %4590 = vmatpush.msra.mxu0 %v3912
  %4591 = vmatpush.msra.mxu0 %v3911
  %4592 = vmatpush.msra.mxu0 %v3910
  %4593 = vmatpush.msra.mxu0 %v3909
  %4594 = vmatpush.msra.mxu0 %v3908
  %4595 = vmatpush.msra.mxu0 %v3907
  %4596 = vmatpush.msra.mxu0 %v3906
  %4597 = vmatpush.msra.mxu0 %v3905
  %4598 = vmatpush.msra.mxu0 %v3904
  %4599 = vmatpush.msra.mxu0 %v3903
  %4600 = vmatmul.f32.gmra.mxu0 %v4190
  %v4601 = vpop.f32.mrf.mxu0
  %v4602 = vadd.f32 %v4579, %v4601
  %4603 = vmatmul.f32.gmra.mxu0 %v4222
  %v4604 = vpop.f32.mrf.mxu0
  %v4605 = vadd.f32 %v4582, %v4604
  %4606 = vdwg.mxu0
  %4607 = vmatpush.msra.mxu0 %v3934
  %4608 = vmatpush.msra.mxu0 %v3933
  %4609 = vmatpush.msra.mxu0 %v3932
  %4610 = vmatpush.msra.mxu0 %v3931
  %4611 = vmatpush.msra.mxu0 %v3930
  %4612 = vmatpush.msra.mxu0 %v3929
  %4613 = vmatpush.msra.mxu0 %v3928
  %4614 = vmatpush.msra.mxu0 %v3927
  %4615 = vmatpush.msra.mxu0 %v3926
  %4616 = vmatpush.msra.mxu0 %v3925
  %4617 = vmatpush.msra.mxu0 %v3924
  %4618 = vmatpush.msra.mxu0 %v3923
  %4619 = vmatpush.msra.mxu0 %v3922
  %4620 = vmatpush.msra.mxu0 %v3921
  %4621 = vmatpush.msra.mxu0 %v3920
  %4622 = vmatpush.msra.mxu0 %v3919
  %4623 = vmatmul.f32.gmra.mxu0 %v4191
  %v4624 = vpop.f32.mrf.mxu0
  %v4625 = vadd.f32 %v4602, %v4624
  %4626 = vmatmul.f32.gmra.mxu0 %v4223
  %v4627 = vpop.f32.mrf.mxu0
  %v4628 = vadd.f32 %v4605, %v4627
  %4629 = vdwg.mxu0
  %4630 = vmatpush.msra.mxu0 %v3950
  %4631 = vmatpush.msra.mxu0 %v3949
  %4632 = vmatpush.msra.mxu0 %v3948
  %4633 = vmatpush.msra.mxu0 %v3947
  %4634 = vmatpush.msra.mxu0 %v3946
  %4635 = vmatpush.msra.mxu0 %v3945
  %4636 = vmatpush.msra.mxu0 %v3944
  %4637 = vmatpush.msra.mxu0 %v3943
  %4638 = vmatpush.msra.mxu0 %v3942
  %4639 = vmatpush.msra.mxu0 %v3941
  %4640 = vmatpush.msra.mxu0 %v3940
  %4641 = vmatpush.msra.mxu0 %v3939
  %4642 = vmatpush.msra.mxu0 %v3938
  %4643 = vmatpush.msra.mxu0 %v3937
  %4644 = vmatpush.msra.mxu0 %v3936
  %4645 = vmatpush.msra.mxu0 %v3935
  %4646 = vmatmul.f32.gmra.mxu0 %v4192
  %v4647 = vpop.f32.mrf.mxu0
  %v4648 = vadd.f32 %v4625, %v4647
  %4649 = vmatmul.f32.gmra.mxu0 %v4224
  %v4650 = vpop.f32.mrf.mxu0
  %v4651 = vadd.f32 %v4628, %v4650
  %4652 = vdwg.mxu0
  %4653 = vmatpush.msra.mxu0 %v3966
  %4654 = vmatpush.msra.mxu0 %v3965
  %4655 = vmatpush.msra.mxu0 %v3964
  %4656 = vmatpush.msra.mxu0 %v3963
  %4657 = vmatpush.msra.mxu0 %v3962
  %4658 = vmatpush.msra.mxu0 %v3961
  %4659 = vmatpush.msra.mxu0 %v3960
  %4660 = vmatpush.msra.mxu0 %v3959
  %4661 = vmatpush.msra.mxu0 %v3958
  %4662 = vmatpush.msra.mxu0 %v3957
  %4663 = vmatpush.msra.mxu0 %v3956
  %4664 = vmatpush.msra.mxu0 %v3955
  %4665 = vmatpush.msra.mxu0 %v3954
  %4666 = vmatpush.msra.mxu0 %v3953
  %4667 = vmatpush.msra.mxu0 %v3952
  %4668 = vmatpush.msra.mxu0 %v3951
  %4669 = vmatmul.f32.gmra.mxu0 %v4193
  %v4670 = vpop.f32.mrf.mxu0
  %v4671 = vadd.f32 %v4648, %v4670
  %4672 = vmatmul.f32.gmra.mxu0 %v4225
  %v4673 = vpop.f32.mrf.mxu0
  %v4674 = vadd.f32 %v4651, %v4673
  %4675 = vdwg.mxu0
  %4676 = vmatpush.msra.mxu0 %v3982
  %4677 = vmatpush.msra.mxu0 %v3981
  %4678 = vmatpush.msra.mxu0 %v3980
  %4679 = vmatpush.msra.mxu0 %v3979
  %4680 = vmatpush.msra.mxu0 %v3978
  %4681 = vmatpush.msra.mxu0 %v3977
  %4682 = vmatpush.msra.mxu0 %v3976
  %4683 = vmatpush.msra.mxu0 %v3975
  %4684 = vmatpush.msra.mxu0 %v3974
  %4685 = vmatpush.msra.mxu0 %v3973
  %4686 = vmatpush.msra.mxu0 %v3972
  %4687 = vmatpush.msra.mxu0 %v3971
  %4688 = vmatpush.msra.mxu0 %v3970
  %4689 = vmatpush.msra.mxu0 %v3969
  %4690 = vmatpush.msra.mxu0 %v3968
  %4691 = vmatpush.msra.mxu0 %v3967
  %4692 = vmatmul.f32.gmra.mxu0 %v4194
  %v4693 = vpop.f32.mrf.mxu0
  %v4694 = vadd.f32 %v4671, %v4693
  %4695 = vmatmul.f32.gmra.mxu0 %v4226
  %v4696 = vpop.f32.mrf.mxu0
  %v4697 = vadd.f32 %v4674, %v4696
  %4698 = vdwg.mxu0
  %4699 = vmatpush.msra.mxu0 %v3998
  %4700 = vmatpush.msra.mxu0 %v3997
  %4701 = vmatpush.msra.mxu0 %v3996
  %4702 = vmatpush.msra.mxu0 %v3995
  %4703 = vmatpush.msra.mxu0 %v3994
  %4704 = vmatpush.msra.mxu0 %v3993
  %4705 = vmatpush.msra.mxu0 %v3992
  %4706 = vmatpush.msra.mxu0 %v3991
  %4707 = vmatpush.msra.mxu0 %v3990
  %4708 = vmatpush.msra.mxu0 %v3989
  %4709 = vmatpush.msra.mxu0 %v3988
  %4710 = vmatpush.msra.mxu0 %v3987
  %4711 = vmatpush.msra.mxu0 %v3986
  %4712 = vmatpush.msra.mxu0 %v3985
  %4713 = vmatpush.msra.mxu0 %v3984
  %4714 = vmatpush.msra.mxu0 %v3983
  %4715 = vmatmul.f32.gmra.mxu0 %v4195
  %v4716 = vpop.f32.mrf.mxu0
  %v4717 = vadd.f32 %v4694, %v4716
  %4718 = vmatmul.f32.gmra.mxu0 %v4227
  %v4719 = vpop.f32.mrf.mxu0
  %v4720 = vadd.f32 %v4697, %v4719
  %4721 = vdwg.mxu0
  %4722 = vmatpush.msra.mxu0 %v4014
  %4723 = vmatpush.msra.mxu0 %v4013
  %4724 = vmatpush.msra.mxu0 %v4012
  %4725 = vmatpush.msra.mxu0 %v4011
  %4726 = vmatpush.msra.mxu0 %v4010
  %4727 = vmatpush.msra.mxu0 %v4009
  %4728 = vmatpush.msra.mxu0 %v4008
  %4729 = vmatpush.msra.mxu0 %v4007
  %4730 = vmatpush.msra.mxu0 %v4006
  %4731 = vmatpush.msra.mxu0 %v4005
  %4732 = vmatpush.msra.mxu0 %v4004
  %4733 = vmatpush.msra.mxu0 %v4003
  %4734 = vmatpush.msra.mxu0 %v4002
  %4735 = vmatpush.msra.mxu0 %v4001
  %4736 = vmatpush.msra.mxu0 %v4000
  %4737 = vmatpush.msra.mxu0 %v3999
  %4738 = vmatmul.f32.gmra.mxu0 %v4196
  %v4739 = vpop.f32.mrf.mxu0
  %v4740 = vadd.f32 %v4717, %v4739
  %4741 = vmatmul.f32.gmra.mxu0 %v4228
  %v4742 = vpop.f32.mrf.mxu0
  %v4743 = vadd.f32 %v4720, %v4742
  %4744 = vdwg.mxu0
  %4745 = vmatpush.msra.mxu0 %v4030
  %4746 = vmatpush.msra.mxu0 %v4029
  %4747 = vmatpush.msra.mxu0 %v4028
  %4748 = vmatpush.msra.mxu0 %v4027
  %4749 = vmatpush.msra.mxu0 %v4026
  %4750 = vmatpush.msra.mxu0 %v4025
  %4751 = vmatpush.msra.mxu0 %v4024
  %4752 = vmatpush.msra.mxu0 %v4023
  %4753 = vmatpush.msra.mxu0 %v4022
  %4754 = vmatpush.msra.mxu0 %v4021
  %4755 = vmatpush.msra.mxu0 %v4020
  %4756 = vmatpush.msra.mxu0 %v4019
  %4757 = vmatpush.msra.mxu0 %v4018
  %4758 = vmatpush.msra.mxu0 %v4017
  %4759 = vmatpush.msra.mxu0 %v4016
  %4760 = vmatpush.msra.mxu0 %v4015
  %4761 = vmatmul.f32.gmra.mxu0 %v4197
  %v4762 = vpop.f32.mrf.mxu0
  %v4763 = vadd.f32 %v4740, %v4762
  %4764 = vmatmul.f32.gmra.mxu0 %v4229
  %v4765 = vpop.f32.mrf.mxu0
  %v4766 = vadd.f32 %v4743, %v4765
  %4767 = vdwg.mxu0
  %4768 = vmatpush.msra.mxu0 %v4046
  %4769 = vmatpush.msra.mxu0 %v4045
  %4770 = vmatpush.msra.mxu0 %v4044
  %4771 = vmatpush.msra.mxu0 %v4043
  %4772 = vmatpush.msra.mxu0 %v4042
  %4773 = vmatpush.msra.mxu0 %v4041
  %4774 = vmatpush.msra.mxu0 %v4040
  %4775 = vmatpush.msra.mxu0 %v4039
  %4776 = vmatpush.msra.mxu0 %v4038
  %4777 = vmatpush.msra.mxu0 %v4037
  %4778 = vmatpush.msra.mxu0 %v4036
  %4779 = vmatpush.msra.mxu0 %v4035
  %4780 = vmatpush.msra.mxu0 %v4034
  %4781 = vmatpush.msra.mxu0 %v4033
  %4782 = vmatpush.msra.mxu0 %v4032
  %4783 = vmatpush.msra.mxu0 %v4031
  %4784 = vmatmul.f32.gmra.mxu0 %v4198
  %v4785 = vpop.f32.mrf.mxu0
  %v4786 = vadd.f32 %v4763, %v4785
  %4787 = vmatmul.f32.gmra.mxu0 %v4230
  %v4788 = vpop.f32.mrf.mxu0
  %v4789 = vadd.f32 %v4766, %v4788
  %4790 = vdwg.mxu0
  %4791 = vmatpush.msra.mxu0 %v4062
  %4792 = vmatpush.msra.mxu0 %v4061
  %4793 = vmatpush.msra.mxu0 %v4060
  %4794 = vmatpush.msra.mxu0 %v4059
  %4795 = vmatpush.msra.mxu0 %v4058
  %4796 = vmatpush.msra.mxu0 %v4057
  %4797 = vmatpush.msra.mxu0 %v4056
  %4798 = vmatpush.msra.mxu0 %v4055
  %4799 = vmatpush.msra.mxu0 %v4054
  %4800 = vmatpush.msra.mxu0 %v4053
  %4801 = vmatpush.msra.mxu0 %v4052
  %4802 = vmatpush.msra.mxu0 %v4051
  %4803 = vmatpush.msra.mxu0 %v4050
  %4804 = vmatpush.msra.mxu0 %v4049
  %4805 = vmatpush.msra.mxu0 %v4048
  %4806 = vmatpush.msra.mxu0 %v4047
  %4807 = vmatmul.f32.gmra.mxu0 %v4199
  %v4808 = vpop.f32.mrf.mxu0
  %v4809 = vadd.f32 %v4786, %v4808
  %4810 = vmatmul.f32.gmra.mxu0 %v4231
  %v4811 = vpop.f32.mrf.mxu0
  %v4812 = vadd.f32 %v4789, %v4811
  %4813 = vdwg.mxu0
  %4814 = vmatpush.msra.mxu0 %v4078
  %4815 = vmatpush.msra.mxu0 %v4077
  %4816 = vmatpush.msra.mxu0 %v4076
  %4817 = vmatpush.msra.mxu0 %v4075
  %4818 = vmatpush.msra.mxu0 %v4074
  %4819 = vmatpush.msra.mxu0 %v4073
  %4820 = vmatpush.msra.mxu0 %v4072
  %4821 = vmatpush.msra.mxu0 %v4071
  %4822 = vmatpush.msra.mxu0 %v4070
  %4823 = vmatpush.msra.mxu0 %v4069
  %4824 = vmatpush.msra.mxu0 %v4068
  %4825 = vmatpush.msra.mxu0 %v4067
  %4826 = vmatpush.msra.mxu0 %v4066
  %4827 = vmatpush.msra.mxu0 %v4065
  %4828 = vmatpush.msra.mxu0 %v4064
  %4829 = vmatpush.msra.mxu0 %v4063
  %4830 = vmatmul.f32.gmra.mxu0 %v4200
  %v4831 = vpop.f32.mrf.mxu0
  %v4832 = vadd.f32 %v4809, %v4831
  %4833 = vmatmul.f32.gmra.mxu0 %v4232
  %v4834 = vpop.f32.mrf.mxu0
  %v4835 = vadd.f32 %v4812, %v4834
  %4836 = vdwg.mxu0
  %4837 = vmatpush.msra.mxu0 %v4094
  %4838 = vmatpush.msra.mxu0 %v4093
  %4839 = vmatpush.msra.mxu0 %v4092
  %4840 = vmatpush.msra.mxu0 %v4091
  %4841 = vmatpush.msra.mxu0 %v4090
  %4842 = vmatpush.msra.mxu0 %v4089
  %4843 = vmatpush.msra.mxu0 %v4088
  %4844 = vmatpush.msra.mxu0 %v4087
  %4845 = vmatpush.msra.mxu0 %v4086
  %4846 = vmatpush.msra.mxu0 %v4085
  %4847 = vmatpush.msra.mxu0 %v4084
  %4848 = vmatpush.msra.mxu0 %v4083
  %4849 = vmatpush.msra.mxu0 %v4082
  %4850 = vmatpush.msra.mxu0 %v4081
  %4851 = vmatpush.msra.mxu0 %v4080
  %4852 = vmatpush.msra.mxu0 %v4079
  %4853 = vmatmul.f32.gmra.mxu0 %v4201
  %v4854 = vpop.f32.mrf.mxu0
  %v4855 = vadd.f32 %v4832, %v4854
  %4856 = vmatmul.f32.gmra.mxu0 %v4233
  %v4857 = vpop.f32.mrf.mxu0
  %v4858 = vadd.f32 %v4835, %v4857
  %4859 = vdwg.mxu0
  %4860 = vmatpush.msra.mxu0 %v4110
  %4861 = vmatpush.msra.mxu0 %v4109
  %4862 = vmatpush.msra.mxu0 %v4108
  %4863 = vmatpush.msra.mxu0 %v4107
  %4864 = vmatpush.msra.mxu0 %v4106
  %4865 = vmatpush.msra.mxu0 %v4105
  %4866 = vmatpush.msra.mxu0 %v4104
  %4867 = vmatpush.msra.mxu0 %v4103
  %4868 = vmatpush.msra.mxu0 %v4102
  %4869 = vmatpush.msra.mxu0 %v4101
  %4870 = vmatpush.msra.mxu0 %v4100
  %4871 = vmatpush.msra.mxu0 %v4099
  %4872 = vmatpush.msra.mxu0 %v4098
  %4873 = vmatpush.msra.mxu0 %v4097
  %4874 = vmatpush.msra.mxu0 %v4096
  %4875 = vmatpush.msra.mxu0 %v4095
  %4876 = vmatmul.f32.gmra.mxu0 %v4202
  %v4877 = vpop.f32.mrf.mxu0
  %v4878 = vadd.f32 %v4855, %v4877
  %4879 = vmatmul.f32.gmra.mxu0 %v4234
  %v4880 = vpop.f32.mrf.mxu0
  %v4881 = vadd.f32 %v4858, %v4880
  %4882 = vdwg.mxu0
  %4883 = vmatpush.msra.mxu0 %v4126
  %4884 = vmatpush.msra.mxu0 %v4125
  %4885 = vmatpush.msra.mxu0 %v4124
  %4886 = vmatpush.msra.mxu0 %v4123
  %4887 = vmatpush.msra.mxu0 %v4122
  %4888 = vmatpush.msra.mxu0 %v4121
  %4889 = vmatpush.msra.mxu0 %v4120
  %4890 = vmatpush.msra.mxu0 %v4119
  %4891 = vmatpush.msra.mxu0 %v4118
  %4892 = vmatpush.msra.mxu0 %v4117
  %4893 = vmatpush.msra.mxu0 %v4116
  %4894 = vmatpush.msra.mxu0 %v4115
  %4895 = vmatpush.msra.mxu0 %v4114
  %4896 = vmatpush.msra.mxu0 %v4113
  %4897 = vmatpush.msra.mxu0 %v4112
  %4898 = vmatpush.msra.mxu0 %v4111
  %4899 = vmatmul.f32.gmra.mxu0 %v4203
  %v4900 = vpop.f32.mrf.mxu0
  %v4901 = vadd.f32 %v4878, %v4900
  %4902 = vmatmul.f32.gmra.mxu0 %v4235
  %v4903 = vpop.f32.mrf.mxu0
  %v4904 = vadd.f32 %v4881, %v4903
  %4905 = vdwg.mxu0
  %4906 = vmatpush.msra.mxu0 %v4142
  %4907 = vmatpush.msra.mxu0 %v4141
  %4908 = vmatpush.msra.mxu0 %v4140
  %4909 = vmatpush.msra.mxu0 %v4139
  %4910 = vmatpush.msra.mxu0 %v4138
  %4911 = vmatpush.msra.mxu0 %v4137
  %4912 = vmatpush.msra.mxu0 %v4136
  %4913 = vmatpush.msra.mxu0 %v4135
  %4914 = vmatpush.msra.mxu0 %v4134
  %4915 = vmatpush.msra.mxu0 %v4133
  %4916 = vmatpush.msra.mxu0 %v4132
  %4917 = vmatpush.msra.mxu0 %v4131
  %4918 = vmatpush.msra.mxu0 %v4130
  %4919 = vmatpush.msra.mxu0 %v4129
  %4920 = vmatpush.msra.mxu0 %v4128
  %4921 = vmatpush.msra.mxu0 %v4127
  %4922 = vmatmul.f32.gmra.mxu0 %v4204
  %v4923 = vpop.f32.mrf.mxu0
  %v4924 = vadd.f32 %v4901, %v4923
  %4925 = vmatmul.f32.gmra.mxu0 %v4236
  %v4926 = vpop.f32.mrf.mxu0
  %v4927 = vadd.f32 %v4904, %v4926
  %4928 = vdwg.mxu0
  %4929 = vmatpush.msra.mxu0 %v4158
  %4930 = vmatpush.msra.mxu0 %v4157
  %4931 = vmatpush.msra.mxu0 %v4156
  %4932 = vmatpush.msra.mxu0 %v4155
  %4933 = vmatpush.msra.mxu0 %v4154
  %4934 = vmatpush.msra.mxu0 %v4153
  %4935 = vmatpush.msra.mxu0 %v4152
  %4936 = vmatpush.msra.mxu0 %v4151
  %4937 = vmatpush.msra.mxu0 %v4150
  %4938 = vmatpush.msra.mxu0 %v4149
  %4939 = vmatpush.msra.mxu0 %v4148
  %4940 = vmatpush.msra.mxu0 %v4147
  %4941 = vmatpush.msra.mxu0 %v4146
  %4942 = vmatpush.msra.mxu0 %v4145
  %4943 = vmatpush.msra.mxu0 %v4144
  %4944 = vmatpush.msra.mxu0 %v4143
  %4945 = vmatmul.f32.gmra.mxu0 %v4205
  %v4946 = vpop.f32.mrf.mxu0
  %v4947 = vadd.f32 %v4924, %v4946
  %4948 = vmatmul.f32.gmra.mxu0 %v4237
  %v4949 = vpop.f32.mrf.mxu0
  %v4950 = vadd.f32 %v4927, %v4949
  %4951 = vdwg.mxu0
  %4952 = vmatpush.msra.mxu0 %v4174
  %4953 = vmatpush.msra.mxu0 %v4173
  %4954 = vmatpush.msra.mxu0 %v4172
  %4955 = vmatpush.msra.mxu0 %v4171
  %4956 = vmatpush.msra.mxu0 %v4170
  %4957 = vmatpush.msra.mxu0 %v4169
  %4958 = vmatpush.msra.mxu0 %v4168
  %4959 = vmatpush.msra.mxu0 %v4167
  %4960 = vmatpush.msra.mxu0 %v4166
  %4961 = vmatpush.msra.mxu0 %v4165
  %4962 = vmatpush.msra.mxu0 %v4164
  %4963 = vmatpush.msra.mxu0 %v4163
  %4964 = vmatpush.msra.mxu0 %v4162
  %4965 = vmatpush.msra.mxu0 %v4161
  %4966 = vmatpush.msra.mxu0 %v4160
  %4967 = vmatpush.msra.mxu0 %v4159
  %4968 = vmatmul.f32.gmra.mxu0 %v4206
  %v4969 = vpop.f32.mrf.mxu0
  %v4970 = vadd.f32 %v4947, %v4969
  %4971 = vmatmul.f32.gmra.mxu0 %v4238
  %v4972 = vpop.f32.mrf.mxu0
  %v4973 = vadd.f32 %v4950, %v4972
  %4974 = vdwg.mxu0
  %v4975 = vld [vmem:[%s4] sm:$0xff]
  %v4976 = vld [vmem:[%s5] sm:$0x1]
  %v4978 = vperm.slane %v4976, 0
  %vm4980 = vcmask 64512
  %v4982 = vsel %vm4980, %v4970, 0
  %v4985 = vsel %vm4980, %v4973, 0
  %4987 = vmatpush.msra.mxu0 0.0
  %4988 = vmatpush.msra.mxu0 0.0
  %4989 = vmatpush.msra.mxu0 0.0
  %4990 = vmatpush.msra.mxu0 0.0
  %4991 = vmatpush.msra.mxu0 0.0
  %4992 = vmatpush.msra.mxu0 0.0
  %4993 = vmatpush.msra.mxu0 0.0
  %4994 = vmatpush.msra.mxu0 0.0
  %4995 = vmatpush.msra.mxu0 0.0
  %4996 = vmatpush.msra.mxu0 0.0
  %4997 = vmatpush.msra.mxu0 0.0
  %4998 = vmatpush.msra.mxu0 0.0
  %4999 = vmatpush.msra.mxu0 0.0
  %5000 = vmatpush.msra.mxu0 0.0
  %5001 = vmatpush.msra.mxu0 0.0
  %5002 = vmatpush.msra.mxu0 %v4975
  %5003 = vmatmul.f32.gmra.mxu0 %v4982
  %v5004 = vpop.f32.mrf.mxu0
  %v5005 = vadd.f32 %v4978, %v5004
  %5006 = vmatmul.f32.gmra.mxu0 %v4985
  %v5007 = vpop.f32.mrf.mxu0
  %v5008 = vadd.f32 %v4978, %v5007
  %5009 = vdwg.mxu0
  %v5010 = vsub.f32 0.0, %v5005
  %v5011 = vsub.f32 0.0, %v5008
  %v5012 = vmul.f32 %v5010, 1.442695
  %v5013 = vpow.pop %v5012
  %v5014 = vmul.f32 %v5011, 1.442695
  %v5015 = vpow.pop %v5014
  %v5016 = vadd.f32 %v5013, 1.0
  %v5017 = vadd.f32 %v5015, 1.0
  %v5018 = vrcp.pop %v5016
  %v5019 = vmul.f32 %v5016, %v5018
  %v5020 = vsub.f32 1.0, %v5019
  %v5021 = vmul.f32 %v5018, %v5020
  %v5022 = vadd.f32 %v5018, %v5021
  %vm5023 = vweird.f32 %v5016
  %vm5024 = vweird.f32 %v5018
  %vm5025 = vmor %vm5023, %vm5024
  %v5026 = vsel %vm5025, %v5018, %v5022
  %v5027 = vand.u32 2147483647, %v5016
  %vm5028 = vcmp.eq.f32.partialorder %v5027, 8.507059e+37
  %v5029 = vand.u32 %v5016, 2147483648
  %v5030 = vor.u32 1.1754944e-38, %v5029
  %v5031 = vsel %vm5028, %v5030, %v5026
  %v5032 = vmul.f32 1.0, %v5031
  %v5033 = vrcp.pop %v5017
  %v5034 = vmul.f32 %v5017, %v5033
  %v5035 = vsub.f32 1.0, %v5034
  %v5036 = vmul.f32 %v5033, %v5035
  %v5037 = vadd.f32 %v5033, %v5036
  %vm5038 = vweird.f32 %v5017
  %vm5039 = vweird.f32 %v5033
  %vm5040 = vmor %vm5038, %vm5039
  %v5041 = vsel %vm5040, %v5033, %v5037
  %v5042 = vand.u32 2147483647, %v5017
  %vm5043 = vcmp.eq.f32.partialorder %v5042, 8.507059e+37
  %v5044 = vand.u32 %v5017, 2147483648
  %v5045 = vor.u32 1.1754944e-38, %v5044
  %v5046 = vsel %vm5043, %v5045, %v5041
  %v5047 = vmul.f32 1.0, %v5046
  %v5048 = vld [vmem:[%s6] sm:$0xff]
  %v5049 = vld [vmem:[%s6 + $0x8] sm:$0xff]
  %v5050 = vld [vmem:[%s6 + $0x10] sm:$0xff]
  %v5051 = vld [vmem:[%s6 + $0x18] sm:$0xff]
  %v5052 = vld [vmem:[%s6 + $0x20] sm:$0xff]
  %v5053 = vld [vmem:[%s6 + $0x28] sm:$0xff]
  %vm5054 = vcmask 130048
  %v5056 = vsel %vm5054, %v5032, 0
  %v5059 = vsel %vm5054, %v5047, 0
  %5061 = vmatpush.msra.mxu0 0.0
  %5062 = vmatpush.msra.mxu0 0.0
  %5063 = vmatpush.msra.mxu0 0.0
  %5064 = vmatpush.msra.mxu0 0.0
  %5065 = vmatpush.msra.mxu0 0.0
  %5066 = vmatpush.msra.mxu0 0.0
  %5067 = vmatpush.msra.mxu0 0.0
  %5068 = vmatpush.msra.mxu0 0.0
  %5069 = vmatpush.msra.mxu0 0.0
  %5070 = vmatpush.msra.mxu0 0.0
  %5071 = vmatpush.msra.mxu0 0.0
  %5072 = vmatpush.msra.mxu0 0.0
  %5073 = vmatpush.msra.mxu0 0.0
  %5074 = vmatpush.msra.mxu0 0.0
  %5075 = vmatpush.msra.mxu0 %v5051
  %5076 = vmatpush.msra.mxu0 %v5048
  %5077 = vmatmul.f32.gmra.mxu0 %v5056
  %v5078 = vpop.f32.mrf.mxu0
  %v5079 = vadd.f32 0.0, %v5078
  %5080 = vmatmul.f32.gmra.mxu0 %v5059
  %v5081 = vpop.f32.mrf.mxu0
  %v5082 = vadd.f32 0.0, %v5081
  %5083 = vdwg.mxu0
  %5084 = vmatpush.msra.mxu0 0.0
  %5085 = vmatpush.msra.mxu0 0.0
  %5086 = vmatpush.msra.mxu0 0.0
  %5087 = vmatpush.msra.mxu0 0.0
  %5088 = vmatpush.msra.mxu0 0.0
  %5089 = vmatpush.msra.mxu0 0.0
  %5090 = vmatpush.msra.mxu0 0.0
  %5091 = vmatpush.msra.mxu0 0.0
  %5092 = vmatpush.msra.mxu0 0.0
  %5093 = vmatpush.msra.mxu0 0.0
  %5094 = vmatpush.msra.mxu0 0.0
  %5095 = vmatpush.msra.mxu0 0.0
  %5096 = vmatpush.msra.mxu0 0.0
  %5097 = vmatpush.msra.mxu0 0.0
  %5098 = vmatpush.msra.mxu0 %v5052
  %5099 = vmatpush.msra.mxu0 %v5049
  %5100 = vmatmul.f32.gmra.mxu0 %v5056
  %v5101 = vpop.f32.mrf.mxu0
  %v5102 = vadd.f32 0.0, %v5101
  %5103 = vmatmul.f32.gmra.mxu0 %v5059
  %v5104 = vpop.f32.mrf.mxu0
  %v5105 = vadd.f32 0.0, %v5104
  %5106 = vdwg.mxu0
  %5107 = vmatpush.msra.mxu0 0.0
  %5108 = vmatpush.msra.mxu0 0.0
  %5109 = vmatpush.msra.mxu0 0.0
  %5110 = vmatpush.msra.mxu0 0.0
  %5111 = vmatpush.msra.mxu0 0.0
  %5112 = vmatpush.msra.mxu0 0.0
  %5113 = vmatpush.msra.mxu0 0.0
  %5114 = vmatpush.msra.mxu0 0.0
  %5115 = vmatpush.msra.mxu0 0.0
  %5116 = vmatpush.msra.mxu0 0.0
  %5117 = vmatpush.msra.mxu0 0.0
  %5118 = vmatpush.msra.mxu0 0.0
  %5119 = vmatpush.msra.mxu0 0.0
  %5120 = vmatpush.msra.mxu0 0.0
  %5121 = vmatpush.msra.mxu0 %v5053
  %5122 = vmatpush.msra.mxu0 %v5050
  %5123 = vmatmul.f32.gmra.mxu0 %v5056
  %v5124 = vpop.f32.mrf.mxu0
  %v5125 = vadd.f32 0.0, %v5124
  %5126 = vmatmul.f32.gmra.mxu0 %v5059
  %v5127 = vpop.f32.mrf.mxu0
  %v5128 = vadd.f32 0.0, %v5127
  %5129 = vdwg.mxu0
  %v5130 = vld [vmem:[%s8] sm:$0x7]
  %v5132 = vperm.slane %v5130, 0
  %v5133 = vperm.slane %v5130, 1
  %v5134 = vperm.slane %v5130, 2
  %v5138 = vsub.f32 %v5132, %v5079
  %v5139 = vsub.f32 %v5133, %v5102
  %v5140 = vsub.f32 %v5134, %v5125
  %v5141 = vsub.f32 %v5132, %v5082
  %v5142 = vsub.f32 %v5133, %v5105
  %v5143 = vsub.f32 %v5134, %v5128
  %v5144 = vmul.f32 %v5138, %v5138
  %v5145 = vmul.f32 %v5139, %v5139
  %v5146 = vmul.f32 %v5140, %v5140
  %v5147 = vmul.f32 %v5141, %v5141
  %v5148 = vmul.f32 %v5142, %v5142
  %v5149 = vmul.f32 %v5143, %v5143
  %v5150 = vmul.f32 %v5144, -1792.8215
  %v5151 = vmul.f32 %v5145, -1792.8215
  %v5152 = vmul.f32 %v5146, -1792.8215
  %v5153 = vmul.f32 %v5147, -1792.8215
  %v5154 = vmul.f32 %v5148, -1792.8215
  %v5155 = vmul.f32 %v5149, -1792.8215
  %v5156 = vmul.f32 %v5150, 1.442695
  %v5157 = vpow.pop %v5156
  %v5158 = vmul.f32 %v5151, 1.442695
  %v5159 = vpow.pop %v5158
  %v5160 = vmul.f32 %v5152, 1.442695
  %v5161 = vpow.pop %v5160
  %v5162 = vmul.f32 %v5153, 1.442695
  %v5163 = vpow.pop %v5162
  %v5164 = vmul.f32 %v5154, 1.442695
  %v5165 = vpow.pop %v5164
  %v5166 = vmul.f32 %v5155, 1.442695
  %v5167 = vpow.pop %v5166
  %v5168 = vmul.f32 %v5157, 23.88876
  %v5169 = vmul.f32 %v5159, 23.88876
  %v5170 = vmul.f32 %v5161, 23.88876
  %v5171 = vmul.f32 %v5163, 23.88876
  %v5172 = vmul.f32 %v5165, 23.88876
  %v5173 = vmul.f32 %v5167, 23.88876
  %v5174 = vld [vmem:[%s9] sm:$0x3]
  %v5176 = vsel %vm5054, %v5174, 0
  %5178 = vmatpush.msra.mxu0 0.0
  %5179 = vmatpush.msra.mxu0 0.0
  %5180 = vmatpush.msra.mxu0 0.0
  %5181 = vmatpush.msra.mxu0 0.0
  %5182 = vmatpush.msra.mxu0 0.0
  %5183 = vmatpush.msra.mxu0 0.0
  %5184 = vmatpush.msra.mxu0 0.0
  %5185 = vmatpush.msra.mxu0 0.0
  %5186 = vmatpush.msra.mxu0 0.0
  %5187 = vmatpush.msra.mxu0 0.0
  %5188 = vmatpush.msra.mxu0 0.0
  %5189 = vmatpush.msra.mxu0 0.0
  %5190 = vmatpush.msra.mxu0 0.0
  %5191 = vmatpush.msra.mxu0 0.0
  %5192 = vmatpush.msra.mxu0 %v5171
  %5193 = vmatpush.msra.mxu0 %v5168
  %5194 = vmatmul.f32.gmra.mxu0 %v5176
  %v5195 = vpop.f32.mrf.mxu0
  %v5196 = vadd.f32 0.0, %v5195
  %5197 = vdwg.mxu0
  %5198 = vmatpush.msra.mxu0 0.0
  %5199 = vmatpush.msra.mxu0 0.0
  %5200 = vmatpush.msra.mxu0 0.0
  %5201 = vmatpush.msra.mxu0 0.0
  %5202 = vmatpush.msra.mxu0 0.0
  %5203 = vmatpush.msra.mxu0 0.0
  %5204 = vmatpush.msra.mxu0 0.0
  %5205 = vmatpush.msra.mxu0 0.0
  %5206 = vmatpush.msra.mxu0 0.0
  %5207 = vmatpush.msra.mxu0 0.0
  %5208 = vmatpush.msra.mxu0 0.0
  %5209 = vmatpush.msra.mxu0 0.0
  %5210 = vmatpush.msra.mxu0 0.0
  %5211 = vmatpush.msra.mxu0 0.0
  %5212 = vmatpush.msra.mxu0 %v5172
  %5213 = vmatpush.msra.mxu0 %v5169
  %5214 = vmatmul.f32.gmra.mxu0 %v5176
  %v5215 = vpop.f32.mrf.mxu0
  %v5216 = vadd.f32 0.0, %v5215
  %5217 = vdwg.mxu0
  %5218 = vmatpush.msra.mxu0 0.0
  %5219 = vmatpush.msra.mxu0 0.0
  %5220 = vmatpush.msra.mxu0 0.0
  %5221 = vmatpush.msra.mxu0 0.0
  %5222 = vmatpush.msra.mxu0 0.0
  %5223 = vmatpush.msra.mxu0 0.0
  %5224 = vmatpush.msra.mxu0 0.0
  %5225 = vmatpush.msra.mxu0 0.0
  %5226 = vmatpush.msra.mxu0 0.0
  %5227 = vmatpush.msra.mxu0 0.0
  %5228 = vmatpush.msra.mxu0 0.0
  %5229 = vmatpush.msra.mxu0 0.0
  %5230 = vmatpush.msra.mxu0 0.0
  %5231 = vmatpush.msra.mxu0 0.0
  %5232 = vmatpush.msra.mxu0 %v5173
  %5233 = vmatpush.msra.mxu0 %v5170
  %5234 = vmatmul.f32.gmra.mxu0 %v5176
  %v5235 = vpop.f32.mrf.mxu0
  %v5236 = vadd.f32 0.0, %v5235
  %5237 = vdwg.mxu0
  %v5238 = vld [vmem:[%s7] sm:$0xff]
  %v5239 = vld [vmem:[%s7 + $0x8] sm:$0xff]
  %v5240 = vld [vmem:[%s7 + $0x10] sm:$0xff]
  %v5241 = vld [vmem:[%s7 + $0x18] sm:$0xff]
  %v5242 = vld [vmem:[%s7 + $0x20] sm:$0xff]
  %v5243 = vld [vmem:[%s7 + $0x28] sm:$0xff]
  %v5244 = vld [vmem:[%s7 + $0x30] sm:$0xff]
  %v5245 = vld [vmem:[%s7 + $0x38] sm:$0xff]
  %v5246 = vld [vmem:[%s7 + $0x40] sm:$0xff]
  %v5247 = vld [vmem:[%s7 + $0x48] sm:$0xff]
  %v5248 = vld [vmem:[%s7 + $0x50] sm:$0xff]
  %v5249 = vld [vmem:[%s7 + $0x58] sm:$0xff]
  %v5250 = vld [vmem:[%s7 + $0x60] sm:$0xff]
  %v5251 = vld [vmem:[%s7 + $0x68] sm:$0xff]
  %v5252 = vld [vmem:[%s7 + $0x70] sm:$0xff]
  %v5253 = vld [vmem:[%s7 + $0x78] sm:$0xff]
  %v5254 = vld [vmem:[%s7 + $0x80] sm:$0xff]
  %v5255 = vld [vmem:[%s7 + $0x88] sm:$0xff]
  %v5256 = vld [vmem:[%s7 + $0x90] sm:$0xff]
  %v5257 = vld [vmem:[%s7 + $0x98] sm:$0xff]
  %v5258 = vld [vmem:[%s7 + $0xa0] sm:$0xff]
  %v5259 = vld [vmem:[%s7 + $0xa8] sm:$0xff]
  %v5260 = vld [vmem:[%s7 + $0xb0] sm:$0xff]
  %v5261 = vld [vmem:[%s7 + $0xb8] sm:$0xff]
  %v5262 = vld [vmem:[%s7 + $0xc0] sm:$0xff]
  %v5263 = vld [vmem:[%s7 + $0xc8] sm:$0xff]
  %v5264 = vld [vmem:[%s7 + $0xd0] sm:$0xff]
  %v5265 = vld [vmem:[%s7 + $0xd8] sm:$0xff]
  %v5266 = vld [vmem:[%s7 + $0xe0] sm:$0xff]
  %v5267 = vld [vmem:[%s7 + $0xe8] sm:$0xff]
  %v5268 = vld [vmem:[%s7 + $0xf0] sm:$0xff]
  %v5269 = vld [vmem:[%s7 + $0xf8] sm:$0xff]
  %v5270 = vld [vmem:[%s7 + $0x100] sm:$0xff]
  %v5271 = vld [vmem:[%s7 + $0x108] sm:$0xff]
  %v5272 = vld [vmem:[%s7 + $0x110] sm:$0xff]
  %v5273 = vld [vmem:[%s7 + $0x118] sm:$0xff]
  %v5274 = vld [vmem:[%s7 + $0x120] sm:$0xff]
  %v5275 = vld [vmem:[%s7 + $0x128] sm:$0xff]
  %v5276 = vld [vmem:[%s7 + $0x130] sm:$0xff]
  %v5277 = vld [vmem:[%s7 + $0x138] sm:$0xff]
  %v5278 = vld [vmem:[%s7 + $0x140] sm:$0xff]
  %v5279 = vld [vmem:[%s7 + $0x148] sm:$0xff]
  %vm5280 = vcmask 654336
  %v5282 = vsel %vm5280, %v5236, 0
  %5284 = vmatpush.msra.mxu0 %v5253
  %5285 = vmatpush.msra.mxu0 %v5252
  %5286 = vmatpush.msra.mxu0 %v5251
  %5287 = vmatpush.msra.mxu0 %v5250
  %5288 = vmatpush.msra.mxu0 %v5249
  %5289 = vmatpush.msra.mxu0 %v5248
  %5290 = vmatpush.msra.mxu0 %v5247
  %5291 = vmatpush.msra.mxu0 %v5246
  %5292 = vmatpush.msra.mxu0 %v5245
  %5293 = vmatpush.msra.mxu0 %v5244
  %5294 = vmatpush.msra.mxu0 %v5243
  %5295 = vmatpush.msra.mxu0 %v5242
  %5296 = vmatpush.msra.mxu0 %v5241
  %5297 = vmatpush.msra.mxu0 %v5240
  %5298 = vmatpush.msra.mxu0 %v5239
  %5299 = vmatpush.msra.mxu0 %v5238
  %5300 = vmatmul.f32.gmra.mxu0 %v5196
  %v5301 = vpop.f32.mrf.mxu0
  %v5302 = vadd.f32 0.0, %v5301
  %5303 = vdwg.mxu0
  %5304 = vmatpush.msra.mxu0 %v5269
  %5305 = vmatpush.msra.mxu0 %v5268
  %5306 = vmatpush.msra.mxu0 %v5267
  %5307 = vmatpush.msra.mxu0 %v5266
  %5308 = vmatpush.msra.mxu0 %v5265
  %5309 = vmatpush.msra.mxu0 %v5264
  %5310 = vmatpush.msra.mxu0 %v5263
  %5311 = vmatpush.msra.mxu0 %v5262
  %5312 = vmatpush.msra.mxu0 %v5261
  %5313 = vmatpush.msra.mxu0 %v5260
  %5314 = vmatpush.msra.mxu0 %v5259
  %5315 = vmatpush.msra.mxu0 %v5258
  %5316 = vmatpush.msra.mxu0 %v5257
  %5317 = vmatpush.msra.mxu0 %v5256
  %5318 = vmatpush.msra.mxu0 %v5255
  %5319 = vmatpush.msra.mxu0 %v5254
  %5320 = vmatmul.f32.gmra.mxu0 %v5216
  %v5321 = vpop.f32.mrf.mxu0
  %v5322 = vadd.f32 %v5302, %v5321
  %5323 = vdwg.mxu0
  %5324 = vmatpush.msra.mxu0 0.0
  %5325 = vmatpush.msra.mxu0 0.0
  %5326 = vmatpush.msra.mxu0 0.0
  %5327 = vmatpush.msra.mxu0 0.0
  %5328 = vmatpush.msra.mxu0 0.0
  %5329 = vmatpush.msra.mxu0 0.0
  %5330 = vmatpush.msra.mxu0 %v5279
  %5331 = vmatpush.msra.mxu0 %v5278
  %5332 = vmatpush.msra.mxu0 %v5277
  %5333 = vmatpush.msra.mxu0 %v5276
  %5334 = vmatpush.msra.mxu0 %v5275
  %5335 = vmatpush.msra.mxu0 %v5274
  %5336 = vmatpush.msra.mxu0 %v5273
  %5337 = vmatpush.msra.mxu0 %v5272
  %5338 = vmatpush.msra.mxu0 %v5271
  %5339 = vmatpush.msra.mxu0 %v5270
  %5340 = vmatmul.f32.gmra.mxu0 %v5282
  %v5341 = vpop.f32.mrf.mxu0
  %v5342 = vadd.f32 %v5322, %v5341
  %5343 = vdwg.mxu0
  %v5345 = vsel %vm5054, %v5342, 0
  %5347 = vmatpush.msra.mxu0 0.0
  %5348 = vmatpush.msra.mxu0 0.0
  %5349 = vmatpush.msra.mxu0 0.0
  %5350 = vmatpush.msra.mxu0 0.0
  %5351 = vmatpush.msra.mxu0 0.0
  %5352 = vmatpush.msra.mxu0 0.0
  %5353 = vmatpush.msra.mxu0 0.0
  %5354 = vmatpush.msra.mxu0 0.0
  %5355 = vmatpush.msra.mxu0 0.0
  %5356 = vmatpush.msra.mxu0 0.0
  %5357 = vmatpush.msra.mxu0 0.0
  %5358 = vmatpush.msra.mxu0 0.0
  %5359 = vmatpush.msra.mxu0 0.0
  %5360 = vmatpush.msra.mxu0 0.0
  %5361 = vmatpush.msra.mxu0 %v5051
  %5362 = vmatpush.msra.mxu0 %v5048
  %5363 = vmatmul.f32.gmra.mxu0 %v5345
  %v5364 = vpop.f32.mrf.mxu0
  %v5365 = vadd.f32 0.0, %v5364
  %5366 = vdwg.mxu0
  %5367 = vmatpush.msra.mxu0 0.0
  %5368 = vmatpush.msra.mxu0 0.0
  %5369 = vmatpush.msra.mxu0 0.0
  %5370 = vmatpush.msra.mxu0 0.0
  %5371 = vmatpush.msra.mxu0 0.0
  %5372 = vmatpush.msra.mxu0 0.0
  %5373 = vmatpush.msra.mxu0 0.0
  %5374 = vmatpush.msra.mxu0 0.0
  %5375 = vmatpush.msra.mxu0 0.0
  %5376 = vmatpush.msra.mxu0 0.0
  %5377 = vmatpush.msra.mxu0 0.0
  %5378 = vmatpush.msra.mxu0 0.0
  %5379 = vmatpush.msra.mxu0 0.0
  %5380 = vmatpush.msra.mxu0 0.0
  %5381 = vmatpush.msra.mxu0 %v5052
  %5382 = vmatpush.msra.mxu0 %v5049
  %5383 = vmatmul.f32.gmra.mxu0 %v5345
  %v5384 = vpop.f32.mrf.mxu0
  %v5385 = vadd.f32 0.0, %v5384
  %5386 = vdwg.mxu0
  %5387 = vmatpush.msra.mxu0 0.0
  %5388 = vmatpush.msra.mxu0 0.0
  %5389 = vmatpush.msra.mxu0 0.0
  %5390 = vmatpush.msra.mxu0 0.0
  %5391 = vmatpush.msra.mxu0 0.0
  %5392 = vmatpush.msra.mxu0 0.0
  %5393 = vmatpush.msra.mxu0 0.0
  %5394 = vmatpush.msra.mxu0 0.0
  %5395 = vmatpush.msra.mxu0 0.0
  %5396 = vmatpush.msra.mxu0 0.0
  %5397 = vmatpush.msra.mxu0 0.0
  %5398 = vmatpush.msra.mxu0 0.0
  %5399 = vmatpush.msra.mxu0 0.0
  %5400 = vmatpush.msra.mxu0 0.0
  %5401 = vmatpush.msra.mxu0 %v5053
  %5402 = vmatpush.msra.mxu0 %v5050
  %5403 = vmatmul.f32.gmra.mxu0 %v5345
  %v5404 = vpop.f32.mrf.mxu0
  %v5405 = vadd.f32 0.0, %v5404
  %5406 = vdwg.mxu0
  %v5407 = vrcp.pop %v5365
  %v5408 = vmul.f32 %v5365, %v5407
  %v5409 = vsub.f32 1.0, %v5408
  %v5410 = vmul.f32 %v5407, %v5409
  %v5411 = vadd.f32 %v5407, %v5410
  %vm5412 = vweird.f32 %v5365
  %vm5413 = vweird.f32 %v5407
  %vm5414 = vmor %vm5412, %vm5413
  %v5415 = vsel %vm5414, %v5407, %v5411
  %v5416 = vand.u32 2147483647, %v5365
  %vm5417 = vcmp.eq.f32.partialorder %v5416, 8.507059e+37
  %v5418 = vand.u32 %v5365, 2147483648
  %v5419 = vor.u32 1.1754944e-38, %v5418
  %v5420 = vsel %vm5417, %v5419, %v5415
  %v5421 = vmul.f32 %v5196, %v5420
  %v5422 = vrcp.pop %v5385
  %v5423 = vmul.f32 %v5385, %v5422
  %v5424 = vsub.f32 1.0, %v5423
  %v5425 = vmul.f32 %v5422, %v5424
  %v5426 = vadd.f32 %v5422, %v5425
  %vm5427 = vweird.f32 %v5385
  %vm5428 = vweird.f32 %v5422
  %vm5429 = vmor %vm5427, %vm5428
  %v5430 = vsel %vm5429, %v5422, %v5426
  %v5431 = vand.u32 2147483647, %v5385
  %vm5432 = vcmp.eq.f32.partialorder %v5431, 8.507059e+37
  %v5433 = vand.u32 %v5385, 2147483648
  %v5434 = vor.u32 1.1754944e-38, %v5433
  %v5435 = vsel %vm5432, %v5434, %v5430
  %v5436 = vmul.f32 %v5216, %v5435
  %v5437 = vrcp.pop %v5405
  %v5438 = vmul.f32 %v5405, %v5437
  %v5439 = vsub.f32 1.0, %v5438
  %v5440 = vmul.f32 %v5437, %v5439
  %v5441 = vadd.f32 %v5437, %v5440
  %vm5442 = vweird.f32 %v5405
  %vm5443 = vweird.f32 %v5437
  %vm5444 = vmor %vm5442, %vm5443
  %v5445 = vsel %vm5444, %v5437, %v5441
  %v5446 = vand.u32 2147483647, %v5405
  %vm5447 = vcmp.eq.f32.partialorder %v5446, 8.507059e+37
  %v5448 = vand.u32 %v5405, 2147483648
  %v5449 = vor.u32 1.1754944e-38, %v5448
  %v5450 = vsel %vm5447, %v5449, %v5445
  %v5451 = vmul.f32 %v5236, %v5450
  %v5452 = vld [vmem:[%s10] sm:$0xff]
  %v5453 = vld [vmem:[%s10 + $0x8] sm:$0xff]
  %v5454 = vld [vmem:[%s10 + $0x10] sm:$0xff]
  %v5455 = vld [vmem:[%s10 + $0x18] sm:$0xff]
  %v5456 = vld [vmem:[%s10 + $0x20] sm:$0xff]
  %v5457 = vld [vmem:[%s10 + $0x28] sm:$0xff]
  %v5458 = vld [vmem:[%s10 + $0x30] sm:$0xff]
  %v5459 = vld [vmem:[%s10 + $0x38] sm:$0xff]
  %v5460 = vld [vmem:[%s10 + $0x40] sm:$0xff]
  %v5461 = vld [vmem:[%s10 + $0x48] sm:$0xff]
  %v5462 = vld [vmem:[%s10 + $0x50] sm:$0xff]
  %v5463 = vld [vmem:[%s10 + $0x58] sm:$0xff]
  %v5464 = vld [vmem:[%s10 + $0x60] sm:$0xff]
  %v5465 = vld [vmem:[%s10 + $0x68] sm:$0xff]
  %v5466 = vld [vmem:[%s10 + $0x70] sm:$0xff]
  %v5467 = vld [vmem:[%s10 + $0x78] sm:$0xff]
  %v5468 = vld [vmem:[%s10 + $0x80] sm:$0xff]
  %v5469 = vld [vmem:[%s10 + $0x88] sm:$0xff]
  %v5470 = vld [vmem:[%s10 + $0x90] sm:$0xff]
  %v5471 = vld [vmem:[%s10 + $0x98] sm:$0xff]
  %v5472 = vld [vmem:[%s10 + $0xa0] sm:$0xff]
  %v5473 = vld [vmem:[%s10 + $0xa8] sm:$0xff]
  %v5474 = vld [vmem:[%s10 + $0xb0] sm:$0xff]
  %v5475 = vld [vmem:[%s10 + $0xb8] sm:$0xff]
  %v5476 = vld [vmem:[%s10 + $0xc0] sm:$0xff]
  %v5477 = vld [vmem:[%s10 + $0xc8] sm:$0xff]
  %v5478 = vld [vmem:[%s10 + $0xd0] sm:$0xff]
  %v5479 = vld [vmem:[%s10 + $0xd8] sm:$0xff]
  %v5480 = vld [vmem:[%s10 + $0xe0] sm:$0xff]
  %v5481 = vld [vmem:[%s10 + $0xe8] sm:$0xff]
  %v5482 = vld [vmem:[%s10 + $0xf0] sm:$0xff]
  %v5483 = vld [vmem:[%s10 + $0xf8] sm:$0xff]
  %v5484 = vld [vmem:[%s10 + $0x100] sm:$0xff]
  %v5485 = vld [vmem:[%s10 + $0x108] sm:$0xff]
  %v5486 = vld [vmem:[%s10 + $0x110] sm:$0xff]
  %v5487 = vld [vmem:[%s10 + $0x118] sm:$0xff]
  %v5488 = vld [vmem:[%s10 + $0x120] sm:$0xff]
  %v5489 = vld [vmem:[%s10 + $0x128] sm:$0xff]
  %v5490 = vld [vmem:[%s10 + $0x130] sm:$0xff]
  %v5491 = vld [vmem:[%s10 + $0x138] sm:$0xff]
  %v5492 = vld [vmem:[%s10 + $0x140] sm:$0xff]
  %v5493 = vld [vmem:[%s10 + $0x148] sm:$0xff]
  %v5494 = vld [vmem:[%s11] sm:$0x1]
  %v5496 = vperm.slane %v5494, 0
  %v5499 = vsel %vm5280, %v5451, 0
  %5501 = vmatpush.msra.mxu0 %v5467
  %5502 = vmatpush.msra.mxu0 %v5466
  %5503 = vmatpush.msra.mxu0 %v5465
  %5504 = vmatpush.msra.mxu0 %v5464
  %5505 = vmatpush.msra.mxu0 %v5463
  %5506 = vmatpush.msra.mxu0 %v5462
  %5507 = vmatpush.msra.mxu0 %v5461
  %5508 = vmatpush.msra.mxu0 %v5460
  %5509 = vmatpush.msra.mxu0 %v5459
  %5510 = vmatpush.msra.mxu0 %v5458
  %5511 = vmatpush.msra.mxu0 %v5457
  %5512 = vmatpush.msra.mxu0 %v5456
  %5513 = vmatpush.msra.mxu0 %v5455
  %5514 = vmatpush.msra.mxu0 %v5454
  %5515 = vmatpush.msra.mxu0 %v5453
  %5516 = vmatpush.msra.mxu0 %v5452
  %5517 = vmatmul.f32.gmra.mxu0 %v5421
  %v5518 = vpop.f32.mrf.mxu0
  %v5519 = vadd.f32 %v5496, %v5518
  %5520 = vdwg.mxu0
  %5521 = vmatpush.msra.mxu0 %v5483
  %5522 = vmatpush.msra.mxu0 %v5482
  %5523 = vmatpush.msra.mxu0 %v5481
  %5524 = vmatpush.msra.mxu0 %v5480
  %5525 = vmatpush.msra.mxu0 %v5479
  %5526 = vmatpush.msra.mxu0 %v5478
  %5527 = vmatpush.msra.mxu0 %v5477
  %5528 = vmatpush.msra.mxu0 %v5476
  %5529 = vmatpush.msra.mxu0 %v5475
  %5530 = vmatpush.msra.mxu0 %v5474
  %5531 = vmatpush.msra.mxu0 %v5473
  %5532 = vmatpush.msra.mxu0 %v5472
  %5533 = vmatpush.msra.mxu0 %v5471
  %5534 = vmatpush.msra.mxu0 %v5470
  %5535 = vmatpush.msra.mxu0 %v5469
  %5536 = vmatpush.msra.mxu0 %v5468
  %5537 = vmatmul.f32.gmra.mxu0 %v5436
  %v5538 = vpop.f32.mrf.mxu0
  %v5539 = vadd.f32 %v5519, %v5538
  %5540 = vdwg.mxu0
  %5541 = vmatpush.msra.mxu0 0.0
  %5542 = vmatpush.msra.mxu0 0.0
  %5543 = vmatpush.msra.mxu0 0.0
  %5544 = vmatpush.msra.mxu0 0.0
  %5545 = vmatpush.msra.mxu0 0.0
  %5546 = vmatpush.msra.mxu0 0.0
  %5547 = vmatpush.msra.mxu0 %v5493
  %5548 = vmatpush.msra.mxu0 %v5492
  %5549 = vmatpush.msra.mxu0 %v5491
  %5550 = vmatpush.msra.mxu0 %v5490
  %5551 = vmatpush.msra.mxu0 %v5489
  %5552 = vmatpush.msra.mxu0 %v5488
  %5553 = vmatpush.msra.mxu0 %v5487
  %5554 = vmatpush.msra.mxu0 %v5486
  %5555 = vmatpush.msra.mxu0 %v5485
  %5556 = vmatpush.msra.mxu0 %v5484
  %5557 = vmatmul.f32.gmra.mxu0 %v5499
  %v5558 = vpop.f32.mrf.mxu0
  %v5559 = vadd.f32 %v5539, %v5558
  %5560 = vdwg.mxu0
  %v5561 = vmax.f32 %v5559, 0.0
  %v5562 = vld [vmem:[%s12] sm:$0x1]
  %v5564 = vperm.slane %v5562, 0
  %v5566 = vmul.f32 %v5561, %v5564
  %vm5567 = vcmask 254976
  %v5568 = vsel %vm5567, %v5566, 0.0
  %5569 = vadd.xlane.f32.xlu0 %v5568
  %v5570 = vpop.xlane.xlu0 %5569
  %v5571 = vld [vmem:[#allocation2] sm:$0x1]
  %v5573 = vperm.slane %v5571, 0
  %v5575 = vadd.f32 %v5570, %v5573
  %v5576 = vsub.f32 0.0, %v5575
  %v5577 = vmul.f32 %v5576, 1.442695
  %v5578 = vpow.pop %v5577
  %v5579 = vadd.f32 %v5578, 1.0
  %v5580 = vrcp.pop %v5579
  %v5581 = vmul.f32 %v5579, %v5580
  %v5582 = vsub.f32 1.0, %v5581
  %v5583 = vmul.f32 %v5580, %v5582
  %v5584 = vadd.f32 %v5580, %v5583
  %vm5585 = vweird.f32 %v5579
  %vm5586 = vweird.f32 %v5580
  %vm5587 = vmor %vm5585, %vm5586
  %v5588 = vsel %vm5587, %v5580, %v5584
  %v5589 = vand.u32 2147483647, %v5579
  %vm5590 = vcmp.eq.f32.partialorder %v5589, 8.507059e+37
  %v5591 = vand.u32 %v5579, 2147483648
  %v5592 = vor.u32 1.1754944e-38, %v5591
  %v5593 = vsel %vm5590, %v5592, %v5588
  %v5594 = vmul.f32 1.0, %v5593
  %vm5595 = vcmask 1024
  %5596 = vst.msk [vmem:[%s14] sm:$0x3] %vm5595, %v5594
  // Predicated region
  $region58: #{mil_model_forward.1} parent=0 // pred_check
    _
  $region59: #{mil_model_forward.1} parent=0 // pred_check_branch
    %5598 = sbr.rel (0) target = $region61
  $region60: #{mil_model_forward.1} parent=0 // pred_region
    _
  $region61: #{mil_model_forward.1} parent=0 // pred_fallthru
    _
  // Predicated region
  $region62: #{mil_model_forward.1} parent=0 // pred_check
    _
  $region63: #{mil_model_forward.1} parent=0 // pred_check_branch
    %5600 = sbr.rel (0) target = $region65
  $region64: #{mil_model_forward.1} parent=0 // pred_region
    _
  $region65: #{mil_model_forward.1} parent=0 // pred_fallthru
    _

</llo_original>
